<compile_context>
chip_gen: v7x
topology: tpu7x:2x2x1
jax: 0.10.0
libtpu: 0.0.40
codegen_flags: <defaults>
</compile_context>

<pallas_src>
import functools

import jax
import jax.numpy as jnp
import numpy as np
from jax import lax
from jax.experimental import pallas as pl
from jax.experimental.pallas import tpu as pltpu


# ----------------------------- small helpers ----------------------------- #
def _round_up(x, m):
    return (x + m - 1) // m * m


def _sig(x):
    # numerically stable sigmoid (no exp overflow)
    e = jnp.exp(-jnp.abs(x))
    inv = 1.0 / (1.0 + e)
    return jnp.where(x >= 0, inv, e * inv)


def _softplus(x):
    return jnp.maximum(x, 0.0) + jnp.log(1.0 + jnp.exp(-jnp.abs(x)))


def _softmax(x, axis=-1):
    m = jnp.max(x, axis=axis, keepdims=True)
    e = jnp.exp(x - m)
    return e / jnp.sum(e, axis=axis, keepdims=True)     # exact divide


# ------------------------------ the kernel ------------------------------- #
def ntm_seq_kernel(
    # inputs
    x_ref,        # (TT, BT, IN)      time-chunk of inputs for this batch tile
    reads0_ref,   # (nH, BT, M)       initial reads
    h0_ref,       # (BT, C)           initial hidden
    c0_ref,       # (BT, C)           initial cell
    mem0_ref,     # (BT, N, M)        initial memory
    w0_ref,       # (2nH, BT, N)      initial head weights
    lstm_w_ref,   # (IN + nH*M + C, 4C) stacked [W_x; W_r; W_h]  (bf16)
    lstm_b_ref,   # (1, 4C)           b_ih + b_hh                (f32)
    head_w_ref,   # (C, HP)           fused head projections, lane-padded (bf16)
    head_b_ref,   # (1, HP)
    out_w_ref,    # (C + nH*M, OP)    output projection, lane-padded (bf16)
    out_b_ref,    # (1, OP)
    # outputs (state blocks are VMEM-resident across the inner time axis)
    y_ref,        # (TT, BT, OP)
    h_ref,        # (BT, C)
    c_ref,        # (BT, C)
    mem_ref,      # (BT, N, M)
    w_ref,        # (2nH, BT, N)
    reads_ref,    # (nH, BT, M)
    *,
    num_heads,
    ctrl_size,
    mem_m,
    input_size,
    total_t,
    time_chunk,
):
    C = ctrl_size
    M = mem_m
    IN = input_size
    HSZ = 3 * M + 6
    f32 = jnp.float32
    tc = pl.program_id(1)                 # time-chunk index (inner, arbitrary)

    # ---- initialize the VMEM-resident recurrent state at the first chunk ----
    @pl.when(tc == 0)
    def _init():
        h_ref[...] = h0_ref[...]
        c_ref[...] = c0_ref[...]
        mem_ref[...] = mem0_ref[...]
        w_ref[...] = w0_ref[...]
        reads_ref[...] = reads0_ref[...]

    # hoist the bf16 weight loads + f32 casts out of the time loop
    lstm_w = lstm_w_ref[...].astype(f32)
    lstm_b = lstm_b_ref[...]
    head_w = head_w_ref[...].astype(f32)
    head_b = head_b_ref[...]
    out_w = out_w_ref[...].astype(f32)
    out_b = out_b_ref[...]
    hh_off = IN + num_heads * M           # first row of the W_hh block

    def step(tt, carry):
        h, c, mem, w_all, reads_all = carry
        x = x_ref[tt]                                               # (BT, IN)

        # ------------------- LSTMCell controller step ------------------- #
        gates = (jnp.dot(x, lstm_w[0:IN, :], preferred_element_type=f32)
                 + jnp.dot(h, lstm_w[hh_off:hh_off + C, :],
                           preferred_element_type=f32)
                 + lstm_b)
        for hi in range(num_heads):
            lo = IN + hi * M
            gates = gates + jnp.dot(reads_all[hi], lstm_w[lo:lo + M, :],
                                    preferred_element_type=f32)
        i_g = _sig(gates[:, 0:C])
        f_g = _sig(gates[:, C:2 * C])
        g_g = jnp.tanh(gates[:, 2 * C:3 * C])
        o_g = _sig(gates[:, 3 * C:4 * C])
        c_new = f_g * c + i_g * g_g
        h_new = o_g * jnp.tanh(c_new)

        # --------- all head projections in a single fused matmul --------- #
        z_all = jnp.dot(c_new, head_w, preferred_element_type=f32) + head_b

        mem_nrm = jnp.sqrt(jnp.sum(mem * mem, axis=-1))             # (BT, N)
        new_ws = []
        new_reads = []
        for p in range(num_heads):
            b0 = 2 * p
            zr = z_all[:, b0 * HSZ:(b0 + 1) * HSZ]                  # read head
            zw = z_all[:, (b0 + 1) * HSZ:(b0 + 2) * HSZ]            # write head

            # Both heads of the pair address the SAME memory version, so the
            # whole addressing pipeline is batched along a small head axis.
            keys = jnp.stack([zr[:, 0:M], zw[:, 0:M]], axis=1)               # (BT,2,M)
            beta = _softplus(jnp.stack([zr[:, M:M + 1],
                                        zw[:, M:M + 1]], axis=1))            # (BT,2,1)
            gate = _sig(jnp.stack([zr[:, M + 1:M + 2],
                                   zw[:, M + 1:M + 2]], axis=1))             # (BT,2,1)
            shift = _softmax(jnp.stack([zr[:, M + 2:M + 5],
                                        zw[:, M + 2:M + 5]], axis=1), -1)    # (BT,2,3)
            gamma = 1.0 + _softplus(jnp.stack([zr[:, M + 5:M + 6],
                                               zw[:, M + 5:M + 6]], axis=1)) # (BT,2,1)

            # content addressing: softmax(beta * cosine_similarity(key, mem))
            dots = jnp.einsum('bhm,bnm->bhn', keys, mem,
                              preferred_element_type=f32)                    # (BT,2,N)
            key_nrm = jnp.sqrt(jnp.sum(keys * keys, axis=-1, keepdims=True))
            sim = dots / jnp.maximum(key_nrm * mem_nrm[:, None, :], 1e-8)
            cw = _softmax(beta * sim, axis=-1)                               # (BT,2,N)

            # interpolation with previous weights
            prev_w = jnp.stack([w_all[b0], w_all[b0 + 1]], axis=1)           # (BT,2,N)
            iw = gate * cw + (1.0 - gate) * prev_w

            # circular 3-tap shift (lane-slice concat == jnp.roll; see header)
            iw_m1 = jnp.concatenate([iw[:, :, -1:], iw[:, :, :-1]], axis=-1)
            iw_p1 = jnp.concatenate([iw[:, :, 1:], iw[:, :, :1]], axis=-1)
            shifted = (shift[:, :, 0:1] * iw_m1
                       + shift[:, :, 1:2] * iw
                       + shift[:, :, 2:3] * iw_p1)

            # sharpening: w = shifted**gamma / (sum + 1e-16), exact divide
            sharp = jnp.exp(gamma * jnp.log(jnp.maximum(shifted, 1e-30)))
            w_pair = sharp / (jnp.sum(sharp, axis=-1, keepdims=True) + 1e-16)

            w_r = w_pair[:, 0]
            w_w = w_pair[:, 1]
            new_ws.append(w_r)
            new_ws.append(w_w)

            # read from (pre-write) memory
            reads_pair = jnp.einsum('bhn,bnm->bhm', w_pair, mem,
                                    preferred_element_type=f32)              # (BT,2,M)
            new_reads.append(reads_pair[:, 0])

            # write head: erase then add
            erase = _sig(zw[:, M + 6:2 * M + 6])
            add = jnp.tanh(zw[:, 2 * M + 6:3 * M + 6])
            mem = (mem * (1.0 - w_w[:, :, None] * erase[:, None, :])
                   + w_w[:, :, None] * add[:, None, :])
            if p + 1 < num_heads:                       # only if another pair follows
                mem_nrm = jnp.sqrt(jnp.sum(mem * mem, axis=-1))

        # ----------------------- controller output ----------------------- #
        y_lin = (jnp.dot(h_new, out_w[0:C, :], preferred_element_type=f32)
                 + out_b)
        for hi in range(num_heads):
            lo = C + hi * M
            y_lin = y_lin + jnp.dot(new_reads[hi], out_w[lo:lo + M, :],
                                    preferred_element_type=f32)
        y_ref[tt] = _sig(y_lin)                          # dense (BT, OP) store

        return (h_new, c_new, mem,
                jnp.stack(new_ws, axis=0), jnp.stack(new_reads, axis=0))

    if total_t % time_chunk == 0:
        n_steps = time_chunk                              # static trip count
    else:
        # ragged last chunk: do not run (or update state on) padding steps
        n_steps = jnp.minimum(time_chunk, total_t - tc * time_chunk)

    carry = (h_ref[...], c_ref[...], mem_ref[...], w_ref[...], reads_ref[...])
    h, c, mem, w_all, reads_all = lax.fori_loop(0, n_steps, step, carry)

    # single batched state write-back per chunk (no per-head partial stores)
    h_ref[...] = h
    c_ref[...] = c
    mem_ref[...] = mem
    w_ref[...] = w_all
    reads_ref[...] = reads_all


# --------------------- one-time parameter packing ------------------------ #
def pack_ntm_params(params, *, num_heads, ctrl_size, mem_m, output_size,
                    weight_dtype=jnp.bfloat16):
    """Packs NTM parameters for the kernel.  Call ONCE, outside the hot path."""
    C, M = ctrl_size, mem_m
    HSZ = 3 * M + 6
    OP = _round_up(output_size, 128)
    HP = _round_up(2 * num_heads * HSZ, 128)
    f32 = jnp.float32

    lstm_w = jnp.concatenate([params["w_ih_t"], params["w_hh_t"]], axis=0)
    hw = jnp.transpose(params["head_w"], (1, 0, 2)).reshape(C, 2 * num_heads * HSZ)
    hb = params["head_b"].reshape(1, 2 * num_heads * HSZ)
    out_w = params["out_w_t"]

    return {
        "lstm_w": lstm_w.astype(weight_dtype),
        "lstm_b": (params["b_ih"] + params["b_hh"]).astype(f32),
        "head_w": jnp.pad(hw, ((0, 0), (0, HP - hw.shape[1]))).astype(weight_dtype),
        "head_b": jnp.pad(hb, ((0, 0), (0, HP - hb.shape[1]))).astype(f32),
        "out_w": jnp.pad(out_w, ((0, 0), (0, OP - out_w.shape[1]))).astype(weight_dtype),
        "out_b": jnp.pad(params["out_b"], ((0, 0), (0, OP - output_size))).astype(f32),
    }


# ------------------------------ the wrapper ------------------------------ #
def ntm_forward_seq(packed, state, x_seq, *, num_heads, ctrl_size, mem_n, mem_m,
                    output_size, time_chunk=16, batch_tile=8):
    """Runs T NTM forward steps in one kernel. Returns (y_seq, new_state)."""
    T, B, input_size = x_seq.shape
    C, N, M = ctrl_size, mem_n, mem_m
    HSZ = 3 * M + 6
    f32 = jnp.float32

    BT = batch_tile
    Bp = _round_up(max(B, BT), BT)                 # fill sublanes / batch tiles
    nb = Bp // BT
    TT = min(time_chunk, T)                        # in-kernel time-loop length
    n_chunks = pl.cdiv(T, TT)
    Tp = n_chunks * TT
    OP = _round_up(output_size, 128)               # lane-dense y store
    HP = _round_up(2 * num_heads * HSZ, 128)       # fused head projection width
    lstm_in = input_size + num_heads * M + C

    def pad_batch(a, axis):
        if a.shape[axis] == Bp:
            return a.astype(f32)
        widths = [(0, 0)] * a.ndim
        widths[axis] = (0, Bp - a.shape[axis])
        return jnp.pad(a.astype(f32), widths)

    # NOTE: zero-padded batch rows flow through log/exp on all-zero memory
    # rows; the 1e-8 / 1e-30 / 1e-16 clamps keep them finite and the rows are
    # sliced off before returning -- do not remove the clamps.
    x_p = jnp.pad(x_seq.astype(f32), ((0, Tp - T), (0, Bp - B), (0, 0)))
    reads_p = pad_batch(state["prev_reads"], 1)
    h_p = pad_batch(state["h"], 0)
    c_p = pad_batch(state["c"], 0)
    mem_p = pad_batch(state["memory"], 0)
    w_p = pad_batch(state["prev_w"], 1)

    grid_spec = pltpu.PrefetchScalarGridSpec(
        num_scalar_prefetch=0,
        grid=(nb, n_chunks),              # batch tiles (parallel), time (inner)
        in_specs=[
            pl.BlockSpec((TT, BT, input_size), lambda b, t: (t, b, 0)),  # x chunk
            pl.BlockSpec((num_heads, BT, M), lambda b, t: (0, b, 0)),    # reads0
            pl.BlockSpec((BT, C), lambda b, t: (b, 0)),                  # h0
            pl.BlockSpec((BT, C), lambda b, t: (b, 0)),                  # c0
            pl.BlockSpec((BT, N, M), lambda b, t: (b, 0, 0)),            # mem0
            pl.BlockSpec((2 * num_heads, BT, N), lambda b, t: (0, b, 0)),# w0
            pl.BlockSpec((lstm_in, 4 * C), lambda b, t: (0, 0)),         # lstm_w
            pl.BlockSpec((1, 4 * C), lambda b, t: (0, 0)),               # lstm_b
            pl.BlockSpec((C, HP), lambda b, t: (0, 0)),                  # head_w
            pl.BlockSpec((1, HP), lambda b, t: (0, 0)),                  # head_b
            pl.BlockSpec((C + num_heads * M, OP), lambda b, t: (0, 0)),  # out_w
            pl.BlockSpec((1, OP), lambda b, t: (0, 0)),                  # out_b
        ],
        out_specs=(
            pl.BlockSpec((TT, BT, OP), lambda b, t: (t, b, 0)),          # y chunk
            pl.BlockSpec((BT, C), lambda b, t: (b, 0)),                  # h
            pl.BlockSpec((BT, C), lambda b, t: (b, 0)),                  # c
            pl.BlockSpec((BT, N, M), lambda b, t: (b, 0, 0)),            # memory
            pl.BlockSpec((2 * num_heads, BT, N), lambda b, t: (0, b, 0)),# head w
            pl.BlockSpec((num_heads, BT, M), lambda b, t: (0, b, 0)),    # reads
        ),
    )

    out_shapes = (
        jax.ShapeDtypeStruct((Tp, Bp, OP), f32),
        jax.ShapeDtypeStruct((Bp, C), f32),
        jax.ShapeDtypeStruct((Bp, C), f32),
        jax.ShapeDtypeStruct((Bp, N, M), f32),
        jax.ShapeDtypeStruct((2 * num_heads, Bp, N), f32),
        jax.ShapeDtypeStruct((num_heads, Bp, M), f32),
    )

    fn = pl.pallas_call(
        functools.partial(
            ntm_seq_kernel,
            num_heads=num_heads, ctrl_size=C, mem_m=M, input_size=input_size,
            total_t=T, time_chunk=TT),
        grid_spec=grid_spec,
        out_shape=out_shapes,
        compiler_params=pltpu.CompilerParams(
            dimension_semantics=("parallel", "arbitrary"),
            vmem_limit_bytes=32 * 1024 * 1024),
    )
    y_seq, h_new, c_new, mem_new, w_new, reads_new = fn(
        x_p, reads_p, h_p, c_p, mem_p, w_p,
        packed["lstm_w"], packed["lstm_b"], packed["head_w"], packed["head_b"],
        packed["out_w"], packed["out_b"])

    new_state = {
        "h": h_new[:B],
        "c": c_new[:B],
        "memory": mem_new[:B],
        "prev_w": w_new[:, :B],
        "prev_reads": reads_new[:, :B],
    }
    return y_seq[:T, :B, :output_size], new_state


# -------------------------- pure-JAX reference --------------------------- #
def ntm_step_reference(params, state, x, *, num_heads, ctrl_size, mem_m):
    C, M = ctrl_size, mem_m
    xr = jnp.concatenate(
        [x] + [state["prev_reads"][hi] for hi in range(num_heads)], axis=-1)
    gates = (xr @ params["w_ih_t"] + params["b_ih"]
             + state["h"] @ params["w_hh_t"] + params["b_hh"])
    i_g = jax.nn.sigmoid(gates[:, 0:C])
    f_g = jax.nn.sigmoid(gates[:, C:2 * C])
    g_g = jnp.tanh(gates[:, 2 * C:3 * C])
    o_g = jax.nn.sigmoid(gates[:, 3 * C:4 * C])
    c_new = f_g * state["c"] + i_g * g_g
    h_new = o_g * jnp.tanh(c_new)

    mem = state["memory"]
    read_data, head_ws = [], []
    for head_idx in range(2 * num_heads):
        z = c_new @ params["head_w"][head_idx] + params["head_b"][head_idx]
        key = z[:, 0:M]
        beta = jax.nn.softplus(z[:, M:M + 1])
        gate = jax.nn.sigmoid(z[:, M + 1:M + 2])
        shift = jax.nn.softmax(z[:, M + 2:M + 5], axis=-1)
        gamma = 1.0 + jax.nn.softplus(z[:, M + 5:M + 6])
        dot = jnp.sum(key[:, None, :] * mem, axis=-1)
        sim = dot / jnp.maximum(
            jnp.linalg.norm(key, axis=-1, keepdims=True)
            * jnp.linalg.norm(mem, axis=-1), 1e-8)
        cw = jax.nn.softmax(beta * sim, axis=-1)
        iw = gate * cw + (1.0 - gate) * state["prev_w"][head_idx]
        shifted = (shift[:, 0:1] * jnp.roll(iw, 1, axis=-1)
                   + shift[:, 1:2] * iw
                   + shift[:, 2:3] * jnp.roll(iw, -1, axis=-1))
        sharp = jnp.exp(gamma * jnp.log(jnp.maximum(shifted, 1e-30)))
        w = sharp / (jnp.sum(sharp, axis=-1, keepdims=True) + 1e-16)
        head_ws.append(w)
        if head_idx % 2 == 0:
            read_data.append(jnp.sum(w[:, :, None] * mem, axis=1))
        else:
            erase = jax.nn.sigmoid(z[:, M + 6:2 * M + 6])
            add = jnp.tanh(z[:, 2 * M + 6:3 * M + 6])
            mem = (mem * (1.0 - w[:, :, None] * erase[:, None, :])
                   + w[:, :, None] * add[:, None, :])
    complete = jnp.concatenate([h_new] + read_data, axis=-1)
    y = jax.nn.sigmoid(complete @ params["out_w_t"] + params["out_b"])
    new_state = {"h": h_new, "c": c_new, "memory": mem,
                 "prev_w": jnp.stack(head_ws), "prev_reads": jnp.stack(read_data)}
    return y, new_state


# --------------------------------- main ----------------------------------- #
if __name__ == "__main__":
    B = 2
    T = 6
    input_size = 8
    output_size = 8
    C = 32            # controller_size
    N = 16            # memory_units
    M = 8             # memory_unit_size
    num_heads = 1

    ih_rows = input_size + num_heads * M          # 16 rows of W_ih^T
    head_out = 3 * M + 6                          # key|beta|gate|shift3|gamma|erase|add
    read_size = C + num_heads * M                 # 40

    key = jax.random.PRNGKey(0)
    ks = list(jax.random.split(key, 16))

    def uinit(k, shape, fan_in):
        bound = float(np.sqrt(1.0 / fan_in))
        return jax.random.uniform(k, shape, jnp.float32, -bound, bound)

    def bf16_exact(a):
        # round matmul weights to bf16-representable values so the kernel's
        # bf16 weight storage is lossless w.r.t. the f32 reference
        return a.astype(jnp.bfloat16).astype(jnp.float32)

    params = {
        # LSTMCell params, pre-transposed to (in, 4C); gate order [i, f, g, o]
        "w_ih_t": bf16_exact(uinit(ks[0], (ih_rows, 4 * C), ih_rows)),
        "w_hh_t": bf16_exact(uinit(ks[1], (C, 4 * C), C)),
        "b_ih":   uinit(ks[2], (1, 4 * C), C),
        "b_hh":   uinit(ks[3], (1, 4 * C), C),
        # stacked head linears: [read_head_0, write_head_0]
        "head_w": bf16_exact(uinit(ks[4], (2 * num_heads, C, head_out), C)),
        "head_b": uinit(ks[5], (2 * num_heads, 1, head_out), C),
        # output projection, pre-transposed to (in, out)
        "out_w_t": bf16_exact(uinit(ks[6], (read_size, output_size), read_size)),
        "out_b":   uinit(ks[7], (1, output_size), read_size),
    }

    state = {
        "h": jnp.zeros((B, C), jnp.float32),
        "c": jnp.zeros((B, C), jnp.float32),
        "memory": uinit(ks[8], (B, N, M), M),
        "prev_w": jnp.zeros((2 * num_heads, B, N), jnp.float32),
        "prev_reads": uinit(ks[9], (num_heads, B, M), M),
    }

    x_seq = jax.random.normal(ks[10], (T, B, input_size), jnp.float32)

    # one-time parameter packing, hoisted out of the per-call path
    packed = pack_ntm_params(
        params, num_heads=num_heads, ctrl_size=C, mem_m=M,
        output_size=output_size)

    y_seq, new_state = ntm_forward_seq(
        packed, state, x_seq,
        num_heads=num_heads, ctrl_size=C, mem_n=N, mem_m=M,
        output_size=output_size,
    )
    y_seq = jax.block_until_ready(y_seq)

    # ---- check against the pure-JAX per-step reference of the same math ----
    ref_state = dict(state)
    ys = []
    for t in range(T):
        y_t, ref_state = ntm_step_reference(
            params, ref_state, x_seq[t],
            num_heads=num_heads, ctrl_size=C, mem_m=M)
        ys.append(y_t)
    y_ref = jnp.stack(ys)

    err_y = float(jnp.max(jnp.abs(y_seq - y_ref)))
    err_mem = float(jnp.max(jnp.abs(new_state["memory"] - ref_state["memory"])))
    err_w = float(jnp.max(jnp.abs(new_state["prev_w"] - ref_state["prev_w"])))
    err_h = float(jnp.max(jnp.abs(new_state["h"] - ref_state["h"])))

    assert y_seq.shape == (T, B, output_size)
    assert np.isfinite(np.asarray(y_seq)).all()
    # exact divides on the recurrent path -> much tighter tolerance than before
    assert err_y < 2e-3, f"output mismatch vs reference: {err_y}"
    assert err_mem < 2e-3, f"memory mismatch vs reference: {err_mem}"
    assert err_w < 2e-3, f"head-weight mismatch vs reference: {err_w}"
    assert err_h < 2e-3, f"hidden-state mismatch vs reference: {err_h}"

    print("KERNEL_OK")
</pallas_src>

<mosaic_0001>
module attributes {stable_mosaic.version = 11 : i64} {
  func.func @ntm_seq_kernel(%arg0: i32, %arg1: i32, %arg2: memref<6x8x8xf32, #tpu.memory_space<vmem>>, %arg3: memref<1x8x8xf32, #tpu.memory_space<vmem>>, %arg4: memref<8x32xf32, #tpu.memory_space<vmem>>, %arg5: memref<8x32xf32, #tpu.memory_space<vmem>>, %arg6: memref<8x16x8xf32, #tpu.memory_space<vmem>>, %arg7: memref<2x8x16xf32, #tpu.memory_space<vmem>>, %arg8: memref<48x128xbf16, #tpu.memory_space<vmem>>, %arg9: memref<1x128xf32, #tpu.memory_space<vmem>>, %arg10: memref<32x128xbf16, #tpu.memory_space<vmem>>, %arg11: memref<1x128xf32, #tpu.memory_space<vmem>>, %arg12: memref<40x128xbf16, #tpu.memory_space<vmem>>, %arg13: memref<1x128xf32, #tpu.memory_space<vmem>>, %arg14: memref<6x8x128xf32, #tpu.memory_space<vmem>>, %arg15: memref<8x32xf32, #tpu.memory_space<vmem>>, %arg16: memref<8x32xf32, #tpu.memory_space<vmem>>, %arg17: memref<8x16x8xf32, #tpu.memory_space<vmem>>, %arg18: memref<2x8x16xf32, #tpu.memory_space<vmem>>, %arg19: memref<1x8x8xf32, #tpu.memory_space<vmem>>) attributes {dimension_semantics = [#tpu.dimension_semantics<parallel>, #tpu.dimension_semantics<arbitrary>], iteration_bounds = array<i64: 1, 1>, scalar_prefetch = 0 : i64, scratch_operands = 0 : i64, tpu.core_type = #tpu.core_type<tc>, window_params = [{transform_indices = @transform_0, window_bounds = array<i64: 6, 8, 8>}, {transform_indices = @transform_1, window_bounds = array<i64: 1, 8, 8>}, {transform_indices = @transform_2, window_bounds = array<i64: 8, 32>}, {transform_indices = @transform_3, window_bounds = array<i64: 8, 32>}, {transform_indices = @transform_4, window_bounds = array<i64: 8, 16, 8>}, {transform_indices = @transform_5, window_bounds = array<i64: 2, 8, 16>}, {pipeline_mode = #tpu.pipeline_mode<synchronous>, transform_indices = @transform_6, window_bounds = array<i64: 48, 128>}, {pipeline_mode = #tpu.pipeline_mode<synchronous>, transform_indices = @transform_7, window_bounds = array<i64: 1, 128>}, {pipeline_mode = #tpu.pipeline_mode<synchronous>, transform_indices = @transform_8, window_bounds = array<i64: 32, 128>}, {pipeline_mode = #tpu.pipeline_mode<synchronous>, transform_indices = @transform_9, window_bounds = array<i64: 1, 128>}, {pipeline_mode = #tpu.pipeline_mode<synchronous>, transform_indices = @transform_10, window_bounds = array<i64: 40, 128>}, {pipeline_mode = #tpu.pipeline_mode<synchronous>, transform_indices = @transform_11, window_bounds = array<i64: 1, 128>}, {transform_indices = @transform_12, window_bounds = array<i64: 6, 8, 128>}, {transform_indices = @transform_13, window_bounds = array<i64: 8, 32>}, {transform_indices = @transform_14, window_bounds = array<i64: 8, 32>}, {transform_indices = @transform_15, window_bounds = array<i64: 8, 16, 8>}, {transform_indices = @transform_16, window_bounds = array<i64: 2, 8, 16>}, {transform_indices = @transform_17, window_bounds = array<i64: 1, 8, 8>}]} {
    %c0_i32 = arith.constant 0 : i32
    %0 = arith.cmpi eq, %arg1, %c0_i32 : i32
    %1 = arith.extui %0 : i1 to i32
    %c0_i32_0 = arith.constant 0 : i32
    %2 = arith.cmpi ne, %1, %c0_i32_0 : i32
    scf.if %2 {
      %c0_40 = arith.constant 0 : index
      %c0_41 = arith.constant 0 : index
      %24 = vector.load %arg4[%c0_40, %c0_41] : memref<8x32xf32, #tpu.memory_space<vmem>>, vector<8x32xf32>
      %c0_42 = arith.constant 0 : index
      %c0_43 = arith.constant 0 : index
      %25 = vector.load %arg15[%c0_42, %c0_43] : memref<8x32xf32, #tpu.memory_space<vmem>>, vector<8x32xf32>
      tpu.vector_store %arg15[%c0_42, %c0_43], %24 {strides = array<i32>} : memref<8x32xf32, #tpu.memory_space<vmem>>, vector<8x32xf32>,
      %c0_44 = arith.constant 0 : index
      %c0_45 = arith.constant 0 : index
      %26 = vector.load %arg5[%c0_44, %c0_45] : memref<8x32xf32, #tpu.memory_space<vmem>>, vector<8x32xf32>
      %c0_46 = arith.constant 0 : index
      %c0_47 = arith.constant 0 : index
      %27 = vector.load %arg16[%c0_46, %c0_47] : memref<8x32xf32, #tpu.memory_space<vmem>>, vector<8x32xf32>
      tpu.vector_store %arg16[%c0_46, %c0_47], %26 {strides = array<i32>} : memref<8x32xf32, #tpu.memory_space<vmem>>, vector<8x32xf32>,
      %c0_48 = arith.constant 0 : index
      %c0_49 = arith.constant 0 : index
      %c0_50 = arith.constant 0 : index
      %28 = vector.load %arg6[%c0_48, %c0_49, %c0_50] : memref<8x16x8xf32, #tpu.memory_space<vmem>>, vector<8x16x8xf32>
      %c0_51 = arith.constant 0 : index
      %c0_52 = arith.constant 0 : index
      %c0_53 = arith.constant 0 : index
      %29 = vector.load %arg17[%c0_51, %c0_52, %c0_53] : memref<8x16x8xf32, #tpu.memory_space<vmem>>, vector<8x16x8xf32>
      tpu.vector_store %arg17[%c0_51, %c0_52, %c0_53], %28 {strides = array<i32>} : memref<8x16x8xf32, #tpu.memory_space<vmem>>, vector<8x16x8xf32>,
      %c0_54 = arith.constant 0 : index
      %c0_55 = arith.constant 0 : index
      %c0_56 = arith.constant 0 : index
      %30 = vector.load %arg7[%c0_54, %c0_55, %c0_56] : memref<2x8x16xf32, #tpu.memory_space<vmem>>, vector<2x8x16xf32>
      %c0_57 = arith.constant 0 : index
      %c0_58 = arith.constant 0 : index
      %c0_59 = arith.constant 0 : index
      %31 = vector.load %arg18[%c0_57, %c0_58, %c0_59] : memref<2x8x16xf32, #tpu.memory_space<vmem>>, vector<2x8x16xf32>
      tpu.vector_store %arg18[%c0_57, %c0_58, %c0_59], %30 {strides = array<i32>} : memref<2x8x16xf32, #tpu.memory_space<vmem>>, vector<2x8x16xf32>,
      %c0_60 = arith.constant 0 : index
      %c0_61 = arith.constant 0 : index
      %c0_62 = arith.constant 0 : index
      %32 = vector.load %arg3[%c0_60, %c0_61, %c0_62] : memref<1x8x8xf32, #tpu.memory_space<vmem>>, vector<1x8x8xf32>
      %c0_63 = arith.constant 0 : index
      %c0_64 = arith.constant 0 : index
      %c0_65 = arith.constant 0 : index
      %33 = vector.load %arg19[%c0_63, %c0_64, %c0_65] : memref<1x8x8xf32, #tpu.memory_space<vmem>>, vector<1x8x8xf32>
      tpu.vector_store %arg19[%c0_63, %c0_64, %c0_65], %32 {strides = array<i32>} : memref<1x8x8xf32, #tpu.memory_space<vmem>>, vector<1x8x8xf32>,
    } else {
    }
    %c0 = arith.constant 0 : index
    %c0_1 = arith.constant 0 : index
    %3 = vector.load %arg8[%c0, %c0_1] : memref<48x128xbf16, #tpu.memory_space<vmem>>, vector<48x128xbf16>
    %4 = arith.extf %3 : vector<48x128xbf16> to vector<48x128xf32>
    %c0_2 = arith.constant 0 : index
    %c0_3 = arith.constant 0 : index
    %5 = vector.load %arg9[%c0_2, %c0_3] : memref<1x128xf32, #tpu.memory_space<vmem>>, vector<1x128xf32>
    %c0_4 = arith.constant 0 : index
    %c0_5 = arith.constant 0 : index
    %6 = vector.load %arg10[%c0_4, %c0_5] : memref<32x128xbf16, #tpu.memory_space<vmem>>, vector<32x128xbf16>
    %7 = arith.extf %6 : vector<32x128xbf16> to vector<32x128xf32>
    %c0_6 = arith.constant 0 : index
    %c0_7 = arith.constant 0 : index
    %8 = vector.load %arg11[%c0_6, %c0_7] : memref<1x128xf32, #tpu.memory_space<vmem>>, vector<1x128xf32>
    %c0_8 = arith.constant 0 : index
    %c0_9 = arith.constant 0 : index
    %9 = vector.load %arg12[%c0_8, %c0_9] : memref<40x128xbf16, #tpu.memory_space<vmem>>, vector<40x128xbf16>
    %10 = arith.extf %9 : vector<40x128xbf16> to vector<40x128xf32>
    %c0_10 = arith.constant 0 : index
    %c0_11 = arith.constant 0 : index
    %11 = vector.load %arg13[%c0_10, %c0_11] : memref<1x128xf32, #tpu.memory_space<vmem>>, vector<1x128xf32>
    %c0_12 = arith.constant 0 : index
    %c0_13 = arith.constant 0 : index
    %12 = vector.load %arg15[%c0_12, %c0_13] : memref<8x32xf32, #tpu.memory_space<vmem>>, vector<8x32xf32>
    %c0_14 = arith.constant 0 : index
    %c0_15 = arith.constant 0 : index
    %13 = vector.load %arg16[%c0_14, %c0_15] : memref<8x32xf32, #tpu.memory_space<vmem>>, vector<8x32xf32>
    %c0_16 = arith.constant 0 : index
    %c0_17 = arith.constant 0 : index
    %c0_18 = arith.constant 0 : index
    %14 = vector.load %arg17[%c0_16, %c0_17, %c0_18] : memref<8x16x8xf32, #tpu.memory_space<vmem>>, vector<8x16x8xf32>
    %c0_19 = arith.constant 0 : index
    %c0_20 = arith.constant 0 : index
    %c0_21 = arith.constant 0 : index
    %15 = vector.load %arg18[%c0_19, %c0_20, %c0_21] : memref<2x8x16xf32, #tpu.memory_space<vmem>>, vector<2x8x16xf32>
    %c0_22 = arith.constant 0 : index
    %c0_23 = arith.constant 0 : index
    %c0_24 = arith.constant 0 : index
    %16 = vector.load %arg19[%c0_22, %c0_23, %c0_24] : memref<1x8x8xf32, #tpu.memory_space<vmem>>, vector<1x8x8xf32>
    %c0_i32_25 = arith.constant 0 : i32
    %c6_i32 = arith.constant 6 : i32
    %17 = arith.addi %c0_i32_25, %c6_i32 : i32
    %c1_i32 = arith.constant 1 : i32
    %18:5 = scf.for %arg20 = %c0_i32_25 to %17 step %c1_i32 iter_args(%arg21 = %12, %arg22 = %13, %arg23 = %14, %arg24 = %15, %arg25 = %16) -> (vector<8x32xf32>, vector<8x32xf32>, vector<8x16x8xf32>, vector<2x8x16xf32>, vector<1x8x8xf32>)  : i32 {
      %24 = arith.index_cast %arg20 : i32 to index
      %c0_40 = arith.constant 0 : index
      %c0_41 = arith.constant 0 : index
      %25 = vector.load %arg2[%24, %c0_40, %c0_41] : memref<6x8x8xf32, #tpu.memory_space<vmem>>, vector<1x8x8xf32>
      %26 = vector.shape_cast %25 : vector<1x8x8xf32> to vector<8x8xf32>
      %27 = vector.extract_strided_slice %4 {offsets = [0, 0], sizes = [8, 128], strides = [1, 1]} : vector<48x128xf32> to vector<8x128xf32>
      %cst = arith.constant dense<0.000000e+00> : vector<8x128xf32>
      %28 = tpu.matmul %26, %27, %cst {dimension_numbers = #tpu.dot_dimension_numbers<[1], [0], [0], [1], [0, 0, 1, 1], [], []>} : vector<8x8xf32>, vector<8x128xf32>, vector<8x128xf32> -> vector<8x128xf32>
      %29 = vector.extract_strided_slice %4 {offsets = [16, 0], sizes = [32, 128], strides = [1, 1]} : vector<48x128xf32> to vector<32x128xf32>
      %cst_42 = arith.constant dense<0.000000e+00> : vector<8x128xf32>
      %30 = tpu.matmul %arg21, %29, %cst_42 {dimension_numbers = #tpu.dot_dimension_numbers<[1], [0], [0], [1], [0, 0, 1, 1], [], []>} : vector<8x32xf32>, vector<32x128xf32>, vector<8x128xf32> -> vector<8x128xf32>
      %31 = arith.addf %28, %30 : vector<8x128xf32>
      %32 = vector.broadcast %5 : vector<1x128xf32> to vector<8x128xf32>
      %33 = arith.addf %31, %32 : vector<8x128xf32>
      %34 = vector.shape_cast %arg25 : vector<1x8x8xf32> to vector<8x8xf32>
      %35 = vector.extract_strided_slice %4 {offsets = [8, 0], sizes = [8, 128], strides = [1, 1]} : vector<48x128xf32> to vector<8x128xf32>
      %cst_43 = arith.constant dense<0.000000e+00> : vector<8x128xf32>
      %36 = tpu.matmul %34, %35, %cst_43 {dimension_numbers = #tpu.dot_dimension_numbers<[1], [0], [0], [1], [0, 0, 1, 1], [], []>} : vector<8x8xf32>, vector<8x128xf32>, vector<8x128xf32> -> vector<8x128xf32>
      %37 = arith.addf %33, %36 : vector<8x128xf32>
      %38 = vector.extract_strided_slice %37 {offsets = [0, 0], sizes = [8, 32], strides = [1, 1]} : vector<8x128xf32> to vector<8x32xf32>
      %39 = math.absf %38 : vector<8x32xf32>
      %cst_44 = arith.constant 0.000000e+00 : f32
      %40 = vector.broadcast %cst_44 : f32 to vector<8x32xf32>
      %41 = arith.subf %40, %39 : vector<8x32xf32>
      %42 = math.exp %41 : vector<8x32xf32>
      %cst_45 = arith.constant 1.000000e+00 : f32
      %43 = vector.broadcast %cst_45 : f32 to vector<8x32xf32>
      %44 = arith.addf %43, %42 : vector<8x32xf32>
      %cst_46 = arith.constant 1.000000e+00 : f32
      %45 = vector.broadcast %cst_46 : f32 to vector<8x32xf32>
      %46 = arith.divf %45, %44 : vector<8x32xf32>
      %cst_47 = arith.constant 0.000000e+00 : f32
      %47 = vector.broadcast %cst_47 : f32 to vector<8x32xf32>
      %48 = arith.cmpf oge, %38, %47 : vector<8x32xf32>
      %49 = arith.mulf %42, %46 : vector<8x32xf32>
      %50 = arith.select %48, %46, %49 : vector<8x32xi1>, vector<8x32xf32>
      %51 = vector.extract_strided_slice %37 {offsets = [0, 32], sizes = [8, 32], strides = [1, 1]} : vector<8x128xf32> to vector<8x32xf32>
      %52 = math.absf %51 : vector<8x32xf32>
      %cst_48 = arith.constant 0.000000e+00 : f32
      %53 = vector.broadcast %cst_48 : f32 to vector<8x32xf32>
      %54 = arith.subf %53, %52 : vector<8x32xf32>
      %55 = math.exp %54 : vector<8x32xf32>
      %cst_49 = arith.constant 1.000000e+00 : f32
      %56 = vector.broadcast %cst_49 : f32 to vector<8x32xf32>
      %57 = arith.addf %56, %55 : vector<8x32xf32>
      %cst_50 = arith.constant 1.000000e+00 : f32
      %58 = vector.broadcast %cst_50 : f32 to vector<8x32xf32>
      %59 = arith.divf %58, %57 : vector<8x32xf32>
      %cst_51 = arith.constant 0.000000e+00 : f32
      %60 = vector.broadcast %cst_51 : f32 to vector<8x32xf32>
      %61 = arith.cmpf oge, %51, %60 : vector<8x32xf32>
      %62 = arith.mulf %55, %59 : vector<8x32xf32>
      %63 = arith.select %61, %59, %62 : vector<8x32xi1>, vector<8x32xf32>
      %64 = vector.extract_strided_slice %37 {offsets = [0, 64], sizes = [8, 32], strides = [1, 1]} : vector<8x128xf32> to vector<8x32xf32>
      %65 = math.tanh %64 : vector<8x32xf32>
      %66 = vector.extract_strided_slice %37 {offsets = [0, 96], sizes = [8, 32], strides = [1, 1]} : vector<8x128xf32> to vector<8x32xf32>
      %67 = math.absf %66 : vector<8x32xf32>
      %cst_52 = arith.constant 0.000000e+00 : f32
      %68 = vector.broadcast %cst_52 : f32 to vector<8x32xf32>
      %69 = arith.subf %68, %67 : vector<8x32xf32>
      %70 = math.exp %69 : vector<8x32xf32>
      %cst_53 = arith.constant 1.000000e+00 : f32
      %71 = vector.broadcast %cst_53 : f32 to vector<8x32xf32>
      %72 = arith.addf %71, %70 : vector<8x32xf32>
      %cst_54 = arith.constant 1.000000e+00 : f32
      %73 = vector.broadcast %cst_54 : f32 to vector<8x32xf32>
      %74 = arith.divf %73, %72 : vector<8x32xf32>
      %cst_55 = arith.constant 0.000000e+00 : f32
      %75 = vector.broadcast %cst_55 : f32 to vector<8x32xf32>
      %76 = arith.cmpf oge, %66, %75 : vector<8x32xf32>
      %77 = arith.mulf %70, %74 : vector<8x32xf32>
      %78 = arith.select %76, %74, %77 : vector<8x32xi1>, vector<8x32xf32>
      %79 = arith.mulf %63, %arg22 : vector<8x32xf32>
      %80 = arith.mulf %50, %65 : vector<8x32xf32>
      %81 = arith.addf %79, %80 : vector<8x32xf32>
      %82 = math.tanh %81 : vector<8x32xf32>
      %83 = arith.mulf %78, %82 : vector<8x32xf32>
      %cst_56 = arith.constant dense<0.000000e+00> : vector<8x128xf32>
      %84 = tpu.matmul %81, %7, %cst_56 {dimension_numbers = #tpu.dot_dimension_numbers<[1], [0], [0], [1], [0, 0, 1, 1], [], []>} : vector<8x32xf32>, vector<32x128xf32>, vector<8x128xf32> -> vector<8x128xf32>
      %85 = vector.broadcast %8 : vector<1x128xf32> to vector<8x128xf32>
      %86 = arith.addf %84, %85 : vector<8x128xf32>
      %87 = arith.mulf %arg23, %arg23 : vector<8x16x8xf32>
      %cst_57 = arith.constant dense<0.000000e+00> : vector<8x16xf32>
      %88 = vector.multi_reduction <add>, %87, %cst_57 [2] : vector<8x16x8xf32> to vector<8x16xf32>
      %89 = math.sqrt %88 : vector<8x16xf32>
      %90 = vector.extract_strided_slice %86 {offsets = [0, 0], sizes = [8, 30], strides = [1, 1]} : vector<8x128xf32> to vector<8x30xf32>
      %91 = vector.extract_strided_slice %86 {offsets = [0, 30], sizes = [8, 30], strides = [1, 1]} : vector<8x128xf32> to vector<8x30xf32>
      %92 = vector.extract_strided_slice %90 {offsets = [0, 0], sizes = [8, 8], strides = [1, 1]} : vector<8x30xf32> to vector<8x8xf32>
      %93 = vector.extract_strided_slice %91 {offsets = [0, 0], sizes = [8, 8], strides = [1, 1]} : vector<8x30xf32> to vector<8x8xf32>
      %94 = vector.shape_cast %92 : vector<8x8xf32> to vector<8x1x8xf32>
      %95 = vector.shape_cast %93 : vector<8x8xf32> to vector<8x1x8xf32>
      %96 = tpu.concatenate %94, %95 in 1 : vector<8x1x8xf32>, vector<8x1x8xf32> -> vector<8x2x8xf32>
      %97 = vector.extract_strided_slice %90 {offsets = [0, 8], sizes = [8, 1], strides = [1, 1]} : vector<8x30xf32> to vector<8x1xf32>
      %98 = vector.extract_strided_slice %91 {offsets = [0, 8], sizes = [8, 1], strides = [1, 1]} : vector<8x30xf32> to vector<8x1xf32>
      %99 = vector.shape_cast %97 : vector<8x1xf32> to vector<8x1x1xf32>
      %100 = vector.shape_cast %98 : vector<8x1xf32> to vector<8x1x1xf32>
      %101 = tpu.concatenate %99, %100 in 1 : vector<8x1x1xf32>, vector<8x1x1xf32> -> vector<8x2x1xf32>
      %cst_58 = arith.constant 0.000000e+00 : f32
      %102 = vector.broadcast %cst_58 : f32 to vector<8x2x1xf32>
      %103 = arith.maximumf %101, %102 : vector<8x2x1xf32>
      %104 = math.absf %101 : vector<8x2x1xf32>
      %cst_59 = arith.constant 0.000000e+00 : f32
      %105 = vector.broadcast %cst_59 : f32 to vector<8x2x1xf32>
      %106 = arith.subf %105, %104 : vector<8x2x1xf32>
      %107 = math.exp %106 : vector<8x2x1xf32>
      %cst_60 = arith.constant 1.000000e+00 : f32
      %108 = vector.broadcast %cst_60 : f32 to vector<8x2x1xf32>
      %109 = arith.addf %108, %107 : vector<8x2x1xf32>
      %110 = math.log %109 : vector<8x2x1xf32>
      %111 = arith.addf %103, %110 : vector<8x2x1xf32>
      %112 = vector.extract_strided_slice %90 {offsets = [0, 9], sizes = [8, 1], strides = [1, 1]} : vector<8x30xf32> to vector<8x1xf32>
      %113 = vector.extract_strided_slice %91 {offsets = [0, 9], sizes = [8, 1], strides = [1, 1]} : vector<8x30xf32> to vector<8x1xf32>
      %114 = vector.shape_cast %112 : vector<8x1xf32> to vector<8x1x1xf32>
      %115 = vector.shape_cast %113 : vector<8x1xf32> to vector<8x1x1xf32>
      %116 = tpu.concatenate %114, %115 in 1 : vector<8x1x1xf32>, vector<8x1x1xf32> -> vector<8x2x1xf32>
      %117 = math.absf %116 : vector<8x2x1xf32>
      %cst_61 = arith.constant 0.000000e+00 : f32
      %118 = vector.broadcast %cst_61 : f32 to vector<8x2x1xf32>
      %119 = arith.subf %118, %117 : vector<8x2x1xf32>
      %120 = math.exp %119 : vector<8x2x1xf32>
      %cst_62 = arith.constant 1.000000e+00 : f32
      %121 = vector.broadcast %cst_62 : f32 to vector<8x2x1xf32>
      %122 = arith.addf %121, %120 : vector<8x2x1xf32>
      %cst_63 = arith.constant 1.000000e+00 : f32
      %123 = vector.broadcast %cst_63 : f32 to vector<8x2x1xf32>
      %124 = arith.divf %123, %122 : vector<8x2x1xf32>
      %cst_64 = arith.constant 0.000000e+00 : f32
      %125 = vector.broadcast %cst_64 : f32 to vector<8x2x1xf32>
      %126 = arith.cmpf oge, %116, %125 : vector<8x2x1xf32>
      %127 = arith.mulf %120, %124 : vector<8x2x1xf32>
      %128 = arith.select %126, %124, %127 : vector<8x2x1xi1>, vector<8x2x1xf32>
      %129 = vector.extract_strided_slice %90 {offsets = [0, 10], sizes = [8, 3], strides = [1, 1]} : vector<8x30xf32> to vector<8x3xf32>
      %130 = vector.extract_strided_slice %91 {offsets = [0, 10], sizes = [8, 3], strides = [1, 1]} : vector<8x30xf32> to vector<8x3xf32>
      %131 = vector.shape_cast %129 : vector<8x3xf32> to vector<8x1x3xf32>
      %132 = vector.shape_cast %130 : vector<8x3xf32> to vector<8x1x3xf32>
      %133 = tpu.concatenate %131, %132 in 1 : vector<8x1x3xf32>, vector<8x1x3xf32> -> vector<8x2x3xf32>
      %cst_65 = arith.constant dense<0xFF800000> : vector<8x2xf32>
      %134 = vector.multi_reduction <maximumf>, %133, %cst_65 [2] : vector<8x2x3xf32> to vector<8x2xf32>
      %135 = vector.shape_cast %134 : vector<8x2xf32> to vector<8x2x1xf32>
      %136 = vector.broadcast %135 : vector<8x2x1xf32> to vector<8x2x3xf32>
      %137 = arith.subf %133, %136 : vector<8x2x3xf32>
      %138 = math.exp %137 : vector<8x2x3xf32>
      %cst_66 = arith.constant dense<0.000000e+00> : vector<8x2xf32>
      %139 = vector.multi_reduction <add>, %138, %cst_66 [2] : vector<8x2x3xf32> to vector<8x2xf32>
      %140 = vector.shape_cast %139 : vector<8x2xf32> to vector<8x2x1xf32>
      %141 = vector.broadcast %140 : vector<8x2x1xf32> to vector<8x2x3xf32>
      %142 = arith.divf %138, %141 : vector<8x2x3xf32>
      %143 = vector.extract_strided_slice %90 {offsets = [0, 13], sizes = [8, 1], strides = [1, 1]} : vector<8x30xf32> to vector<8x1xf32>
      %144 = vector.extract_strided_slice %91 {offsets = [0, 13], sizes = [8, 1], strides = [1, 1]} : vector<8x30xf32> to vector<8x1xf32>
      %145 = vector.shape_cast %143 : vector<8x1xf32> to vector<8x1x1xf32>
      %146 = vector.shape_cast %144 : vector<8x1xf32> to vector<8x1x1xf32>
      %147 = tpu.concatenate %145, %146 in 1 : vector<8x1x1xf32>, vector<8x1x1xf32> -> vector<8x2x1xf32>
      %cst_67 = arith.constant 0.000000e+00 : f32
      %148 = vector.broadcast %cst_67 : f32 to vector<8x2x1xf32>
      %149 = arith.maximumf %147, %148 : vector<8x2x1xf32>
      %150 = math.absf %147 : vector<8x2x1xf32>
      %cst_68 = arith.constant 0.000000e+00 : f32
      %151 = vector.broadcast %cst_68 : f32 to vector<8x2x1xf32>
      %152 = arith.subf %151, %150 : vector<8x2x1xf32>
      %153 = math.exp %152 : vector<8x2x1xf32>
      %cst_69 = arith.constant 1.000000e+00 : f32
      %154 = vector.broadcast %cst_69 : f32 to vector<8x2x1xf32>
      %155 = arith.addf %154, %153 : vector<8x2x1xf32>
      %156 = math.log %155 : vector<8x2x1xf32>
      %157 = arith.addf %149, %156 : vector<8x2x1xf32>
      %cst_70 = arith.constant 1.000000e+00 : f32
      %158 = vector.broadcast %cst_70 : f32 to vector<8x2x1xf32>
      %159 = arith.addf %158, %157 : vector<8x2x1xf32>
      "tpu.trace_start"() <{level = 10 : i32, message = "bhm,bnm->bhn"}> : () -> ()
      %cst_71 = arith.constant dense<0.000000e+00> : vector<8x2x16xf32>
      %160 = tpu.matmul %96, %arg23, %cst_71 {dimension_numbers = #tpu.dot_dimension_numbers<[2], [2], [1], [1], [0, 0, 0, 1, 1, 1], [0], [0]>} : vector<8x2x8xf32>, vector<8x16x8xf32>, vector<8x2x16xf32> -> vector<8x2x16xf32>
      "tpu.trace_stop"() : () -> ()
      %161 = arith.mulf %96, %96 : vector<8x2x8xf32>
      %cst_72 = arith.constant dense<0.000000e+00> : vector<8x2xf32>
      %162 = vector.multi_reduction <add>, %161, %cst_72 [2] : vector<8x2x8xf32> to vector<8x2xf32>
      %163 = vector.shape_cast %162 : vector<8x2xf32> to vector<8x2x1xf32>
      %164 = math.sqrt %163 : vector<8x2x1xf32>
      %165 = vector.shape_cast %89 : vector<8x16xf32> to vector<8x1x16xf32>
      %166 = vector.broadcast %164 : vector<8x2x1xf32> to vector<8x2x16xf32>
      %167 = vector.broadcast %165 : vector<8x1x16xf32> to vector<8x2x16xf32>
      %168 = arith.mulf %166, %167 : vector<8x2x16xf32>
      %cst_73 = arith.constant 9.99999993E-9 : f32
      %169 = vector.broadcast %cst_73 : f32 to vector<8x2x16xf32>
      %170 = arith.maximumf %168, %169 : vector<8x2x16xf32>
      %171 = arith.divf %160, %170 : vector<8x2x16xf32>
      %172 = vector.broadcast %111 : vector<8x2x1xf32> to vector<8x2x16xf32>
      %173 = arith.mulf %172, %171 : vector<8x2x16xf32>
      %cst_74 = arith.constant dense<0xFF800000> : vector<8x2xf32>
      %174 = vector.multi_reduction <maximumf>, %173, %cst_74 [2] : vector<8x2x16xf32> to vector<8x2xf32>
      %175 = vector.shape_cast %174 : vector<8x2xf32> to vector<8x2x1xf32>
      %176 = vector.broadcast %175 : vector<8x2x1xf32> to vector<8x2x16xf32>
      %177 = arith.subf %173, %176 : vector<8x2x16xf32>
      %178 = math.exp %177 : vector<8x2x16xf32>
      %cst_75 = arith.constant dense<0.000000e+00> : vector<8x2xf32>
      %179 = vector.multi_reduction <add>, %178, %cst_75 [2] : vector<8x2x16xf32> to vector<8x2xf32>
      %180 = vector.shape_cast %179 : vector<8x2xf32> to vector<8x2x1xf32>
      %181 = vector.broadcast %180 : vector<8x2x1xf32> to vector<8x2x16xf32>
      %182 = arith.divf %178, %181 : vector<8x2x16xf32>
      %183 = vector.extract_strided_slice %arg24 {offsets = [0, 0, 0], sizes = [1, 8, 16], strides = [1, 1, 1]} : vector<2x8x16xf32> to vector<1x8x16xf32>
      %184 = vector.shape_cast %183 : vector<1x8x16xf32> to vector<8x16xf32>
      %185 = vector.extract_strided_slice %arg24 {offsets = [1, 0, 0], sizes = [1, 8, 16], strides = [1, 1, 1]} : vector<2x8x16xf32> to vector<1x8x16xf32>
      %186 = vector.shape_cast %185 : vector<1x8x16xf32> to vector<8x16xf32>
      %187 = vector.shape_cast %184 : vector<8x16xf32> to vector<8x1x16xf32>
      %188 = vector.shape_cast %186 : vector<8x16xf32> to vector<8x1x16xf32>
      %189 = tpu.concatenate %187, %188 in 1 : vector<8x1x16xf32>, vector<8x1x16xf32> -> vector<8x2x16xf32>
      %190 = vector.broadcast %128 : vector<8x2x1xf32> to vector<8x2x16xf32>
      %191 = arith.mulf %190, %182 : vector<8x2x16xf32>
      %cst_76 = arith.constant 1.000000e+00 : f32
      %192 = vector.broadcast %cst_76 : f32 to vector<8x2x1xf32>
      %193 = arith.subf %192, %128 : vector<8x2x1xf32>
      %194 = vector.broadcast %193 : vector<8x2x1xf32> to vector<8x2x16xf32>
      %195 = arith.mulf %194, %189 : vector<8x2x16xf32>
      %196 = arith.addf %191, %195 : vector<8x2x16xf32>
      %197 = vector.extract_strided_slice %196 {offsets = [0, 0, 15], sizes = [8, 2, 1], strides = [1, 1, 1]} : vector<8x2x16xf32> to vector<8x2x1xf32>
      %198 = vector.extract_strided_slice %196 {offsets = [0, 0, 0], sizes = [8, 2, 15], strides = [1, 1, 1]} : vector<8x2x16xf32> to vector<8x2x15xf32>
      %199 = tpu.concatenate %197, %198 in 2 : vector<8x2x1xf32>, vector<8x2x15xf32> -> vector<8x2x16xf32>
      %200 = vector.extract_strided_slice %196 {offsets = [0, 0, 1], sizes = [8, 2, 15], strides = [1, 1, 1]} : vector<8x2x16xf32> to vector<8x2x15xf32>
      %201 = vector.extract_strided_slice %196 {offsets = [0, 0, 0], sizes = [8, 2, 1], strides = [1, 1, 1]} : vector<8x2x16xf32> to vector<8x2x1xf32>
      %202 = tpu.concatenate %200, %201 in 2 : vector<8x2x15xf32>, vector<8x2x1xf32> -> vector<8x2x16xf32>
      %203 = vector.extract_strided_slice %142 {offsets = [0, 0, 0], sizes = [8, 2, 1], strides = [1, 1, 1]} : vector<8x2x3xf32> to vector<8x2x1xf32>
      %204 = vector.broadcast %203 : vector<8x2x1xf32> to vector<8x2x16xf32>
      %205 = arith.mulf %204, %199 : vector<8x2x16xf32>
      %206 = vector.extract_strided_slice %142 {offsets = [0, 0, 1], sizes = [8, 2, 1], strides = [1, 1, 1]} : vector<8x2x3xf32> to vector<8x2x1xf32>
      %207 = vector.broadcast %206 : vector<8x2x1xf32> to vector<8x2x16xf32>
      %208 = arith.mulf %207, %196 : vector<8x2x16xf32>
      %209 = arith.addf %205, %208 : vector<8x2x16xf32>
      %210 = vector.extract_strided_slice %142 {offsets = [0, 0, 2], sizes = [8, 2, 1], strides = [1, 1, 1]} : vector<8x2x3xf32> to vector<8x2x1xf32>
      %211 = vector.broadcast %210 : vector<8x2x1xf32> to vector<8x2x16xf32>
      %212 = arith.mulf %211, %202 : vector<8x2x16xf32>
      %213 = arith.addf %209, %212 : vector<8x2x16xf32>
      %cst_77 = arith.constant 1.000000e-30 : f32
      %214 = vector.broadcast %cst_77 : f32 to vector<8x2x16xf32>
      %215 = arith.maximumf %213, %214 : vector<8x2x16xf32>
      %216 = math.log %215 : vector<8x2x16xf32>
      %217 = vector.broadcast %159 : vector<8x2x1xf32> to vector<8x2x16xf32>
      %218 = arith.mulf %217, %216 : vector<8x2x16xf32>
      %219 = math.exp %218 : vector<8x2x16xf32>
      %cst_78 = arith.constant dense<0.000000e+00> : vector<8x2xf32>
      %220 = vector.multi_reduction <add>, %219, %cst_78 [2] : vector<8x2x16xf32> to vector<8x2xf32>
      %221 = vector.shape_cast %220 : vector<8x2xf32> to vector<8x2x1xf32>
      %cst_79 = arith.constant 1.000000e-16 : f32
      %222 = vector.broadcast %cst_79 : f32 to vector<8x2x1xf32>
      %223 = arith.addf %221, %222 : vector<8x2x1xf32>
      %224 = vector.broadcast %223 : vector<8x2x1xf32> to vector<8x2x16xf32>
      %225 = arith.divf %219, %224 : vector<8x2x16xf32>
      %226 = vector.extract_strided_slice %225 {offsets = [0, 0, 0], sizes = [8, 1, 16], strides = [1, 1, 1]} : vector<8x2x16xf32> to vector<8x1x16xf32>
      %227 = vector.shape_cast %226 : vector<8x1x16xf32> to vector<8x16xf32>
      %228 = vector.extract_strided_slice %225 {offsets = [0, 1, 0], sizes = [8, 1, 16], strides = [1, 1, 1]} : vector<8x2x16xf32> to vector<8x1x16xf32>
      %229 = vector.shape_cast %228 : vector<8x1x16xf32> to vector<8x16xf32>
      "tpu.trace_start"() <{level = 10 : i32, message = "bhn,bnm->bhm"}> : () -> ()
      %cst_80 = arith.constant dense<0.000000e+00> : vector<8x2x8xf32>
      %230 = tpu.matmul %225, %arg23, %cst_80 {dimension_numbers = #tpu.dot_dimension_numbers<[2], [1], [1], [2], [0, 0, 0, 1, 1, 2], [0], [0]>} : vector<8x2x16xf32>, vector<8x16x8xf32>, vector<8x2x8xf32> -> vector<8x2x8xf32>
      "tpu.trace_stop"() : () -> ()
      %231 = vector.extract_strided_slice %230 {offsets = [0, 0, 0], sizes = [8, 1, 8], strides = [1, 1, 1]} : vector<8x2x8xf32> to vector<8x1x8xf32>
      %232 = vector.shape_cast %231 : vector<8x1x8xf32> to vector<8x8xf32>
      %233 = vector.extract_strided_slice %91 {offsets = [0, 14], sizes = [8, 8], strides = [1, 1]} : vector<8x30xf32> to vector<8x8xf32>
      %234 = math.absf %233 : vector<8x8xf32>
      %cst_81 = arith.constant 0.000000e+00 : f32
      %235 = vector.broadcast %cst_81 : f32 to vector<8x8xf32>
      %236 = arith.subf %235, %234 : vector<8x8xf32>
      %237 = math.exp %236 : vector<8x8xf32>
      %cst_82 = arith.constant 1.000000e+00 : f32
      %238 = vector.broadcast %cst_82 : f32 to vector<8x8xf32>
      %239 = arith.addf %238, %237 : vector<8x8xf32>
      %cst_83 = arith.constant 1.000000e+00 : f32
      %240 = vector.broadcast %cst_83 : f32 to vector<8x8xf32>
      %241 = arith.divf %240, %239 : vector<8x8xf32>
      %cst_84 = arith.constant 0.000000e+00 : f32
      %242 = vector.broadcast %cst_84 : f32 to vector<8x8xf32>
      %243 = arith.cmpf oge, %233, %242 : vector<8x8xf32>
      %244 = arith.mulf %237, %241 : vector<8x8xf32>
      %245 = arith.select %243, %241, %244 : vector<8x8xi1>, vector<8x8xf32>
      %246 = vector.extract_strided_slice %91 {offsets = [0, 22], sizes = [8, 8], strides = [1, 1]} : vector<8x30xf32> to vector<8x8xf32>
      %247 = math.tanh %246 : vector<8x8xf32>
      %248 = vector.shape_cast %229 : vector<8x16xf32> to vector<8x16x1xf32>
      %249 = vector.shape_cast %245 : vector<8x8xf32> to vector<8x1x8xf32>
      %250 = vector.broadcast %248 : vector<8x16x1xf32> to vector<8x16x8xf32>
      %251 = vector.broadcast %249 : vector<8x1x8xf32> to vector<8x16x8xf32>
      %252 = arith.mulf %250, %251 : vector<8x16x8xf32>
      %cst_85 = arith.constant 1.000000e+00 : f32
      %253 = vector.broadcast %cst_85 : f32 to vector<8x16x8xf32>
      %254 = arith.subf %253, %252 : vector<8x16x8xf32>
      %255 = arith.mulf %arg23, %254 : vector<8x16x8xf32>
      %256 = vector.shape_cast %229 : vector<8x16xf32> to vector<8x16x1xf32>
      %257 = vector.shape_cast %247 : vector<8x8xf32> to vector<8x1x8xf32>
      %258 = vector.broadcast %256 : vector<8x16x1xf32> to vector<8x16x8xf32>
      %259 = vector.broadcast %257 : vector<8x1x8xf32> to vector<8x16x8xf32>
      %260 = arith.mulf %258, %259 : vector<8x16x8xf32>
      %261 = arith.addf %255, %260 : vector<8x16x8xf32>
      %262 = vector.extract_strided_slice %10 {offsets = [0, 0], sizes = [32, 128], strides = [1, 1]} : vector<40x128xf32> to vector<32x128xf32>
      %cst_86 = arith.constant dense<0.000000e+00> : vector<8x128xf32>
      %263 = tpu.matmul %83, %262, %cst_86 {dimension_numbers = #tpu.dot_dimension_numbers<[1], [0], [0], [1], [0, 0, 1, 1], [], []>} : vector<8x32xf32>, vector<32x128xf32>, vector<8x128xf32> -> vector<8x128xf32>
      %264 = vector.broadcast %11 : vector<1x128xf32> to vector<8x128xf32>
      %265 = arith.addf %263, %264 : vector<8x128xf32>
      %266 = vector.extract_strided_slice %10 {offsets = [32, 0], sizes = [8, 128], strides = [1, 1]} : vector<40x128xf32> to vector<8x128xf32>
      %cst_87 = arith.constant dense<0.000000e+00> : vector<8x128xf32>
      %267 = tpu.matmul %232, %266, %cst_87 {dimension_numbers = #tpu.dot_dimension_numbers<[1], [0], [0], [1], [0, 0, 1, 1], [], []>} : vector<8x8xf32>, vector<8x128xf32>, vector<8x128xf32> -> vector<8x128xf32>
      %268 = arith.addf %265, %267 : vector<8x128xf32>
      %269 = math.absf %268 : vector<8x128xf32>
      %cst_88 = arith.constant 0.000000e+00 : f32
      %270 = vector.broadcast %cst_88 : f32 to vector<8x128xf32>
      %271 = arith.subf %270, %269 : vector<8x128xf32>
      %272 = math.exp %271 : vector<8x128xf32>
      %cst_89 = arith.constant 1.000000e+00 : f32
      %273 = vector.broadcast %cst_89 : f32 to vector<8x128xf32>
      %274 = arith.addf %273, %272 : vector<8x128xf32>
      %cst_90 = arith.constant 1.000000e+00 : f32
      %275 = vector.broadcast %cst_90 : f32 to vector<8x128xf32>
      %276 = arith.divf %275, %274 : vector<8x128xf32>
      %cst_91 = arith.constant 0.000000e+00 : f32
      %277 = vector.broadcast %cst_91 : f32 to vector<8x128xf32>
      %278 = arith.cmpf oge, %268, %277 : vector<8x128xf32>
      %279 = arith.mulf %272, %276 : vector<8x128xf32>
      %280 = arith.select %278, %276, %279 : vector<8x128xi1>, vector<8x128xf32>
      %281 = arith.index_cast %arg20 : i32 to index
      %c0_92 = arith.constant 0 : index
      %c0_93 = arith.constant 0 : index
      %282 = vector.load %arg14[%281, %c0_92, %c0_93] : memref<6x8x128xf32, #tpu.memory_space<vmem>>, vector<1x8x128xf32>
      %283 = vector.shape_cast %282 : vector<1x8x128xf32> to vector<8x128xf32>
      %284 = vector.shape_cast %280 : vector<8x128xf32> to vector<1x8x128xf32>
      tpu.vector_store %arg14[%281, %c0_92, %c0_93], %284 {strides = array<i32>} : memref<6x8x128xf32, #tpu.memory_space<vmem>>, vector<1x8x128xf32>,
      %285 = vector.shape_cast %227 : vector<8x16xf32> to vector<1x8x16xf32>
      %286 = vector.shape_cast %229 : vector<8x16xf32> to vector<1x8x16xf32>
      %287 = tpu.concatenate %285, %286 in 0 : vector<1x8x16xf32>, vector<1x8x16xf32> -> vector<2x8x16xf32>
      %288 = vector.shape_cast %232 : vector<8x8xf32> to vector<1x8x8xf32>
      scf.yield %83, %81, %261, %287, %288 : vector<8x32xf32>, vector<8x32xf32>, vector<8x16x8xf32>, vector<2x8x16xf32>, vector<1x8x8xf32>
    }
    %c6_i32_26 = arith.constant 6 : i32
    %c0_27 = arith.constant 0 : index
    %c0_28 = arith.constant 0 : index
    %19 = vector.load %arg15[%c0_27, %c0_28] : memref<8x32xf32, #tpu.memory_space<vmem>>, vector<8x32xf32>
    tpu.vector_store %arg15[%c0_27, %c0_28], %18#0 {strides = array<i32>} : memref<8x32xf32, #tpu.memory_space<vmem>>, vector<8x32xf32>,
    %c0_29 = arith.constant 0 : index
    %c0_30 = arith.constant 0 : index
    %20 = vector.load %arg16[%c0_29, %c0_30] : memref<8x32xf32, #tpu.memory_space<vmem>>, vector<8x32xf32>
    tpu.vector_store %arg16[%c0_29, %c0_30], %18#1 {strides = array<i32>} : memref<8x32xf32, #tpu.memory_space<vmem>>, vector<8x32xf32>,
    %c0_31 = arith.constant 0 : index
    %c0_32 = arith.constant 0 : index
    %c0_33 = arith.constant 0 : index
    %21 = vector.load %arg17[%c0_31, %c0_32, %c0_33] : memref<8x16x8xf32, #tpu.memory_space<vmem>>, vector<8x16x8xf32>
    tpu.vector_store %arg17[%c0_31, %c0_32, %c0_33], %18#2 {strides = array<i32>} : memref<8x16x8xf32, #tpu.memory_space<vmem>>, vector<8x16x8xf32>,
    %c0_34 = arith.constant 0 : index
    %c0_35 = arith.constant 0 : index
    %c0_36 = arith.constant 0 : index
    %22 = vector.load %arg18[%c0_34, %c0_35, %c0_36] : memref<2x8x16xf32, #tpu.memory_space<vmem>>, vector<2x8x16xf32>
    tpu.vector_store %arg18[%c0_34, %c0_35, %c0_36], %18#3 {strides = array<i32>} : memref<2x8x16xf32, #tpu.memory_space<vmem>>, vector<2x8x16xf32>,
    %c0_37 = arith.constant 0 : index
    %c0_38 = arith.constant 0 : index
    %c0_39 = arith.constant 0 : index
    %23 = vector.load %arg19[%c0_37, %c0_38, %c0_39] : memref<1x8x8xf32, #tpu.memory_space<vmem>>, vector<1x8x8xf32>
    tpu.vector_store %arg19[%c0_37, %c0_38, %c0_39], %18#4 {strides = array<i32>} : memref<1x8x8xf32, #tpu.memory_space<vmem>>, vector<1x8x8xf32>,
    return
  }
  func.func @transform_0(%arg0: i32, %arg1: i32) -> (i32, i32, i32) {
    %c0_i32 = arith.constant 0 : i32
    %c0_i32_0 = arith.constant 0 : i32
    return %arg1, %arg0, %c0_i32 : i32, i32, i32
  }
  func.func @transform_1(%arg0: i32, %arg1: i32) -> (i32, i32, i32) {
    %c0_i32 = arith.constant 0 : i32
    %c0_i32_0 = arith.constant 0 : i32
    %c0_i32_1 = arith.constant 0 : i32
    return %c0_i32, %arg0, %c0_i32_0 : i32, i32, i32
  }
  func.func @transform_2(%arg0: i32, %arg1: i32) -> (i32, i32) {
    %c0_i32 = arith.constant 0 : i32
    %c0_i32_0 = arith.constant 0 : i32
    return %arg0, %c0_i32 : i32, i32
  }
  func.func @transform_3(%arg0: i32, %arg1: i32) -> (i32, i32) {
    %c0_i32 = arith.constant 0 : i32
    %c0_i32_0 = arith.constant 0 : i32
    return %arg0, %c0_i32 : i32, i32
  }
  func.func @transform_4(%arg0: i32, %arg1: i32) -> (i32, i32, i32) {
    %c0_i32 = arith.constant 0 : i32
    %c0_i32_0 = arith.constant 0 : i32
    %c0_i32_1 = arith.constant 0 : i32
    return %arg0, %c0_i32, %c0_i32_0 : i32, i32, i32
  }
  func.func @transform_5(%arg0: i32, %arg1: i32) -> (i32, i32, i32) {
    %c0_i32 = arith.constant 0 : i32
    %c0_i32_0 = arith.constant 0 : i32
    %c0_i32_1 = arith.constant 0 : i32
    return %c0_i32, %arg0, %c0_i32_0 : i32, i32, i32
  }
  func.func @transform_6(%arg0: i32, %arg1: i32) -> (i32, i32) {
    %c0_i32 = arith.constant 0 : i32
    %c0_i32_0 = arith.constant 0 : i32
    %c0_i32_1 = arith.constant 0 : i32
    return %c0_i32, %c0_i32_0 : i32, i32
  }
  func.func @transform_7(%arg0: i32, %arg1: i32) -> (i32, i32) {
    %c0_i32 = arith.constant 0 : i32
    %c0_i32_0 = arith.constant 0 : i32
    %c0_i32_1 = arith.constant 0 : i32
    return %c0_i32, %c0_i32_0 : i32, i32
  }
  func.func @transform_8(%arg0: i32, %arg1: i32) -> (i32, i32) {
    %c0_i32 = arith.constant 0 : i32
    %c0_i32_0 = arith.constant 0 : i32
    %c0_i32_1 = arith.constant 0 : i32
    return %c0_i32, %c0_i32_0 : i32, i32
  }
  func.func @transform_9(%arg0: i32, %arg1: i32) -> (i32, i32) {
    %c0_i32 = arith.constant 0 : i32
    %c0_i32_0 = arith.constant 0 : i32
    %c0_i32_1 = arith.constant 0 : i32
    return %c0_i32, %c0_i32_0 : i32, i32
  }
  func.func @transform_10(%arg0: i32, %arg1: i32) -> (i32, i32) {
    %c0_i32 = arith.constant 0 : i32
    %c0_i32_0 = arith.constant 0 : i32
    %c0_i32_1 = arith.constant 0 : i32
    return %c0_i32, %c0_i32_0 : i32, i32
  }
  func.func @transform_11(%arg0: i32, %arg1: i32) -> (i32, i32) {
    %c0_i32 = arith.constant 0 : i32
    %c0_i32_0 = arith.constant 0 : i32
    %c0_i32_1 = arith.constant 0 : i32
    return %c0_i32, %c0_i32_0 : i32, i32
  }
  func.func @transform_12(%arg0: i32, %arg1: i32) -> (i32, i32, i32) {
    %c0_i32 = arith.constant 0 : i32
    %c0_i32_0 = arith.constant 0 : i32
    return %arg1, %arg0, %c0_i32 : i32, i32, i32
  }
  func.func @transform_13(%arg0: i32, %arg1: i32) -> (i32, i32) {
    %c0_i32 = arith.constant 0 : i32
    %c0_i32_0 = arith.constant 0 : i32
    return %arg0, %c0_i32 : i32, i32
  }
  func.func @transform_14(%arg0: i32, %arg1: i32) -> (i32, i32) {
    %c0_i32 = arith.constant 0 : i32
    %c0_i32_0 = arith.constant 0 : i32
    return %arg0, %c0_i32 : i32, i32
  }
  func.func @transform_15(%arg0: i32, %arg1: i32) -> (i32, i32, i32) {
    %c0_i32 = arith.constant 0 : i32
    %c0_i32_0 = arith.constant 0 : i32
    %c0_i32_1 = arith.constant 0 : i32
    return %arg0, %c0_i32, %c0_i32_0 : i32, i32, i32
  }
  func.func @transform_16(%arg0: i32, %arg1: i32) -> (i32, i32, i32) {
    %c0_i32 = arith.constant 0 : i32
    %c0_i32_0 = arith.constant 0 : i32
    %c0_i32_1 = arith.constant 0 : i32
    return %c0_i32, %arg0, %c0_i32_0 : i32, i32, i32
  }
  func.func @transform_17(%arg0: i32, %arg1: i32) -> (i32, i32, i32) {
    %c0_i32 = arith.constant 0 : i32
    %c0_i32_0 = arith.constant 0 : i32
    %c0_i32_1 = arith.constant 0 : i32
    return %c0_i32, %arg0, %c0_i32_0 : i32, i32, i32
  }
}

</mosaic_0001>

<llo_original>
// kernel: tpu_custom_call.1
$region0: #{tpu_custom_call.1}
  #allocation0 [shape = 'u32[]', space=smem, size = 0x4, offset = 0x4, fixed_abs, tag = 'smem constant byte address 0x4 - core index']
  #allocation1 [shape = 'u32[144,128]{1,0:T(1,128)}', space=vmem, size = 0x12000, scoped, tag = 'internal scratch']
  %s0 = inlined_call_operand.vmem [shape: f32[6,8,8], index: 0, kind: input, shape index: {}]
  %s1 = inlined_call_operand.vmem [shape: f32[1,8,8], index: 1, kind: input, shape index: {}]
  %s2 = inlined_call_operand.vmem [shape: f32[8,32], index: 2, kind: input, shape index: {}]
  %s3 = inlined_call_operand.vmem [shape: f32[8,32], index: 3, kind: input, shape index: {}]
  %s4 = inlined_call_operand.vmem [shape: f32[8,16,8], index: 4, kind: input, shape index: {}]
  %s5 = inlined_call_operand.vmem [shape: f32[2,8,16], index: 5, kind: input, shape index: {}]
  %s6 = inlined_call_operand.vmem [shape: bf16[48,128], index: 6, kind: input, shape index: {}]
  %s7 = inlined_call_operand.vmem [shape: f32[1,128], index: 7, kind: input, shape index: {}]
  %s8 = inlined_call_operand.vmem [shape: bf16[32,128], index: 8, kind: input, shape index: {}]
  %s9 = inlined_call_operand.vmem [shape: f32[1,128], index: 9, kind: input, shape index: {}]
  %s10 = inlined_call_operand.vmem [shape: bf16[40,128], index: 10, kind: input, shape index: {}]
  %s11 = inlined_call_operand.vmem [shape: f32[1,128], index: 11, kind: input, shape index: {}]
  %s12 = inlined_call_operand.hbm [shape: f32[6,8,128], index: 12, kind: output, shape index: {0}]
  %s13 = inlined_call_operand.hbm [shape: f32[8,32], index: 13, kind: output, shape index: {1}]
  %s14 = inlined_call_operand.hbm [shape: f32[8,32], index: 14, kind: output, shape index: {2}]
  %s15 = inlined_call_operand.vmem [shape: f32[8,16,8], index: 15, kind: output, shape index: {3}]
  %s16 = inlined_call_operand.hbm [shape: f32[2,8,16], index: 16, kind: output, shape index: {4}]
  %s17 = inlined_call_operand.hbm [shape: f32[1,8,8], index: 17, kind: output, shape index: {5}]
  %18 = xla_tuple %s12, %s13, %s14, %s15, %s16, %s17
  %s19 = sld [smem:[#allocation0]]
  $region109: #{tpu_custom_call.1} parent=0
    _
  %s21 = ssub.s32 1, %s19
  %s22 = scalar_select 0, %s21, %s19
  $region1: #{tpu_custom_call.1} parent=0
    #allocation2 [shape = 'u8[24576]{0}', space=vmem, size = 0x6000, scoped, tag = 'output window, operand 0, single buffered']
    #allocation3 [shape = 's32[1]{0}', space=sflag, size = 0x4, scoped, tag = 'scoped memory for tpu_custom_call.1']
    #allocation4 [shape = 'u8[4096]{0}', space=vmem, size = 0x1000, scoped, tag = 'output window, operand 1, single buffered']
    #allocation5 [shape = 's32[1]{0}', space=sflag, size = 0x4, scoped, tag = 'scoped memory for tpu_custom_call.1']
    #allocation6 [shape = 'u8[4096]{0}', space=vmem, size = 0x1000, scoped, tag = 'output window, operand 2, single buffered']
    #allocation7 [shape = 'u8[8192]{0}', space=vmem, size = 0x2000, scoped, tag = 'output window, operand 4, single buffered']
    #allocation8 [shape = 's32[1]{0}', space=sflag, size = 0x4, scoped, tag = 'scoped memory for tpu_custom_call.1']
    #allocation9 [shape = 'u8[4096]{0}', space=vmem, size = 0x1000, scoped, tag = 'output window, operand 5, single buffered']
    %23 = vsyncpa [#allocation3], 0
    %24 = vsyncpa [#allocation5], 0
    %25 = vsyncpa [#allocation8], 0
    // Predicated region
    $region2: #{tpu_custom_call.1} parent=1 // pred_check
      _
    $region3: #{tpu_custom_call.1} parent=1 // pred_check_branch
      %27 = sbr.rel (0) target = $region5
    $region4: #{tpu_custom_call.1} parent=1 // pred_region
      _
    $region5: #{tpu_custom_call.1} parent=1 // pred_fallthru
      _
    // Predicated region
    $region6: #{tpu_custom_call.1} parent=1 // pred_check
      _
    $region7: #{tpu_custom_call.1} parent=1 // pred_check_branch
      %29 = sbr.rel (0) target = $region9
    $region8: #{tpu_custom_call.1} parent=1 // pred_region
      _
    $region9: #{tpu_custom_call.1} parent=1 // pred_fallthru
      _
    // Predicated region
    $region10: #{tpu_custom_call.1} parent=1 // pred_check
      _
    $region11: #{tpu_custom_call.1} parent=1 // pred_check_branch
      %31 = sbr.rel (0) target = $region13
    $region12: #{tpu_custom_call.1} parent=1 // pred_region
      _
    $region13: #{tpu_custom_call.1} parent=1 // pred_fallthru
      _
    // Predicated region
    $region14: #{tpu_custom_call.1} parent=1 // pred_check
      _
    $region15: #{tpu_custom_call.1} parent=1 // pred_check_branch
      %33 = sbr.rel (0) target = $region17
    $region16: #{tpu_custom_call.1} parent=1 // pred_region
      _
    $region17: #{tpu_custom_call.1} parent=1 // pred_fallthru
      _
    // Predicated region
    $region18: #{tpu_custom_call.1} parent=1 // pred_check
      _
    $region19: #{tpu_custom_call.1} parent=1 // pred_check_branch
      %35 = sbr.rel (0) target = $region21
    $region20: #{tpu_custom_call.1} parent=1 // pred_region
      _
    $region21: #{tpu_custom_call.1} parent=1 // pred_fallthru
      _
    // Predicated region
    $region22: #{tpu_custom_call.1} parent=1 // pred_check
      _
    $region23: #{tpu_custom_call.1} parent=1 // pred_check_branch
      %37 = sbr.rel (0) target = $region25
    $region24: #{tpu_custom_call.1} parent=1 // pred_region
      _
    $region25: #{tpu_custom_call.1} parent=1 // pred_fallthru
      _
    // Predicated region
    $region26: #{tpu_custom_call.1} parent=1 // pred_check
      _
    $region27: #{tpu_custom_call.1} parent=1 // pred_check_branch
      %39 = sbr.rel (0) target = $region29
    $region28: #{tpu_custom_call.1} parent=1 // pred_region
      _
    $region29: #{tpu_custom_call.1} parent=1 // pred_fallthru
      _
    // Predicated region
    $region30: #{tpu_custom_call.1} parent=1 // pred_check
      _
    $region31: #{tpu_custom_call.1} parent=1 // pred_check_branch
      %41 = sbr.rel (0) target = $region33
    $region32: #{tpu_custom_call.1} parent=1 // pred_region
      _
    $region33: #{tpu_custom_call.1} parent=1 // pred_fallthru
      _
    // Predicated region
    $region34: #{tpu_custom_call.1} parent=1 // pred_check
      _
    $region35: #{tpu_custom_call.1} parent=1 // pred_check_branch
      %43 = sbr.rel (0) target = $region37
    $region36: #{tpu_custom_call.1} parent=1 // pred_region
      _
    $region37: #{tpu_custom_call.1} parent=1 // pred_fallthru
      _
    // Predicated region
    $region38: #{tpu_custom_call.1} parent=1 // pred_check
      _
    $region39: #{tpu_custom_call.1} parent=1 // pred_check_branch
      %45 = sbr.rel (0) target = $region41
    $region40: #{tpu_custom_call.1} parent=1 // pred_region
      _
    $region41: #{tpu_custom_call.1} parent=1 // pred_fallthru
      _
    // Predicated region
    $region42: #{tpu_custom_call.1} parent=1 // pred_check
      _
    $region43: #{tpu_custom_call.1} parent=1 // pred_check_branch
      %47 = sbr.rel (0) target = $region45
    $region44: #{tpu_custom_call.1} parent=1 // pred_region
      _
    $region45: #{tpu_custom_call.1} parent=1 // pred_fallthru
      _
    // Predicated region
    $region46: #{tpu_custom_call.1} parent=1 // pred_check
      _
    $region47: #{tpu_custom_call.1} parent=1 // pred_check_branch
      %49 = sbr.rel (0) target = $region49
    $region48: #{tpu_custom_call.1} parent=1 // pred_region
      _
    $region49: #{tpu_custom_call.1} parent=1 // pred_fallthru
      _
    %p50 = scmp.eq.s32.totalorder 0, 0
    // Predicated region
    $region50: #{tpu_custom_call.1} parent=1 // pred_check
      %p51 = pneg %p50
    $region51: #{tpu_custom_call.1} parent=1 // pred_check_branch
      %53 = sbr.rel (%p51) target = $region53
    $region52: #{tpu_custom_call.1} parent=1 // pred_region
      %v54 = vld [vmem:[%s2] sm:$0xff]
      %vm55 = vcmask 261120
      %56 = vst.msk [vmem:[#allocation4] sm:$0xff] %vm55, %v54
      %v57 = vld [vmem:[%s3] sm:$0xff]
      %58 = vst.msk [vmem:[#allocation6] sm:$0xff] %vm55, %v57
      %v59 = vld [vmem:[%s4] sm:$0xff]
      %v60 = vld [vmem:[%s4 + $0x8] sm:$0xff]
      %v61 = vld [vmem:[%s4 + $0x10] sm:$0xff]
      %v62 = vld [vmem:[%s4 + $0x18] sm:$0xff]
      %v63 = vld [vmem:[%s4 + $0x20] sm:$0xff]
      %v64 = vld [vmem:[%s4 + $0x28] sm:$0xff]
      %v65 = vld [vmem:[%s4 + $0x30] sm:$0xff]
      %v66 = vld [vmem:[%s4 + $0x38] sm:$0xff]
      %v67 = vld [vmem:[%s4 + $0x40] sm:$0xff]
      %v68 = vld [vmem:[%s4 + $0x48] sm:$0xff]
      %v69 = vld [vmem:[%s4 + $0x50] sm:$0xff]
      %v70 = vld [vmem:[%s4 + $0x58] sm:$0xff]
      %v71 = vld [vmem:[%s4 + $0x60] sm:$0xff]
      %v72 = vld [vmem:[%s4 + $0x68] sm:$0xff]
      %v73 = vld [vmem:[%s4 + $0x70] sm:$0xff]
      %v74 = vld [vmem:[%s4 + $0x78] sm:$0xff]
      %vm75 = vcmask 64512
      %76 = vst.msk [vmem:[%s15] sm:$0xff] %vm75, %v59
      %77 = vst.msk [vmem:[%s15 + $0x8] sm:$0xff] %vm75, %v60
      %78 = vst.msk [vmem:[%s15 + $0x10] sm:$0xff] %vm75, %v61
      %79 = vst.msk [vmem:[%s15 + $0x18] sm:$0xff] %vm75, %v62
      %80 = vst.msk [vmem:[%s15 + $0x20] sm:$0xff] %vm75, %v63
      %81 = vst.msk [vmem:[%s15 + $0x28] sm:$0xff] %vm75, %v64
      %82 = vst.msk [vmem:[%s15 + $0x30] sm:$0xff] %vm75, %v65
      %83 = vst.msk [vmem:[%s15 + $0x38] sm:$0xff] %vm75, %v66
      %84 = vst.msk [vmem:[%s15 + $0x40] sm:$0xff] %vm75, %v67
      %85 = vst.msk [vmem:[%s15 + $0x48] sm:$0xff] %vm75, %v68
      %86 = vst.msk [vmem:[%s15 + $0x50] sm:$0xff] %vm75, %v69
      %87 = vst.msk [vmem:[%s15 + $0x58] sm:$0xff] %vm75, %v70
      %88 = vst.msk [vmem:[%s15 + $0x60] sm:$0xff] %vm75, %v71
      %89 = vst.msk [vmem:[%s15 + $0x68] sm:$0xff] %vm75, %v72
      %90 = vst.msk [vmem:[%s15 + $0x70] sm:$0xff] %vm75, %v73
      %91 = vst.msk [vmem:[%s15 + $0x78] sm:$0xff] %vm75, %v74
      %v92 = vld [vmem:[%s5] sm:$0xff]
      %v93 = vld [vmem:[%s5 + $0x8] sm:$0xff]
      %vm94 = vcmask 130048
      %95 = vst.msk [vmem:[#allocation7] sm:$0xff] %vm94, %v92
      %96 = vst.msk [vmem:[#allocation7 + $0x8] sm:$0xff] %vm94, %v93
      %v97 = vld [vmem:[%s1] sm:$0xff]
      %98 = vst.msk [vmem:[#allocation9] sm:$0xff] %vm75, %v97
    $region53: #{tpu_custom_call.1} parent=1 // pred_fallthru
      _
    %v99 = vld [vmem:[%s6] sm:$0xf]
    %v100 = vld [vmem:[%s6 + $0x4] sm:$0xf]
    %v101 = vld [vmem:[%s6 + $0x8] sm:$0xf]
    %v102 = vld [vmem:[%s6 + $0xc] sm:$0xf]
    %v103 = vld [vmem:[%s6 + $0x10] sm:$0xf]
    %v104 = vld [vmem:[%s6 + $0x14] sm:$0xf]
    %v105 = vunpack.c.l.bf16 %v99
    %v106 = vunpack.c.l.bf16 %v100
    %v107 = vunpack.c.l.bf16 %v101
    %v108 = vunpack.c.l.bf16 %v102
    %v109 = vunpack.c.l.bf16 %v103
    %v110 = vunpack.c.l.bf16 %v104
    %v111 = vld [vmem:[%s7] sm:$0x1]
    %v112 = vld [vmem:[%s8] sm:$0xf]
    %v113 = vld [vmem:[%s8 + $0x4] sm:$0xf]
    %v114 = vld [vmem:[%s8 + $0x8] sm:$0xf]
    %v115 = vld [vmem:[%s8 + $0xc] sm:$0xf]
    %v116 = vunpack.c.l.bf16 %v112
    %v117 = vunpack.c.l.bf16 %v113
    %v118 = vunpack.c.l.bf16 %v114
    %v119 = vunpack.c.l.bf16 %v115
    %v120 = vld [vmem:[%s9] sm:$0x1]
    %v121 = vld [vmem:[%s10] sm:$0xf]
    %v122 = vld [vmem:[%s10 + $0x4] sm:$0xf]
    %v123 = vld [vmem:[%s10 + $0x8] sm:$0xf]
    %v124 = vld [vmem:[%s10 + $0xc] sm:$0xf]
    %v125 = vld [vmem:[%s10 + $0x10] sm:$0xf]
    %v126 = vunpack.c.l.bf16 %v121
    %v127 = vunpack.c.l.bf16 %v122
    %v128 = vunpack.c.l.bf16 %v123
    %v129 = vunpack.c.l.bf16 %v124
    %v130 = vunpack.c.l.bf16 %v125
    %v131 = vld [vmem:[%s11] sm:$0x1]
    %v132 = vld [vmem:[#allocation4] sm:$0xff]
    %v133 = vld [vmem:[#allocation6] sm:$0xff]
    %v134 = vld [vmem:[%s15] sm:$0xff]
    %v135 = vld [vmem:[%s15 + $0x8] sm:$0xff]
    %v136 = vld [vmem:[%s15 + $0x10] sm:$0xff]
    %v137 = vld [vmem:[%s15 + $0x18] sm:$0xff]
    %v138 = vld [vmem:[%s15 + $0x20] sm:$0xff]
    %v139 = vld [vmem:[%s15 + $0x28] sm:$0xff]
    %v140 = vld [vmem:[%s15 + $0x30] sm:$0xff]
    %v141 = vld [vmem:[%s15 + $0x38] sm:$0xff]
    %v142 = vld [vmem:[%s15 + $0x40] sm:$0xff]
    %v143 = vld [vmem:[%s15 + $0x48] sm:$0xff]
    %v144 = vld [vmem:[%s15 + $0x50] sm:$0xff]
    %v145 = vld [vmem:[%s15 + $0x58] sm:$0xff]
    %v146 = vld [vmem:[%s15 + $0x60] sm:$0xff]
    %v147 = vld [vmem:[%s15 + $0x68] sm:$0xff]
    %v148 = vld [vmem:[%s15 + $0x70] sm:$0xff]
    %v149 = vld [vmem:[%s15 + $0x78] sm:$0xff]
    %v150 = vld [vmem:[#allocation7] sm:$0xff]
    %v151 = vld [vmem:[#allocation7 + $0x8] sm:$0xff]
    %v152 = vld [vmem:[#allocation9] sm:$0xff]
    loop: start=0, step=1, limit=6
    $region54: #{tpu_custom_call.1} parent=1 // loop_pre_header
      _
    $region55: #{tpu_custom_call.1} parent=1 // loop_header
      %s154 = sphi 0, %s158
      %p155 = scmp.ge.s32.totalorder %s154, 6
      %v159 = vphi %v132, %v3807
      %v160 = vphi %v133, %v452
      %v161 = vphi %v134, %v3783
      %v162 = vphi %v135, %v3784
      %v163 = vphi %v136, %v3785
      %v164 = vphi %v137, %v3786
      %v165 = vphi %v138, %v3787
      %v166 = vphi %v139, %v3788
      %v167 = vphi %v140, %v3789
      %v168 = vphi %v141, %v3790
      %v169 = vphi %v142, %v3791
      %v170 = vphi %v143, %v3792
      %v171 = vphi %v144, %v3793
      %v172 = vphi %v145, %v3794
      %v173 = vphi %v146, %v3795
      %v174 = vphi %v147, %v3796
      %v175 = vphi %v148, %v3797
      %v176 = vphi %v149, %v3798
      %v177 = vphi %v150, %v4015
      %v178 = vphi %v151, %v4029
      %v179 = vphi %v152, %v3907
    $region56: #{tpu_custom_call.1} parent=1 // loop_header_branch
      %157 = sbr.rel (%p155) target = $region60
    $region57: #{tpu_custom_call.1} parent=1 // loop_body
      %s180 = smul.u32 %s154, 8
      %s181 = scalar_lea.vmem %s0, %s180
      %v182 = vld [vmem:[%s181] sm:$0xff]
      %vm183 = vcmask 261120
      %v185 = vsel %vm183, %v159, 0
      %187 = vmatprep.subr.mxu0 0.0
      %188 = vmatpush1.msra.mxu0 %v107
      %189 = vmatprep.subr.mxu0 0.0
      %190 = vmatpush1.msra.mxu0 %v108
      %191 = vmatprep.subr.mxu0 0.0
      %192 = vmatpush1.msra.mxu0 %v109
      %193 = vmatprep.subr.mxu0 0.0
      %194 = vmatpush1.msra.mxu0 %v110
      %195 = vmatprep.subr.mxu0 0.0
      %196 = vmatpush1.msra.mxu0 0.0
      %197 = vmatprep.subr.mxu0 0.0
      %198 = vmatpush1.msra.mxu0 0.0
      %199 = vmatprep.subr.mxu0 0.0
      %200 = vmatpush1.msra.mxu0 0.0
      %201 = vmatprep.subr.mxu0 0.0
      %202 = vmatpush1.msra.mxu0 0.0
      %203 = vmatprep.subr.mxu0 0.0
      %204 = vmatpush1.msra.mxu0 0.0
      %205 = vmatprep.subr.mxu0 0.0
      %206 = vmatpush1.msra.mxu0 0.0
      %207 = vmatprep.subr.mxu0 0.0
      %208 = vmatpush1.msra.mxu0 0.0
      %209 = vmatprep.subr.mxu0 0.0
      %210 = vmatpush1.msra.mxu0 0.0
      %211 = vmatprep.subr.mxu0 0.0
      %212 = vmatpush1.msra.mxu0 0.0
      %213 = vmatprep.subr.mxu0 0.0
      %214 = vmatpush1.msra.mxu0 0.0
      %215 = vmatprep.subr.mxu0 0.0
      %216 = vmatpush1.msra.mxu0 0.0
      %217 = vmatprep.subr.mxu0 0.0
      %218 = vmatpush1.msra.mxu0 0.0
      %219 = vmatprep.subr.mxu0 0.0
      %220 = vmatpush1.msra.mxu0 0.0
      %221 = vmatprep.subr.mxu0 0.0
      %222 = vmatpush1.msra.mxu0 0.0
      %223 = vmatprep.subr.mxu0 0.0
      %224 = vmatpush1.msra.mxu0 0.0
      %225 = vmatprep.subr.mxu0 0.0
      %226 = vmatpush1.msra.mxu0 0.0
      %227 = vmatprep.subr.mxu0 0.0
      %228 = vmatpush1.msra.mxu0 0.0
      %229 = vmatprep.subr.mxu0 0.0
      %230 = vmatpush1.msra.mxu0 0.0
      %231 = vmatprep.subr.mxu0 0.0
      %232 = vmatpush1.msra.mxu0 0.0
      %233 = vmatprep.subr.mxu0 0.0
      %234 = vmatpush1.msra.mxu0 0.0
      %235 = vmatprep.subr.mxu0 0.0
      %236 = vmatpush1.msra.mxu0 0.0
      %237 = vmatprep.subr.mxu0 0.0
      %238 = vmatpush1.msra.mxu0 0.0
      %239 = vmatprep.subr.mxu0 0.0
      %240 = vmatpush1.msra.mxu0 0.0
      %241 = vmatprep.subr.mxu0 0.0
      %242 = vmatpush1.msra.mxu0 0.0
      %243 = vmatprep.subr.mxu0 0.0
      %244 = vmatpush1.msra.mxu0 0.0
      %245 = vmatprep.subr.mxu0 0.0
      %246 = vmatpush1.msra.mxu0 0.0
      %247 = vmatprep.subr.mxu0 0.0
      %248 = vmatpush1.msra.mxu0 0.0
      %249 = vmatprep.subr.mxu0 0.0
      %250 = vmatpush1.msra.mxu0 0.0
      %251 = vmatprep.mubr.f32.mxu0 0.0
      %252 = vmatmul.mubr.f32.gmra.mrb[0].mxu0 %v185
      %v253 = vpop.f32.mrb[0].mxu0
      %v254 = vadd.f32 0.0, %v253
      %v255 = vpop.f32.mrb[0].mxu0
      %256 = vdwg.mxu0
      %vm257 = vcmask 64512
      %v259 = vsel %vm257, %v182, 0
      %261 = vmatprep.subr.mxu0 0.0
      %262 = vmatpush1.msra.mxu0 %v105
      %263 = vmatprep.subr.mxu0 0.0
      %264 = vmatpush1.msra.mxu0 0.0
      %265 = vmatprep.subr.mxu0 0.0
      %266 = vmatpush1.msra.mxu0 0.0
      %267 = vmatprep.subr.mxu0 0.0
      %268 = vmatpush1.msra.mxu0 0.0
      %269 = vmatprep.subr.mxu0 0.0
      %270 = vmatpush1.msra.mxu0 0.0
      %271 = vmatprep.subr.mxu0 0.0
      %272 = vmatpush1.msra.mxu0 0.0
      %273 = vmatprep.subr.mxu0 0.0
      %274 = vmatpush1.msra.mxu0 0.0
      %275 = vmatprep.subr.mxu0 0.0
      %276 = vmatpush1.msra.mxu0 0.0
      %277 = vmatprep.subr.mxu0 0.0
      %278 = vmatpush1.msra.mxu0 0.0
      %279 = vmatprep.subr.mxu0 0.0
      %280 = vmatpush1.msra.mxu0 0.0
      %281 = vmatprep.subr.mxu0 0.0
      %282 = vmatpush1.msra.mxu0 0.0
      %283 = vmatprep.subr.mxu0 0.0
      %284 = vmatpush1.msra.mxu0 0.0
      %285 = vmatprep.subr.mxu0 0.0
      %286 = vmatpush1.msra.mxu0 0.0
      %287 = vmatprep.subr.mxu0 0.0
      %288 = vmatpush1.msra.mxu0 0.0
      %289 = vmatprep.subr.mxu0 0.0
      %290 = vmatpush1.msra.mxu0 0.0
      %291 = vmatprep.subr.mxu0 0.0
      %292 = vmatpush1.msra.mxu0 0.0
      %293 = vmatprep.subr.mxu0 0.0
      %294 = vmatpush1.msra.mxu0 0.0
      %295 = vmatprep.subr.mxu0 0.0
      %296 = vmatpush1.msra.mxu0 0.0
      %297 = vmatprep.subr.mxu0 0.0
      %298 = vmatpush1.msra.mxu0 0.0
      %299 = vmatprep.subr.mxu0 0.0
      %300 = vmatpush1.msra.mxu0 0.0
      %301 = vmatprep.subr.mxu0 0.0
      %302 = vmatpush1.msra.mxu0 0.0
      %303 = vmatprep.subr.mxu0 0.0
      %304 = vmatpush1.msra.mxu0 0.0
      %305 = vmatprep.subr.mxu0 0.0
      %306 = vmatpush1.msra.mxu0 0.0
      %307 = vmatprep.subr.mxu0 0.0
      %308 = vmatpush1.msra.mxu0 0.0
      %309 = vmatprep.subr.mxu0 0.0
      %310 = vmatpush1.msra.mxu0 0.0
      %311 = vmatprep.subr.mxu0 0.0
      %312 = vmatpush1.msra.mxu0 0.0
      %313 = vmatprep.subr.mxu0 0.0
      %314 = vmatpush1.msra.mxu0 0.0
      %315 = vmatprep.subr.mxu0 0.0
      %316 = vmatpush1.msra.mxu0 0.0
      %317 = vmatprep.subr.mxu0 0.0
      %318 = vmatpush1.msra.mxu0 0.0
      %319 = vmatprep.subr.mxu0 0.0
      %320 = vmatpush1.msra.mxu0 0.0
      %321 = vmatprep.subr.mxu0 0.0
      %322 = vmatpush1.msra.mxu0 0.0
      %323 = vmatprep.subr.mxu0 0.0
      %324 = vmatpush1.msra.mxu0 0.0
      %325 = vmatprep.mubr.f32.mxu0 0.0
      %326 = vmatmul.mubr.f32.gmra.mrb[0].mxu0 %v259
      %v327 = vpop.f32.mrb[0].mxu0
      %v328 = vadd.f32 %v254, %v327
      %v329 = vpop.f32.mrb[0].mxu0
      %330 = vdwg.mxu0
      %v332 = vlaneseq
      %v333 = vshrl.u32 %v332, 7
      %v334 = vsub.s32 0, %v333
      %v335 = vrot.slane %v111, %v334
      %v337 = vadd.f32 %v328, %v335
      %v339 = vsel %vm257, %v179, 0
      %341 = vmatprep.subr.mxu0 0.0
      %342 = vmatpush1.msra.mxu0 %v106
      %343 = vmatprep.subr.mxu0 0.0
      %344 = vmatpush1.msra.mxu0 0.0
      %345 = vmatprep.subr.mxu0 0.0
      %346 = vmatpush1.msra.mxu0 0.0
      %347 = vmatprep.subr.mxu0 0.0
      %348 = vmatpush1.msra.mxu0 0.0
      %349 = vmatprep.subr.mxu0 0.0
      %350 = vmatpush1.msra.mxu0 0.0
      %351 = vmatprep.subr.mxu0 0.0
      %352 = vmatpush1.msra.mxu0 0.0
      %353 = vmatprep.subr.mxu0 0.0
      %354 = vmatpush1.msra.mxu0 0.0
      %355 = vmatprep.subr.mxu0 0.0
      %356 = vmatpush1.msra.mxu0 0.0
      %357 = vmatprep.subr.mxu0 0.0
      %358 = vmatpush1.msra.mxu0 0.0
      %359 = vmatprep.subr.mxu0 0.0
      %360 = vmatpush1.msra.mxu0 0.0
      %361 = vmatprep.subr.mxu0 0.0
      %362 = vmatpush1.msra.mxu0 0.0
      %363 = vmatprep.subr.mxu0 0.0
      %364 = vmatpush1.msra.mxu0 0.0
      %365 = vmatprep.subr.mxu0 0.0
      %366 = vmatpush1.msra.mxu0 0.0
      %367 = vmatprep.subr.mxu0 0.0
      %368 = vmatpush1.msra.mxu0 0.0
      %369 = vmatprep.subr.mxu0 0.0
      %370 = vmatpush1.msra.mxu0 0.0
      %371 = vmatprep.subr.mxu0 0.0
      %372 = vmatpush1.msra.mxu0 0.0
      %373 = vmatprep.subr.mxu0 0.0
      %374 = vmatpush1.msra.mxu0 0.0
      %375 = vmatprep.subr.mxu0 0.0
      %376 = vmatpush1.msra.mxu0 0.0
      %377 = vmatprep.subr.mxu0 0.0
      %378 = vmatpush1.msra.mxu0 0.0
      %379 = vmatprep.subr.mxu0 0.0
      %380 = vmatpush1.msra.mxu0 0.0
      %381 = vmatprep.subr.mxu0 0.0
      %382 = vmatpush1.msra.mxu0 0.0
      %383 = vmatprep.subr.mxu0 0.0
      %384 = vmatpush1.msra.mxu0 0.0
      %385 = vmatprep.subr.mxu0 0.0
      %386 = vmatpush1.msra.mxu0 0.0
      %387 = vmatprep.subr.mxu0 0.0
      %388 = vmatpush1.msra.mxu0 0.0
      %389 = vmatprep.subr.mxu0 0.0
      %390 = vmatpush1.msra.mxu0 0.0
      %391 = vmatprep.subr.mxu0 0.0
      %392 = vmatpush1.msra.mxu0 0.0
      %393 = vmatprep.subr.mxu0 0.0
      %394 = vmatpush1.msra.mxu0 0.0
      %395 = vmatprep.subr.mxu0 0.0
      %396 = vmatpush1.msra.mxu0 0.0
      %397 = vmatprep.subr.mxu0 0.0
      %398 = vmatpush1.msra.mxu0 0.0
      %399 = vmatprep.subr.mxu0 0.0
      %400 = vmatpush1.msra.mxu0 0.0
      %401 = vmatprep.subr.mxu0 0.0
      %402 = vmatpush1.msra.mxu0 0.0
      %403 = vmatprep.subr.mxu0 0.0
      %404 = vmatpush1.msra.mxu0 0.0
      %405 = vmatprep.mubr.f32.mxu0 0.0
      %406 = vmatmul.mubr.f32.gmra.mrb[0].mxu0 %v339
      %v407 = vpop.f32.mrb[0].mxu0
      %v408 = vadd.f32 0.0, %v407
      %v409 = vpop.f32.mrb[0].mxu0
      %410 = vdwg.mxu0
      %v411 = vadd.f32 %v337, %v408
      %v412 = vand.u32 2147483647, %v411
      %v413 = vsub.f32 0.0, %v412
      %v414 = vmul.f32 %v413, 1.442695
      %v415 = vpow.pop %v414
      %v416 = vadd.f32 %v415, 1.0
      %v417 = vrcp.pop %v416
      %v418 = vmul.f32 1.0, %v417
      %vm419 = vcmp.ge.f32.partialorder %v411, 0.0
      %v420 = vmul.f32 %v415, %v418
      %v421 = vsel %vm419, %v418, %v420
      %v422 = vtanh.pop %v411
      %424 = vrot.lane.b32.xlu0 %v160, 32
      %v425 = vpop.permute.xlu0 %424
      %v427 = vmul.f32 %v421, %v425
      %429 = vrot.lane.b32.xlu0 %v422, 64
      %v430 = vpop.permute.xlu0 %429
      %v432 = vmul.f32 %v421, %v430
      %434 = vrot.lane.b32.xlu0 %v432, 32
      %v435 = vpop.permute.xlu0 %434
      %v437 = vadd.f32 %v427, %v435
      %v438 = vtanh.pop %v437
      %440 = vrot.lane.b32.xlu0 %v438, 64
      %v441 = vpop.permute.xlu0 %440
      %v443 = vmul.f32 %v421, %v441
      %v445 = vlaneseq
      %v446 = vshrl.u32 %v445, 7
      %v447 = vsub.s32 0, %v446
      %v448 = vrot.slane %v120, %v447
      %451 = vrot.lane.b32.xlu0 %v437, 96
      %v452 = vpop.permute.xlu0 %451
      %v453 = vsel %vm183, %v452, 0
      %455 = vmatprep.subr.mxu0 0.0
      %456 = vmatpush1.msra.mxu0 %v116
      %457 = vmatprep.subr.mxu0 0.0
      %458 = vmatpush1.msra.mxu0 %v117
      %459 = vmatprep.subr.mxu0 0.0
      %460 = vmatpush1.msra.mxu0 %v118
      %461 = vmatprep.subr.mxu0 0.0
      %462 = vmatpush1.msra.mxu0 %v119
      %463 = vmatprep.subr.mxu0 0.0
      %464 = vmatpush1.msra.mxu0 0.0
      %465 = vmatprep.subr.mxu0 0.0
      %466 = vmatpush1.msra.mxu0 0.0
      %467 = vmatprep.subr.mxu0 0.0
      %468 = vmatpush1.msra.mxu0 0.0
      %469 = vmatprep.subr.mxu0 0.0
      %470 = vmatpush1.msra.mxu0 0.0
      %471 = vmatprep.subr.mxu0 0.0
      %472 = vmatpush1.msra.mxu0 0.0
      %473 = vmatprep.subr.mxu0 0.0
      %474 = vmatpush1.msra.mxu0 0.0
      %475 = vmatprep.subr.mxu0 0.0
      %476 = vmatpush1.msra.mxu0 0.0
      %477 = vmatprep.subr.mxu0 0.0
      %478 = vmatpush1.msra.mxu0 0.0
      %479 = vmatprep.subr.mxu0 0.0
      %480 = vmatpush1.msra.mxu0 0.0
      %481 = vmatprep.subr.mxu0 0.0
      %482 = vmatpush1.msra.mxu0 0.0
      %483 = vmatprep.subr.mxu0 0.0
      %484 = vmatpush1.msra.mxu0 0.0
      %485 = vmatprep.subr.mxu0 0.0
      %486 = vmatpush1.msra.mxu0 0.0
      %487 = vmatprep.subr.mxu0 0.0
      %488 = vmatpush1.msra.mxu0 0.0
      %489 = vmatprep.subr.mxu0 0.0
      %490 = vmatpush1.msra.mxu0 0.0
      %491 = vmatprep.subr.mxu0 0.0
      %492 = vmatpush1.msra.mxu0 0.0
      %493 = vmatprep.subr.mxu0 0.0
      %494 = vmatpush1.msra.mxu0 0.0
      %495 = vmatprep.subr.mxu0 0.0
      %496 = vmatpush1.msra.mxu0 0.0
      %497 = vmatprep.subr.mxu0 0.0
      %498 = vmatpush1.msra.mxu0 0.0
      %499 = vmatprep.subr.mxu0 0.0
      %500 = vmatpush1.msra.mxu0 0.0
      %501 = vmatprep.subr.mxu0 0.0
      %502 = vmatpush1.msra.mxu0 0.0
      %503 = vmatprep.subr.mxu0 0.0
      %504 = vmatpush1.msra.mxu0 0.0
      %505 = vmatprep.subr.mxu0 0.0
      %506 = vmatpush1.msra.mxu0 0.0
      %507 = vmatprep.subr.mxu0 0.0
      %508 = vmatpush1.msra.mxu0 0.0
      %509 = vmatprep.subr.mxu0 0.0
      %510 = vmatpush1.msra.mxu0 0.0
      %511 = vmatprep.subr.mxu0 0.0
      %512 = vmatpush1.msra.mxu0 0.0
      %513 = vmatprep.subr.mxu0 0.0
      %514 = vmatpush1.msra.mxu0 0.0
      %515 = vmatprep.subr.mxu0 0.0
      %516 = vmatpush1.msra.mxu0 0.0
      %517 = vmatprep.subr.mxu0 0.0
      %518 = vmatpush1.msra.mxu0 0.0
      %519 = vmatprep.mubr.f32.mxu0 0.0
      %520 = vmatmul.mubr.f32.gmra.mrb[0].mxu0 %v453
      %v521 = vpop.f32.mrb[0].mxu0
      %v522 = vadd.f32 %v448, %v521
      %v523 = vpop.f32.mrb[0].mxu0
      %524 = vdwg.mxu0
      %v525 = vmul.f32 %v161, %v161
      %v526 = vmul.f32 %v162, %v162
      %v527 = vmul.f32 %v163, %v163
      %v528 = vmul.f32 %v164, %v164
      %v529 = vmul.f32 %v165, %v165
      %v530 = vmul.f32 %v166, %v166
      %v531 = vmul.f32 %v167, %v167
      %v532 = vmul.f32 %v168, %v168
      %v533 = vmul.f32 %v169, %v169
      %v534 = vmul.f32 %v170, %v170
      %v535 = vmul.f32 %v171, %v171
      %v536 = vmul.f32 %v172, %v172
      %v537 = vmul.f32 %v173, %v173
      %v538 = vmul.f32 %v174, %v174
      %v539 = vmul.f32 %v175, %v175
      %v540 = vmul.f32 %v176, %v176
      %v541 = vsel %vm257, %v525, 0.0
      %542 = vadd.xlane.f32.xlu0 %v541
      %v543 = vpop.xlane.xlu0 %542
      %v544 = vsel %vm257, %v526, 0.0
      %545 = vadd.xlane.f32.xlu0 %v544
      %v546 = vpop.xlane.xlu0 %545
      %v547 = vsel %vm257, %v527, 0.0
      %548 = vadd.xlane.f32.xlu0 %v547
      %v549 = vpop.xlane.xlu0 %548
      %v550 = vsel %vm257, %v528, 0.0
      %551 = vadd.xlane.f32.xlu0 %v550
      %v552 = vpop.xlane.xlu0 %551
      %v553 = vsel %vm257, %v529, 0.0
      %554 = vadd.xlane.f32.xlu0 %v553
      %v555 = vpop.xlane.xlu0 %554
      %v556 = vsel %vm257, %v530, 0.0
      %557 = vadd.xlane.f32.xlu0 %v556
      %v558 = vpop.xlane.xlu0 %557
      %v559 = vsel %vm257, %v531, 0.0
      %560 = vadd.xlane.f32.xlu0 %v559
      %v561 = vpop.xlane.xlu0 %560
      %v562 = vsel %vm257, %v532, 0.0
      %563 = vadd.xlane.f32.xlu0 %v562
      %v564 = vpop.xlane.xlu0 %563
      %v565 = vsel %vm257, %v533, 0.0
      %566 = vadd.xlane.f32.xlu0 %v565
      %v567 = vpop.xlane.xlu0 %566
      %v568 = vsel %vm257, %v534, 0.0
      %569 = vadd.xlane.f32.xlu0 %v568
      %v570 = vpop.xlane.xlu0 %569
      %v571 = vsel %vm257, %v535, 0.0
      %572 = vadd.xlane.f32.xlu0 %v571
      %v573 = vpop.xlane.xlu0 %572
      %v574 = vsel %vm257, %v536, 0.0
      %575 = vadd.xlane.f32.xlu0 %v574
      %v576 = vpop.xlane.xlu0 %575
      %v577 = vsel %vm257, %v537, 0.0
      %578 = vadd.xlane.f32.xlu0 %v577
      %v579 = vpop.xlane.xlu0 %578
      %v580 = vsel %vm257, %v538, 0.0
      %581 = vadd.xlane.f32.xlu0 %v580
      %v582 = vpop.xlane.xlu0 %581
      %v583 = vsel %vm257, %v539, 0.0
      %584 = vadd.xlane.f32.xlu0 %v583
      %v585 = vpop.xlane.xlu0 %584
      %v586 = vsel %vm257, %v540, 0.0
      %587 = vadd.xlane.f32.xlu0 %v586
      %v588 = vpop.xlane.xlu0 %587
      %v589 = vrsqrt.pop %v543
      %v590 = vmul.f32 %v543, %v589
      %vm591 = vcmp.eq.f32.partialorder %v543, inf
      %v592 = vsel %vm591, %v543, %v590
      %vm593 = vcmp.eq.f32.partialorder %v543, 0.0
      %v594 = vand.u32 %v543, 2147483648
      %v595 = vsel %vm593, %v594, %v592
      %v596 = vrsqrt.pop %v546
      %v597 = vmul.f32 %v546, %v596
      %vm598 = vcmp.eq.f32.partialorder %v546, inf
      %v599 = vsel %vm598, %v546, %v597
      %vm600 = vcmp.eq.f32.partialorder %v546, 0.0
      %v601 = vand.u32 %v546, 2147483648
      %v602 = vsel %vm600, %v601, %v599
      %v603 = vrsqrt.pop %v549
      %v604 = vmul.f32 %v549, %v603
      %vm605 = vcmp.eq.f32.partialorder %v549, inf
      %v606 = vsel %vm605, %v549, %v604
      %vm607 = vcmp.eq.f32.partialorder %v549, 0.0
      %v608 = vand.u32 %v549, 2147483648
      %v609 = vsel %vm607, %v608, %v606
      %v610 = vrsqrt.pop %v552
      %v611 = vmul.f32 %v552, %v610
      %vm612 = vcmp.eq.f32.partialorder %v552, inf
      %v613 = vsel %vm612, %v552, %v611
      %vm614 = vcmp.eq.f32.partialorder %v552, 0.0
      %v615 = vand.u32 %v552, 2147483648
      %v616 = vsel %vm614, %v615, %v613
      %v617 = vrsqrt.pop %v555
      %v618 = vmul.f32 %v555, %v617
      %vm619 = vcmp.eq.f32.partialorder %v555, inf
      %v620 = vsel %vm619, %v555, %v618
      %vm621 = vcmp.eq.f32.partialorder %v555, 0.0
      %v622 = vand.u32 %v555, 2147483648
      %v623 = vsel %vm621, %v622, %v620
      %v624 = vrsqrt.pop %v558
      %v625 = vmul.f32 %v558, %v624
      %vm626 = vcmp.eq.f32.partialorder %v558, inf
      %v627 = vsel %vm626, %v558, %v625
      %vm628 = vcmp.eq.f32.partialorder %v558, 0.0
      %v629 = vand.u32 %v558, 2147483648
      %v630 = vsel %vm628, %v629, %v627
      %v631 = vrsqrt.pop %v561
      %v632 = vmul.f32 %v561, %v631
      %vm633 = vcmp.eq.f32.partialorder %v561, inf
      %v634 = vsel %vm633, %v561, %v632
      %vm635 = vcmp.eq.f32.partialorder %v561, 0.0
      %v636 = vand.u32 %v561, 2147483648
      %v637 = vsel %vm635, %v636, %v634
      %v638 = vrsqrt.pop %v564
      %v639 = vmul.f32 %v564, %v638
      %vm640 = vcmp.eq.f32.partialorder %v564, inf
      %v641 = vsel %vm640, %v564, %v639
      %vm642 = vcmp.eq.f32.partialorder %v564, 0.0
      %v643 = vand.u32 %v564, 2147483648
      %v644 = vsel %vm642, %v643, %v641
      %v645 = vrsqrt.pop %v567
      %v646 = vmul.f32 %v567, %v645
      %vm647 = vcmp.eq.f32.partialorder %v567, inf
      %v648 = vsel %vm647, %v567, %v646
      %vm649 = vcmp.eq.f32.partialorder %v567, 0.0
      %v650 = vand.u32 %v567, 2147483648
      %v651 = vsel %vm649, %v650, %v648
      %v652 = vrsqrt.pop %v570
      %v653 = vmul.f32 %v570, %v652
      %vm654 = vcmp.eq.f32.partialorder %v570, inf
      %v655 = vsel %vm654, %v570, %v653
      %vm656 = vcmp.eq.f32.partialorder %v570, 0.0
      %v657 = vand.u32 %v570, 2147483648
      %v658 = vsel %vm656, %v657, %v655
      %v659 = vrsqrt.pop %v573
      %v660 = vmul.f32 %v573, %v659
      %vm661 = vcmp.eq.f32.partialorder %v573, inf
      %v662 = vsel %vm661, %v573, %v660
      %vm663 = vcmp.eq.f32.partialorder %v573, 0.0
      %v664 = vand.u32 %v573, 2147483648
      %v665 = vsel %vm663, %v664, %v662
      %v666 = vrsqrt.pop %v576
      %v667 = vmul.f32 %v576, %v666
      %vm668 = vcmp.eq.f32.partialorder %v576, inf
      %v669 = vsel %vm668, %v576, %v667
      %vm670 = vcmp.eq.f32.partialorder %v576, 0.0
      %v671 = vand.u32 %v576, 2147483648
      %v672 = vsel %vm670, %v671, %v669
      %v673 = vrsqrt.pop %v579
      %v674 = vmul.f32 %v579, %v673
      %vm675 = vcmp.eq.f32.partialorder %v579, inf
      %v676 = vsel %vm675, %v579, %v674
      %vm677 = vcmp.eq.f32.partialorder %v579, 0.0
      %v678 = vand.u32 %v579, 2147483648
      %v679 = vsel %vm677, %v678, %v676
      %v680 = vrsqrt.pop %v582
      %v681 = vmul.f32 %v582, %v680
      %vm682 = vcmp.eq.f32.partialorder %v582, inf
      %v683 = vsel %vm682, %v582, %v681
      %vm684 = vcmp.eq.f32.partialorder %v582, 0.0
      %v685 = vand.u32 %v582, 2147483648
      %v686 = vsel %vm684, %v685, %v683
      %v687 = vrsqrt.pop %v585
      %v688 = vmul.f32 %v585, %v687
      %vm689 = vcmp.eq.f32.partialorder %v585, inf
      %v690 = vsel %vm689, %v585, %v688
      %vm691 = vcmp.eq.f32.partialorder %v585, 0.0
      %v692 = vand.u32 %v585, 2147483648
      %v693 = vsel %vm691, %v692, %v690
      %v694 = vrsqrt.pop %v588
      %v695 = vmul.f32 %v588, %v694
      %vm696 = vcmp.eq.f32.partialorder %v588, inf
      %v697 = vsel %vm696, %v588, %v695
      %vm698 = vcmp.eq.f32.partialorder %v588, 0.0
      %v699 = vand.u32 %v588, 2147483648
      %v700 = vsel %vm698, %v699, %v697
      %v702 = vcombine.high %v522, %v522
      %v704 = vunpack.c.l.s4 1966171168
      %v705 = vunpack.c.0.s8 %v704
      %v706 = vlaneseq
      %v707 = vshrl.u32 %v706, 7
      %v708 = vsub.s32 %v705, %v707
      %v709 = vrot.slane %v522, %v708
      %v711 = vunpack.c.l.s4 1966171168
      %v712 = vunpack.c.0.s8 %v711
      %v713 = vlaneseq
      %v714 = vshrl.u32 %v713, 7
      %v715 = vsub.s32 %v712, %v714
      %v716 = vrot.slane %v702, %v715
      %v717 = vcombine.high %v709, %v709
      %v718 = vcombine.high %v716, %v716
      %v720 = vunpack.c.l.s4 1966171168
      %v721 = vunpack.c.0.s8 %v720
      %v722 = vlaneseq
      %v723 = vshrl.u32 %v722, 7
      %v724 = vsub.s32 %v721, %v723
      %v725 = vrot.slane %v709, %v724
      %v727 = vunpack.c.l.s4 1966171168
      %v728 = vunpack.c.0.s8 %v727
      %v729 = vlaneseq
      %v730 = vshrl.u32 %v729, 7
      %v731 = vsub.s32 %v728, %v730
      %v732 = vrot.slane %v716, %v731
      %v734 = vunpack.c.l.s4 1966171168
      %v735 = vunpack.c.0.s8 %v734
      %v736 = vlaneseq
      %v737 = vshrl.u32 %v736, 7
      %v738 = vsub.s32 %v735, %v737
      %v739 = vrot.slane %v717, %v738
      %v741 = vunpack.c.l.s4 1966171168
      %v742 = vunpack.c.0.s8 %v741
      %v743 = vlaneseq
      %v744 = vshrl.u32 %v743, 7
      %v745 = vsub.s32 %v742, %v744
      %v746 = vrot.slane %v718, %v745
      %v747 = vcombine.high %v725, %v725
      %v748 = vcombine.high %v732, %v732
      %v749 = vcombine.high %v739, %v739
      %v750 = vcombine.high %v746, %v746
      %v759 = vlaneseq
      %v760 = vshrl.u32 %v759, 7
      %v761 = vsub.s32 0, %v760
      %v762 = vrot.slane %v725, %v761
      %v763 = vlaneseq
      %v764 = vshrl.u32 %v763, 7
      %v765 = vsub.s32 0, %v764
      %v766 = vrot.slane %v739, %v765
      %v767 = vlaneseq
      %v768 = vshrl.u32 %v767, 7
      %v769 = vsub.s32 0, %v768
      %v770 = vrot.slane %v747, %v769
      %v771 = vlaneseq
      %v772 = vshrl.u32 %v771, 7
      %v773 = vsub.s32 0, %v772
      %v774 = vrot.slane %v749, %v773
      %v775 = vlaneseq
      %v776 = vshrl.u32 %v775, 7
      %v777 = vsub.s32 0, %v776
      %v778 = vrot.slane %v732, %v777
      %v779 = vlaneseq
      %v780 = vshrl.u32 %v779, 7
      %v781 = vsub.s32 0, %v780
      %v782 = vrot.slane %v746, %v781
      %v783 = vlaneseq
      %v784 = vshrl.u32 %v783, 7
      %v785 = vsub.s32 0, %v784
      %v786 = vrot.slane %v748, %v785
      %v787 = vlaneseq
      %v788 = vshrl.u32 %v787, 7
      %v789 = vsub.s32 0, %v788
      %v790 = vrot.slane %v750, %v789
      %791 = vrot.lane.b32.xlu0 %v762, 98
      %v792 = vpop.permute.xlu0 %791
      %793 = vrot.lane.b32.xlu0 %v766, 98
      %v794 = vpop.permute.xlu0 %793
      %795 = vrot.lane.b32.xlu0 %v770, 98
      %v796 = vpop.permute.xlu0 %795
      %797 = vrot.lane.b32.xlu0 %v774, 98
      %v798 = vpop.permute.xlu0 %797
      %799 = vrot.lane.b32.xlu0 %v778, 98
      %v800 = vpop.permute.xlu0 %799
      %801 = vrot.lane.b32.xlu0 %v782, 98
      %v802 = vpop.permute.xlu0 %801
      %803 = vrot.lane.b32.xlu0 %v786, 98
      %v804 = vpop.permute.xlu0 %803
      %805 = vrot.lane.b32.xlu0 %v790, 98
      %v806 = vpop.permute.xlu0 %805
      %vm815 = vcmask 1040384
      %v816 = vsel %vm815, %v725, %v792
      %v817 = vsel %vm815, %v739, %v794
      %v818 = vsel %vm815, %v747, %v796
      %v819 = vsel %vm815, %v749, %v798
      %v820 = vsel %vm815, %v732, %v800
      %v821 = vsel %vm815, %v746, %v802
      %v822 = vsel %vm815, %v748, %v804
      %v823 = vsel %vm815, %v750, %v806
      %v824 = vmax.f32 %v816, 0.0
      %v825 = vmax.f32 %v817, 0.0
      %v826 = vmax.f32 %v818, 0.0
      %v827 = vmax.f32 %v819, 0.0
      %v828 = vmax.f32 %v820, 0.0
      %v829 = vmax.f32 %v821, 0.0
      %v830 = vmax.f32 %v822, 0.0
      %v831 = vmax.f32 %v823, 0.0
      %v832 = vand.u32 2147483647, %v816
      %v833 = vand.u32 2147483647, %v817
      %v834 = vand.u32 2147483647, %v818
      %v835 = vand.u32 2147483647, %v819
      %v836 = vand.u32 2147483647, %v820
      %v837 = vand.u32 2147483647, %v821
      %v838 = vand.u32 2147483647, %v822
      %v839 = vand.u32 2147483647, %v823
      %v840 = vsub.f32 0.0, %v832
      %v841 = vsub.f32 0.0, %v833
      %v842 = vsub.f32 0.0, %v834
      %v843 = vsub.f32 0.0, %v835
      %v844 = vsub.f32 0.0, %v836
      %v845 = vsub.f32 0.0, %v837
      %v846 = vsub.f32 0.0, %v838
      %v847 = vsub.f32 0.0, %v839
      %v848 = vmul.f32 %v840, 1.442695
      %v849 = vpow.pop %v848
      %v850 = vmul.f32 %v841, 1.442695
      %v851 = vpow.pop %v850
      %v852 = vmul.f32 %v842, 1.442695
      %v853 = vpow.pop %v852
      %v854 = vmul.f32 %v843, 1.442695
      %v855 = vpow.pop %v854
      %v856 = vmul.f32 %v844, 1.442695
      %v857 = vpow.pop %v856
      %v858 = vmul.f32 %v845, 1.442695
      %v859 = vpow.pop %v858
      %v860 = vmul.f32 %v846, 1.442695
      %v861 = vpow.pop %v860
      %v862 = vmul.f32 %v847, 1.442695
      %v863 = vpow.pop %v862
      %v864 = vadd.f32 %v849, 1.0
      %v865 = vadd.f32 %v851, 1.0
      %v866 = vadd.f32 %v853, 1.0
      %v867 = vadd.f32 %v855, 1.0
      %v868 = vadd.f32 %v857, 1.0
      %v869 = vadd.f32 %v859, 1.0
      %v870 = vadd.f32 %v861, 1.0
      %v871 = vadd.f32 %v863, 1.0
      %v872 = vlog2.pop %v864
      %v873 = vmul.f32 %v872, 0.6931472
      %v874 = vlog2.pop %v865
      %v875 = vmul.f32 %v874, 0.6931472
      %v876 = vlog2.pop %v866
      %v877 = vmul.f32 %v876, 0.6931472
      %v878 = vlog2.pop %v867
      %v879 = vmul.f32 %v878, 0.6931472
      %v880 = vlog2.pop %v868
      %v881 = vmul.f32 %v880, 0.6931472
      %v882 = vlog2.pop %v869
      %v883 = vmul.f32 %v882, 0.6931472
      %v884 = vlog2.pop %v870
      %v885 = vmul.f32 %v884, 0.6931472
      %v886 = vlog2.pop %v871
      %v887 = vmul.f32 %v886, 0.6931472
      %v888 = vadd.f32 %v824, %v873
      %v889 = vadd.f32 %v825, %v875
      %v890 = vadd.f32 %v826, %v877
      %v891 = vadd.f32 %v827, %v879
      %v892 = vadd.f32 %v828, %v881
      %v893 = vadd.f32 %v829, %v883
      %v894 = vadd.f32 %v830, %v885
      %v895 = vadd.f32 %v831, %v887
      %v896 = vrcp.pop %v864
      %v897 = vmul.f32 1.0, %v896
      %v898 = vrcp.pop %v865
      %v899 = vmul.f32 1.0, %v898
      %v900 = vrcp.pop %v866
      %v901 = vmul.f32 1.0, %v900
      %v902 = vrcp.pop %v867
      %v903 = vmul.f32 1.0, %v902
      %v904 = vrcp.pop %v868
      %v905 = vmul.f32 1.0, %v904
      %v906 = vrcp.pop %v869
      %v907 = vmul.f32 1.0, %v906
      %v908 = vrcp.pop %v870
      %v909 = vmul.f32 1.0, %v908
      %v910 = vrcp.pop %v871
      %v911 = vmul.f32 1.0, %v910
      %vm912 = vcmp.ge.f32.partialorder %v816, 0.0
      %vm913 = vcmp.ge.f32.partialorder %v817, 0.0
      %vm914 = vcmp.ge.f32.partialorder %v818, 0.0
      %vm915 = vcmp.ge.f32.partialorder %v819, 0.0
      %vm916 = vcmp.ge.f32.partialorder %v820, 0.0
      %vm917 = vcmp.ge.f32.partialorder %v821, 0.0
      %vm918 = vcmp.ge.f32.partialorder %v822, 0.0
      %vm919 = vcmp.ge.f32.partialorder %v823, 0.0
      %v920 = vmul.f32 %v849, %v897
      %v921 = vmul.f32 %v851, %v899
      %v922 = vmul.f32 %v853, %v901
      %v923 = vmul.f32 %v855, %v903
      %v924 = vmul.f32 %v857, %v905
      %v925 = vmul.f32 %v859, %v907
      %v926 = vmul.f32 %v861, %v909
      %v927 = vmul.f32 %v863, %v911
      %v928 = vsel %vm912, %v897, %v920
      %v929 = vsel %vm913, %v899, %v921
      %v930 = vsel %vm914, %v901, %v922
      %v931 = vsel %vm915, %v903, %v923
      %v932 = vsel %vm916, %v905, %v924
      %v933 = vsel %vm917, %v907, %v925
      %v934 = vsel %vm918, %v909, %v926
      %v935 = vsel %vm919, %v911, %v927
      %vm936 = vcmask 99408
      %v937 = vsel %vm936, %v816, -inf
      %938 = vmax.xlane.f32.xlu0 %v937
      %v939 = vpop.xlane.xlu0 %938
      %v940 = vsel %vm936, %v817, -inf
      %941 = vmax.xlane.f32.xlu0 %v940
      %v942 = vpop.xlane.xlu0 %941
      %v943 = vsel %vm936, %v818, -inf
      %944 = vmax.xlane.f32.xlu0 %v943
      %v945 = vpop.xlane.xlu0 %944
      %v946 = vsel %vm936, %v819, -inf
      %947 = vmax.xlane.f32.xlu0 %v946
      %v948 = vpop.xlane.xlu0 %947
      %v949 = vsel %vm936, %v820, -inf
      %950 = vmax.xlane.f32.xlu0 %v949
      %v951 = vpop.xlane.xlu0 %950
      %v952 = vsel %vm936, %v821, -inf
      %953 = vmax.xlane.f32.xlu0 %v952
      %v954 = vpop.xlane.xlu0 %953
      %v955 = vsel %vm936, %v822, -inf
      %956 = vmax.xlane.f32.xlu0 %v955
      %v957 = vpop.xlane.xlu0 %956
      %v958 = vsel %vm936, %v823, -inf
      %959 = vmax.xlane.f32.xlu0 %v958
      %v960 = vpop.xlane.xlu0 %959
      %v961 = vsub.f32 %v816, %v939
      %v962 = vsub.f32 %v817, %v942
      %v963 = vsub.f32 %v818, %v945
      %v964 = vsub.f32 %v819, %v948
      %v965 = vsub.f32 %v820, %v951
      %v966 = vsub.f32 %v821, %v954
      %v967 = vsub.f32 %v822, %v957
      %v968 = vsub.f32 %v823, %v960
      %v969 = vmul.f32 %v961, 1.442695
      %v970 = vpow.pop %v969
      %v971 = vmul.f32 %v962, 1.442695
      %v972 = vpow.pop %v971
      %v973 = vmul.f32 %v963, 1.442695
      %v974 = vpow.pop %v973
      %v975 = vmul.f32 %v964, 1.442695
      %v976 = vpow.pop %v975
      %v977 = vmul.f32 %v965, 1.442695
      %v978 = vpow.pop %v977
      %v979 = vmul.f32 %v966, 1.442695
      %v980 = vpow.pop %v979
      %v981 = vmul.f32 %v967, 1.442695
      %v982 = vpow.pop %v981
      %v983 = vmul.f32 %v968, 1.442695
      %v984 = vpow.pop %v983
      %993 = vrot.lane.b32.xlu0 %v970, 118
      %v994 = vpop.permute.xlu0 %993
      %995 = vrot.lane.b32.xlu0 %v972, 118
      %v996 = vpop.permute.xlu0 %995
      %997 = vrot.lane.b32.xlu0 %v974, 118
      %v998 = vpop.permute.xlu0 %997
      %999 = vrot.lane.b32.xlu0 %v976, 118
      %v1000 = vpop.permute.xlu0 %999
      %1001 = vrot.lane.b32.xlu0 %v978, 118
      %v1002 = vpop.permute.xlu0 %1001
      %1003 = vrot.lane.b32.xlu0 %v980, 118
      %v1004 = vpop.permute.xlu0 %1003
      %1005 = vrot.lane.b32.xlu0 %v982, 118
      %v1006 = vpop.permute.xlu0 %1005
      %1007 = vrot.lane.b32.xlu0 %v984, 118
      %v1008 = vpop.permute.xlu0 %1007
      %vm1017 = vcmask 17408
      %v1018 = vsel %vm1017, %v994, 0.0
      %1019 = vadd.xlane.f32.xlu0 %v1018
      %v1020 = vpop.xlane.xlu0 %1019
      %v1021 = vsel %vm1017, %v996, 0.0
      %1022 = vadd.xlane.f32.xlu0 %v1021
      %v1023 = vpop.xlane.xlu0 %1022
      %v1024 = vsel %vm1017, %v998, 0.0
      %1025 = vadd.xlane.f32.xlu0 %v1024
      %v1026 = vpop.xlane.xlu0 %1025
      %v1027 = vsel %vm1017, %v1000, 0.0
      %1028 = vadd.xlane.f32.xlu0 %v1027
      %v1029 = vpop.xlane.xlu0 %1028
      %v1030 = vsel %vm1017, %v1002, 0.0
      %1031 = vadd.xlane.f32.xlu0 %v1030
      %v1032 = vpop.xlane.xlu0 %1031
      %v1033 = vsel %vm1017, %v1004, 0.0
      %1034 = vadd.xlane.f32.xlu0 %v1033
      %v1035 = vpop.xlane.xlu0 %1034
      %v1036 = vsel %vm1017, %v1006, 0.0
      %1037 = vadd.xlane.f32.xlu0 %v1036
      %v1038 = vpop.xlane.xlu0 %1037
      %v1039 = vsel %vm1017, %v1008, 0.0
      %1040 = vadd.xlane.f32.xlu0 %v1039
      %v1041 = vpop.xlane.xlu0 %1040
      %v1042 = vrcp.pop %v1020
      %v1043 = vmul.f32 %v970, %v1042
      %v1044 = vrcp.pop %v1023
      %v1045 = vmul.f32 %v972, %v1044
      %v1046 = vrcp.pop %v1026
      %v1047 = vmul.f32 %v974, %v1046
      %v1048 = vrcp.pop %v1029
      %v1049 = vmul.f32 %v976, %v1048
      %v1050 = vrcp.pop %v1032
      %v1051 = vmul.f32 %v978, %v1050
      %v1052 = vrcp.pop %v1035
      %v1053 = vmul.f32 %v980, %v1052
      %v1054 = vrcp.pop %v1038
      %v1055 = vmul.f32 %v982, %v1054
      %v1056 = vrcp.pop %v1041
      %v1057 = vmul.f32 %v984, %v1056
      %v1058 = vadd.f32 %v888, 1.0
      %v1059 = vadd.f32 %v889, 1.0
      %v1060 = vadd.f32 %v890, 1.0
      %v1061 = vadd.f32 %v891, 1.0
      %v1062 = vadd.f32 %v892, 1.0
      %v1063 = vadd.f32 %v893, 1.0
      %v1064 = vadd.f32 %v894, 1.0
      %v1065 = vadd.f32 %v895, 1.0
      %v1067 = vsel %vm257, %v816, 0
      %v1070 = vsel %vm257, %v161, 0
      %v1073 = vsel %vm257, %v162, 0
      %1075 = vmatprep.subr.mxu0 0.0
      %1076 = vmatpush1.xpose.msra.mxu0 %v1070
      %1077 = vmatprep.subr.mxu0 0.0
      %1078 = vmatpush1.xpose.msra.mxu0 %v1073
      %1079 = vmatprep.subr.mxu0 0.0
      %1080 = vmatpush1.xpose.msra.mxu0 0.0
      %1081 = vmatprep.subr.mxu0 0.0
      %1082 = vmatpush1.xpose.msra.mxu0 0.0
      %1083 = vmatprep.subr.mxu0 0.0
      %1084 = vmatpush1.xpose.msra.mxu0 0.0
      %1085 = vmatprep.subr.mxu0 0.0
      %1086 = vmatpush1.xpose.msra.mxu0 0.0
      %1087 = vmatprep.subr.mxu0 0.0
      %1088 = vmatpush1.xpose.msra.mxu0 0.0
      %1089 = vmatprep.subr.mxu0 0.0
      %1090 = vmatpush1.xpose.msra.mxu0 0.0
      %1091 = vmatprep.subr.mxu0 0.0
      %1092 = vmatpush1.xpose.msra.mxu0 0.0
      %1093 = vmatprep.subr.mxu0 0.0
      %1094 = vmatpush1.xpose.msra.mxu0 0.0
      %1095 = vmatprep.subr.mxu0 0.0
      %1096 = vmatpush1.xpose.msra.mxu0 0.0
      %1097 = vmatprep.subr.mxu0 0.0
      %1098 = vmatpush1.xpose.msra.mxu0 0.0
      %1099 = vmatprep.subr.mxu0 0.0
      %1100 = vmatpush1.xpose.msra.mxu0 0.0
      %1101 = vmatprep.subr.mxu0 0.0
      %1102 = vmatpush1.xpose.msra.mxu0 0.0
      %1103 = vmatprep.subr.mxu0 0.0
      %1104 = vmatpush1.xpose.msra.mxu0 0.0
      %1105 = vmatprep.subr.mxu0 0.0
      %1106 = vmatpush1.xpose.msra.mxu0 0.0
      %1107 = vmatprep.subr.mxu0 0.0
      %1108 = vmatpush1.xpose.msra.mxu0 0.0
      %1109 = vmatprep.subr.mxu0 0.0
      %1110 = vmatpush1.xpose.msra.mxu0 0.0
      %1111 = vmatprep.subr.mxu0 0.0
      %1112 = vmatpush1.xpose.msra.mxu0 0.0
      %1113 = vmatprep.subr.mxu0 0.0
      %1114 = vmatpush1.xpose.msra.mxu0 0.0
      %1115 = vmatprep.subr.mxu0 0.0
      %1116 = vmatpush1.xpose.msra.mxu0 0.0
      %1117 = vmatprep.subr.mxu0 0.0
      %1118 = vmatpush1.xpose.msra.mxu0 0.0
      %1119 = vmatprep.subr.mxu0 0.0
      %1120 = vmatpush1.xpose.msra.mxu0 0.0
      %1121 = vmatprep.subr.mxu0 0.0
      %1122 = vmatpush1.xpose.msra.mxu0 0.0
      %1123 = vmatprep.subr.mxu0 0.0
      %1124 = vmatpush1.xpose.msra.mxu0 0.0
      %1125 = vmatprep.subr.mxu0 0.0
      %1126 = vmatpush1.xpose.msra.mxu0 0.0
      %1127 = vmatprep.subr.mxu0 0.0
      %1128 = vmatpush1.xpose.msra.mxu0 0.0
      %1129 = vmatprep.subr.mxu0 0.0
      %1130 = vmatpush1.xpose.msra.mxu0 0.0
      %1131 = vmatprep.subr.mxu0 0.0
      %1132 = vmatpush1.xpose.msra.mxu0 0.0
      %1133 = vmatprep.subr.mxu0 0.0
      %1134 = vmatpush1.xpose.msra.mxu0 0.0
      %1135 = vmatprep.subr.mxu0 0.0
      %1136 = vmatpush1.xpose.msra.mxu0 0.0
      %1137 = vmatprep.subr.mxu0 0.0
      %1138 = vmatpush1.xpose.msra.mxu0 0.0
      %1139 = vmatprep.mubr.f32.mxu0 0.0
      %1140 = vmatmul.mubr.f32.gmra.mrb[0].mxu0 %v1067
      %v1141 = vpop.f32.mrb[0].mxu0
      %v1142 = vadd.f32 0.0, %v1141
      %v1143 = vpop.f32.mrb[0].mxu0
      %1144 = vdwg.mxu0
      %v1146 = vsel %vm257, %v817, 0
      %v1149 = vsel %vm257, %v163, 0
      %v1152 = vsel %vm257, %v164, 0
      %1154 = vmatprep.subr.mxu0 0.0
      %1155 = vmatpush1.xpose.msra.mxu0 %v1149
      %1156 = vmatprep.subr.mxu0 0.0
      %1157 = vmatpush1.xpose.msra.mxu0 %v1152
      %1158 = vmatprep.subr.mxu0 0.0
      %1159 = vmatpush1.xpose.msra.mxu0 0.0
      %1160 = vmatprep.subr.mxu0 0.0
      %1161 = vmatpush1.xpose.msra.mxu0 0.0
      %1162 = vmatprep.subr.mxu0 0.0
      %1163 = vmatpush1.xpose.msra.mxu0 0.0
      %1164 = vmatprep.subr.mxu0 0.0
      %1165 = vmatpush1.xpose.msra.mxu0 0.0
      %1166 = vmatprep.subr.mxu0 0.0
      %1167 = vmatpush1.xpose.msra.mxu0 0.0
      %1168 = vmatprep.subr.mxu0 0.0
      %1169 = vmatpush1.xpose.msra.mxu0 0.0
      %1170 = vmatprep.subr.mxu0 0.0
      %1171 = vmatpush1.xpose.msra.mxu0 0.0
      %1172 = vmatprep.subr.mxu0 0.0
      %1173 = vmatpush1.xpose.msra.mxu0 0.0
      %1174 = vmatprep.subr.mxu0 0.0
      %1175 = vmatpush1.xpose.msra.mxu0 0.0
      %1176 = vmatprep.subr.mxu0 0.0
      %1177 = vmatpush1.xpose.msra.mxu0 0.0
      %1178 = vmatprep.subr.mxu0 0.0
      %1179 = vmatpush1.xpose.msra.mxu0 0.0
      %1180 = vmatprep.subr.mxu0 0.0
      %1181 = vmatpush1.xpose.msra.mxu0 0.0
      %1182 = vmatprep.subr.mxu0 0.0
      %1183 = vmatpush1.xpose.msra.mxu0 0.0
      %1184 = vmatprep.subr.mxu0 0.0
      %1185 = vmatpush1.xpose.msra.mxu0 0.0
      %1186 = vmatprep.subr.mxu0 0.0
      %1187 = vmatpush1.xpose.msra.mxu0 0.0
      %1188 = vmatprep.subr.mxu0 0.0
      %1189 = vmatpush1.xpose.msra.mxu0 0.0
      %1190 = vmatprep.subr.mxu0 0.0
      %1191 = vmatpush1.xpose.msra.mxu0 0.0
      %1192 = vmatprep.subr.mxu0 0.0
      %1193 = vmatpush1.xpose.msra.mxu0 0.0
      %1194 = vmatprep.subr.mxu0 0.0
      %1195 = vmatpush1.xpose.msra.mxu0 0.0
      %1196 = vmatprep.subr.mxu0 0.0
      %1197 = vmatpush1.xpose.msra.mxu0 0.0
      %1198 = vmatprep.subr.mxu0 0.0
      %1199 = vmatpush1.xpose.msra.mxu0 0.0
      %1200 = vmatprep.subr.mxu0 0.0
      %1201 = vmatpush1.xpose.msra.mxu0 0.0
      %1202 = vmatprep.subr.mxu0 0.0
      %1203 = vmatpush1.xpose.msra.mxu0 0.0
      %1204 = vmatprep.subr.mxu0 0.0
      %1205 = vmatpush1.xpose.msra.mxu0 0.0
      %1206 = vmatprep.subr.mxu0 0.0
      %1207 = vmatpush1.xpose.msra.mxu0 0.0
      %1208 = vmatprep.subr.mxu0 0.0
      %1209 = vmatpush1.xpose.msra.mxu0 0.0
      %1210 = vmatprep.subr.mxu0 0.0
      %1211 = vmatpush1.xpose.msra.mxu0 0.0
      %1212 = vmatprep.subr.mxu0 0.0
      %1213 = vmatpush1.xpose.msra.mxu0 0.0
      %1214 = vmatprep.subr.mxu0 0.0
      %1215 = vmatpush1.xpose.msra.mxu0 0.0
      %1216 = vmatprep.subr.mxu0 0.0
      %1217 = vmatpush1.xpose.msra.mxu0 0.0
      %1218 = vmatprep.mubr.f32.mxu0 0.0
      %1219 = vmatmul.mubr.f32.gmra.mrb[0].mxu0 %v1146
      %v1220 = vpop.f32.mrb[0].mxu0
      %v1221 = vadd.f32 0.0, %v1220
      %v1222 = vpop.f32.mrb[0].mxu0
      %1223 = vdwg.mxu0
      %v1225 = vsel %vm257, %v818, 0
      %v1228 = vsel %vm257, %v165, 0
      %v1231 = vsel %vm257, %v166, 0
      %1233 = vmatprep.subr.mxu0 0.0
      %1234 = vmatpush1.xpose.msra.mxu0 %v1228
      %1235 = vmatprep.subr.mxu0 0.0
      %1236 = vmatpush1.xpose.msra.mxu0 %v1231
      %1237 = vmatprep.subr.mxu0 0.0
      %1238 = vmatpush1.xpose.msra.mxu0 0.0
      %1239 = vmatprep.subr.mxu0 0.0
      %1240 = vmatpush1.xpose.msra.mxu0 0.0
      %1241 = vmatprep.subr.mxu0 0.0
      %1242 = vmatpush1.xpose.msra.mxu0 0.0
      %1243 = vmatprep.subr.mxu0 0.0
      %1244 = vmatpush1.xpose.msra.mxu0 0.0
      %1245 = vmatprep.subr.mxu0 0.0
      %1246 = vmatpush1.xpose.msra.mxu0 0.0
      %1247 = vmatprep.subr.mxu0 0.0
      %1248 = vmatpush1.xpose.msra.mxu0 0.0
      %1249 = vmatprep.subr.mxu0 0.0
      %1250 = vmatpush1.xpose.msra.mxu0 0.0
      %1251 = vmatprep.subr.mxu0 0.0
      %1252 = vmatpush1.xpose.msra.mxu0 0.0
      %1253 = vmatprep.subr.mxu0 0.0
      %1254 = vmatpush1.xpose.msra.mxu0 0.0
      %1255 = vmatprep.subr.mxu0 0.0
      %1256 = vmatpush1.xpose.msra.mxu0 0.0
      %1257 = vmatprep.subr.mxu0 0.0
      %1258 = vmatpush1.xpose.msra.mxu0 0.0
      %1259 = vmatprep.subr.mxu0 0.0
      %1260 = vmatpush1.xpose.msra.mxu0 0.0
      %1261 = vmatprep.subr.mxu0 0.0
      %1262 = vmatpush1.xpose.msra.mxu0 0.0
      %1263 = vmatprep.subr.mxu0 0.0
      %1264 = vmatpush1.xpose.msra.mxu0 0.0
      %1265 = vmatprep.subr.mxu0 0.0
      %1266 = vmatpush1.xpose.msra.mxu0 0.0
      %1267 = vmatprep.subr.mxu0 0.0
      %1268 = vmatpush1.xpose.msra.mxu0 0.0
      %1269 = vmatprep.subr.mxu0 0.0
      %1270 = vmatpush1.xpose.msra.mxu0 0.0
      %1271 = vmatprep.subr.mxu0 0.0
      %1272 = vmatpush1.xpose.msra.mxu0 0.0
      %1273 = vmatprep.subr.mxu0 0.0
      %1274 = vmatpush1.xpose.msra.mxu0 0.0
      %1275 = vmatprep.subr.mxu0 0.0
      %1276 = vmatpush1.xpose.msra.mxu0 0.0
      %1277 = vmatprep.subr.mxu0 0.0
      %1278 = vmatpush1.xpose.msra.mxu0 0.0
      %1279 = vmatprep.subr.mxu0 0.0
      %1280 = vmatpush1.xpose.msra.mxu0 0.0
      %1281 = vmatprep.subr.mxu0 0.0
      %1282 = vmatpush1.xpose.msra.mxu0 0.0
      %1283 = vmatprep.subr.mxu0 0.0
      %1284 = vmatpush1.xpose.msra.mxu0 0.0
      %1285 = vmatprep.subr.mxu0 0.0
      %1286 = vmatpush1.xpose.msra.mxu0 0.0
      %1287 = vmatprep.subr.mxu0 0.0
      %1288 = vmatpush1.xpose.msra.mxu0 0.0
      %1289 = vmatprep.subr.mxu0 0.0
      %1290 = vmatpush1.xpose.msra.mxu0 0.0
      %1291 = vmatprep.subr.mxu0 0.0
      %1292 = vmatpush1.xpose.msra.mxu0 0.0
      %1293 = vmatprep.subr.mxu0 0.0
      %1294 = vmatpush1.xpose.msra.mxu0 0.0
      %1295 = vmatprep.subr.mxu0 0.0
      %1296 = vmatpush1.xpose.msra.mxu0 0.0
      %1297 = vmatprep.mubr.f32.mxu0 0.0
      %1298 = vmatmul.mubr.f32.gmra.mrb[0].mxu0 %v1225
      %v1299 = vpop.f32.mrb[0].mxu0
      %v1300 = vadd.f32 0.0, %v1299
      %v1301 = vpop.f32.mrb[0].mxu0
      %1302 = vdwg.mxu0
      %v1304 = vsel %vm257, %v819, 0
      %v1307 = vsel %vm257, %v167, 0
      %v1310 = vsel %vm257, %v168, 0
      %1312 = vmatprep.subr.mxu0 0.0
      %1313 = vmatpush1.xpose.msra.mxu0 %v1307
      %1314 = vmatprep.subr.mxu0 0.0
      %1315 = vmatpush1.xpose.msra.mxu0 %v1310
      %1316 = vmatprep.subr.mxu0 0.0
      %1317 = vmatpush1.xpose.msra.mxu0 0.0
      %1318 = vmatprep.subr.mxu0 0.0
      %1319 = vmatpush1.xpose.msra.mxu0 0.0
      %1320 = vmatprep.subr.mxu0 0.0
      %1321 = vmatpush1.xpose.msra.mxu0 0.0
      %1322 = vmatprep.subr.mxu0 0.0
      %1323 = vmatpush1.xpose.msra.mxu0 0.0
      %1324 = vmatprep.subr.mxu0 0.0
      %1325 = vmatpush1.xpose.msra.mxu0 0.0
      %1326 = vmatprep.subr.mxu0 0.0
      %1327 = vmatpush1.xpose.msra.mxu0 0.0
      %1328 = vmatprep.subr.mxu0 0.0
      %1329 = vmatpush1.xpose.msra.mxu0 0.0
      %1330 = vmatprep.subr.mxu0 0.0
      %1331 = vmatpush1.xpose.msra.mxu0 0.0
      %1332 = vmatprep.subr.mxu0 0.0
      %1333 = vmatpush1.xpose.msra.mxu0 0.0
      %1334 = vmatprep.subr.mxu0 0.0
      %1335 = vmatpush1.xpose.msra.mxu0 0.0
      %1336 = vmatprep.subr.mxu0 0.0
      %1337 = vmatpush1.xpose.msra.mxu0 0.0
      %1338 = vmatprep.subr.mxu0 0.0
      %1339 = vmatpush1.xpose.msra.mxu0 0.0
      %1340 = vmatprep.subr.mxu0 0.0
      %1341 = vmatpush1.xpose.msra.mxu0 0.0
      %1342 = vmatprep.subr.mxu0 0.0
      %1343 = vmatpush1.xpose.msra.mxu0 0.0
      %1344 = vmatprep.subr.mxu0 0.0
      %1345 = vmatpush1.xpose.msra.mxu0 0.0
      %1346 = vmatprep.subr.mxu0 0.0
      %1347 = vmatpush1.xpose.msra.mxu0 0.0
      %1348 = vmatprep.subr.mxu0 0.0
      %1349 = vmatpush1.xpose.msra.mxu0 0.0
      %1350 = vmatprep.subr.mxu0 0.0
      %1351 = vmatpush1.xpose.msra.mxu0 0.0
      %1352 = vmatprep.subr.mxu0 0.0
      %1353 = vmatpush1.xpose.msra.mxu0 0.0
      %1354 = vmatprep.subr.mxu0 0.0
      %1355 = vmatpush1.xpose.msra.mxu0 0.0
      %1356 = vmatprep.subr.mxu0 0.0
      %1357 = vmatpush1.xpose.msra.mxu0 0.0
      %1358 = vmatprep.subr.mxu0 0.0
      %1359 = vmatpush1.xpose.msra.mxu0 0.0
      %1360 = vmatprep.subr.mxu0 0.0
      %1361 = vmatpush1.xpose.msra.mxu0 0.0
      %1362 = vmatprep.subr.mxu0 0.0
      %1363 = vmatpush1.xpose.msra.mxu0 0.0
      %1364 = vmatprep.subr.mxu0 0.0
      %1365 = vmatpush1.xpose.msra.mxu0 0.0
      %1366 = vmatprep.subr.mxu0 0.0
      %1367 = vmatpush1.xpose.msra.mxu0 0.0
      %1368 = vmatprep.subr.mxu0 0.0
      %1369 = vmatpush1.xpose.msra.mxu0 0.0
      %1370 = vmatprep.subr.mxu0 0.0
      %1371 = vmatpush1.xpose.msra.mxu0 0.0
      %1372 = vmatprep.subr.mxu0 0.0
      %1373 = vmatpush1.xpose.msra.mxu0 0.0
      %1374 = vmatprep.subr.mxu0 0.0
      %1375 = vmatpush1.xpose.msra.mxu0 0.0
      %1376 = vmatprep.mubr.f32.mxu0 0.0
      %1377 = vmatmul.mubr.f32.gmra.mrb[0].mxu0 %v1304
      %v1378 = vpop.f32.mrb[0].mxu0
      %v1379 = vadd.f32 0.0, %v1378
      %v1380 = vpop.f32.mrb[0].mxu0
      %1381 = vdwg.mxu0
      %v1383 = vsel %vm257, %v820, 0
      %v1386 = vsel %vm257, %v169, 0
      %v1389 = vsel %vm257, %v170, 0
      %1391 = vmatprep.subr.mxu0 0.0
      %1392 = vmatpush1.xpose.msra.mxu0 %v1386
      %1393 = vmatprep.subr.mxu0 0.0
      %1394 = vmatpush1.xpose.msra.mxu0 %v1389
      %1395 = vmatprep.subr.mxu0 0.0
      %1396 = vmatpush1.xpose.msra.mxu0 0.0
      %1397 = vmatprep.subr.mxu0 0.0
      %1398 = vmatpush1.xpose.msra.mxu0 0.0
      %1399 = vmatprep.subr.mxu0 0.0
      %1400 = vmatpush1.xpose.msra.mxu0 0.0
      %1401 = vmatprep.subr.mxu0 0.0
      %1402 = vmatpush1.xpose.msra.mxu0 0.0
      %1403 = vmatprep.subr.mxu0 0.0
      %1404 = vmatpush1.xpose.msra.mxu0 0.0
      %1405 = vmatprep.subr.mxu0 0.0
      %1406 = vmatpush1.xpose.msra.mxu0 0.0
      %1407 = vmatprep.subr.mxu0 0.0
      %1408 = vmatpush1.xpose.msra.mxu0 0.0
      %1409 = vmatprep.subr.mxu0 0.0
      %1410 = vmatpush1.xpose.msra.mxu0 0.0
      %1411 = vmatprep.subr.mxu0 0.0
      %1412 = vmatpush1.xpose.msra.mxu0 0.0
      %1413 = vmatprep.subr.mxu0 0.0
      %1414 = vmatpush1.xpose.msra.mxu0 0.0
      %1415 = vmatprep.subr.mxu0 0.0
      %1416 = vmatpush1.xpose.msra.mxu0 0.0
      %1417 = vmatprep.subr.mxu0 0.0
      %1418 = vmatpush1.xpose.msra.mxu0 0.0
      %1419 = vmatprep.subr.mxu0 0.0
      %1420 = vmatpush1.xpose.msra.mxu0 0.0
      %1421 = vmatprep.subr.mxu0 0.0
      %1422 = vmatpush1.xpose.msra.mxu0 0.0
      %1423 = vmatprep.subr.mxu0 0.0
      %1424 = vmatpush1.xpose.msra.mxu0 0.0
      %1425 = vmatprep.subr.mxu0 0.0
      %1426 = vmatpush1.xpose.msra.mxu0 0.0
      %1427 = vmatprep.subr.mxu0 0.0
      %1428 = vmatpush1.xpose.msra.mxu0 0.0
      %1429 = vmatprep.subr.mxu0 0.0
      %1430 = vmatpush1.xpose.msra.mxu0 0.0
      %1431 = vmatprep.subr.mxu0 0.0
      %1432 = vmatpush1.xpose.msra.mxu0 0.0
      %1433 = vmatprep.subr.mxu0 0.0
      %1434 = vmatpush1.xpose.msra.mxu0 0.0
      %1435 = vmatprep.subr.mxu0 0.0
      %1436 = vmatpush1.xpose.msra.mxu0 0.0
      %1437 = vmatprep.subr.mxu0 0.0
      %1438 = vmatpush1.xpose.msra.mxu0 0.0
      %1439 = vmatprep.subr.mxu0 0.0
      %1440 = vmatpush1.xpose.msra.mxu0 0.0
      %1441 = vmatprep.subr.mxu0 0.0
      %1442 = vmatpush1.xpose.msra.mxu0 0.0
      %1443 = vmatprep.subr.mxu0 0.0
      %1444 = vmatpush1.xpose.msra.mxu0 0.0
      %1445 = vmatprep.subr.mxu0 0.0
      %1446 = vmatpush1.xpose.msra.mxu0 0.0
      %1447 = vmatprep.subr.mxu0 0.0
      %1448 = vmatpush1.xpose.msra.mxu0 0.0
      %1449 = vmatprep.subr.mxu0 0.0
      %1450 = vmatpush1.xpose.msra.mxu0 0.0
      %1451 = vmatprep.subr.mxu0 0.0
      %1452 = vmatpush1.xpose.msra.mxu0 0.0
      %1453 = vmatprep.subr.mxu0 0.0
      %1454 = vmatpush1.xpose.msra.mxu0 0.0
      %1455 = vmatprep.mubr.f32.mxu0 0.0
      %1456 = vmatmul.mubr.f32.gmra.mrb[0].mxu0 %v1383
      %v1457 = vpop.f32.mrb[0].mxu0
      %v1458 = vadd.f32 0.0, %v1457
      %v1459 = vpop.f32.mrb[0].mxu0
      %1460 = vdwg.mxu0
      %v1462 = vsel %vm257, %v821, 0
      %v1465 = vsel %vm257, %v171, 0
      %v1468 = vsel %vm257, %v172, 0
      %1470 = vmatprep.subr.mxu0 0.0
      %1471 = vmatpush1.xpose.msra.mxu0 %v1465
      %1472 = vmatprep.subr.mxu0 0.0
      %1473 = vmatpush1.xpose.msra.mxu0 %v1468
      %1474 = vmatprep.subr.mxu0 0.0
      %1475 = vmatpush1.xpose.msra.mxu0 0.0
      %1476 = vmatprep.subr.mxu0 0.0
      %1477 = vmatpush1.xpose.msra.mxu0 0.0
      %1478 = vmatprep.subr.mxu0 0.0
      %1479 = vmatpush1.xpose.msra.mxu0 0.0
      %1480 = vmatprep.subr.mxu0 0.0
      %1481 = vmatpush1.xpose.msra.mxu0 0.0
      %1482 = vmatprep.subr.mxu0 0.0
      %1483 = vmatpush1.xpose.msra.mxu0 0.0
      %1484 = vmatprep.subr.mxu0 0.0
      %1485 = vmatpush1.xpose.msra.mxu0 0.0
      %1486 = vmatprep.subr.mxu0 0.0
      %1487 = vmatpush1.xpose.msra.mxu0 0.0
      %1488 = vmatprep.subr.mxu0 0.0
      %1489 = vmatpush1.xpose.msra.mxu0 0.0
      %1490 = vmatprep.subr.mxu0 0.0
      %1491 = vmatpush1.xpose.msra.mxu0 0.0
      %1492 = vmatprep.subr.mxu0 0.0
      %1493 = vmatpush1.xpose.msra.mxu0 0.0
      %1494 = vmatprep.subr.mxu0 0.0
      %1495 = vmatpush1.xpose.msra.mxu0 0.0
      %1496 = vmatprep.subr.mxu0 0.0
      %1497 = vmatpush1.xpose.msra.mxu0 0.0
      %1498 = vmatprep.subr.mxu0 0.0
      %1499 = vmatpush1.xpose.msra.mxu0 0.0
      %1500 = vmatprep.subr.mxu0 0.0
      %1501 = vmatpush1.xpose.msra.mxu0 0.0
      %1502 = vmatprep.subr.mxu0 0.0
      %1503 = vmatpush1.xpose.msra.mxu0 0.0
      %1504 = vmatprep.subr.mxu0 0.0
      %1505 = vmatpush1.xpose.msra.mxu0 0.0
      %1506 = vmatprep.subr.mxu0 0.0
      %1507 = vmatpush1.xpose.msra.mxu0 0.0
      %1508 = vmatprep.subr.mxu0 0.0
      %1509 = vmatpush1.xpose.msra.mxu0 0.0
      %1510 = vmatprep.subr.mxu0 0.0
      %1511 = vmatpush1.xpose.msra.mxu0 0.0
      %1512 = vmatprep.subr.mxu0 0.0
      %1513 = vmatpush1.xpose.msra.mxu0 0.0
      %1514 = vmatprep.subr.mxu0 0.0
      %1515 = vmatpush1.xpose.msra.mxu0 0.0
      %1516 = vmatprep.subr.mxu0 0.0
      %1517 = vmatpush1.xpose.msra.mxu0 0.0
      %1518 = vmatprep.subr.mxu0 0.0
      %1519 = vmatpush1.xpose.msra.mxu0 0.0
      %1520 = vmatprep.subr.mxu0 0.0
      %1521 = vmatpush1.xpose.msra.mxu0 0.0
      %1522 = vmatprep.subr.mxu0 0.0
      %1523 = vmatpush1.xpose.msra.mxu0 0.0
      %1524 = vmatprep.subr.mxu0 0.0
      %1525 = vmatpush1.xpose.msra.mxu0 0.0
      %1526 = vmatprep.subr.mxu0 0.0
      %1527 = vmatpush1.xpose.msra.mxu0 0.0
      %1528 = vmatprep.subr.mxu0 0.0
      %1529 = vmatpush1.xpose.msra.mxu0 0.0
      %1530 = vmatprep.subr.mxu0 0.0
      %1531 = vmatpush1.xpose.msra.mxu0 0.0
      %1532 = vmatprep.subr.mxu0 0.0
      %1533 = vmatpush1.xpose.msra.mxu0 0.0
      %1534 = vmatprep.mubr.f32.mxu0 0.0
      %1535 = vmatmul.mubr.f32.gmra.mrb[0].mxu0 %v1462
      %v1536 = vpop.f32.mrb[0].mxu0
      %v1537 = vadd.f32 0.0, %v1536
      %v1538 = vpop.f32.mrb[0].mxu0
      %1539 = vdwg.mxu0
      %v1541 = vsel %vm257, %v822, 0
      %v1544 = vsel %vm257, %v173, 0
      %v1547 = vsel %vm257, %v174, 0
      %1549 = vmatprep.subr.mxu0 0.0
      %1550 = vmatpush1.xpose.msra.mxu0 %v1544
      %1551 = vmatprep.subr.mxu0 0.0
      %1552 = vmatpush1.xpose.msra.mxu0 %v1547
      %1553 = vmatprep.subr.mxu0 0.0
      %1554 = vmatpush1.xpose.msra.mxu0 0.0
      %1555 = vmatprep.subr.mxu0 0.0
      %1556 = vmatpush1.xpose.msra.mxu0 0.0
      %1557 = vmatprep.subr.mxu0 0.0
      %1558 = vmatpush1.xpose.msra.mxu0 0.0
      %1559 = vmatprep.subr.mxu0 0.0
      %1560 = vmatpush1.xpose.msra.mxu0 0.0
      %1561 = vmatprep.subr.mxu0 0.0
      %1562 = vmatpush1.xpose.msra.mxu0 0.0
      %1563 = vmatprep.subr.mxu0 0.0
      %1564 = vmatpush1.xpose.msra.mxu0 0.0
      %1565 = vmatprep.subr.mxu0 0.0
      %1566 = vmatpush1.xpose.msra.mxu0 0.0
      %1567 = vmatprep.subr.mxu0 0.0
      %1568 = vmatpush1.xpose.msra.mxu0 0.0
      %1569 = vmatprep.subr.mxu0 0.0
      %1570 = vmatpush1.xpose.msra.mxu0 0.0
      %1571 = vmatprep.subr.mxu0 0.0
      %1572 = vmatpush1.xpose.msra.mxu0 0.0
      %1573 = vmatprep.subr.mxu0 0.0
      %1574 = vmatpush1.xpose.msra.mxu0 0.0
      %1575 = vmatprep.subr.mxu0 0.0
      %1576 = vmatpush1.xpose.msra.mxu0 0.0
      %1577 = vmatprep.subr.mxu0 0.0
      %1578 = vmatpush1.xpose.msra.mxu0 0.0
      %1579 = vmatprep.subr.mxu0 0.0
      %1580 = vmatpush1.xpose.msra.mxu0 0.0
      %1581 = vmatprep.subr.mxu0 0.0
      %1582 = vmatpush1.xpose.msra.mxu0 0.0
      %1583 = vmatprep.subr.mxu0 0.0
      %1584 = vmatpush1.xpose.msra.mxu0 0.0
      %1585 = vmatprep.subr.mxu0 0.0
      %1586 = vmatpush1.xpose.msra.mxu0 0.0
      %1587 = vmatprep.subr.mxu0 0.0
      %1588 = vmatpush1.xpose.msra.mxu0 0.0
      %1589 = vmatprep.subr.mxu0 0.0
      %1590 = vmatpush1.xpose.msra.mxu0 0.0
      %1591 = vmatprep.subr.mxu0 0.0
      %1592 = vmatpush1.xpose.msra.mxu0 0.0
      %1593 = vmatprep.subr.mxu0 0.0
      %1594 = vmatpush1.xpose.msra.mxu0 0.0
      %1595 = vmatprep.subr.mxu0 0.0
      %1596 = vmatpush1.xpose.msra.mxu0 0.0
      %1597 = vmatprep.subr.mxu0 0.0
      %1598 = vmatpush1.xpose.msra.mxu0 0.0
      %1599 = vmatprep.subr.mxu0 0.0
      %1600 = vmatpush1.xpose.msra.mxu0 0.0
      %1601 = vmatprep.subr.mxu0 0.0
      %1602 = vmatpush1.xpose.msra.mxu0 0.0
      %1603 = vmatprep.subr.mxu0 0.0
      %1604 = vmatpush1.xpose.msra.mxu0 0.0
      %1605 = vmatprep.subr.mxu0 0.0
      %1606 = vmatpush1.xpose.msra.mxu0 0.0
      %1607 = vmatprep.subr.mxu0 0.0
      %1608 = vmatpush1.xpose.msra.mxu0 0.0
      %1609 = vmatprep.subr.mxu0 0.0
      %1610 = vmatpush1.xpose.msra.mxu0 0.0
      %1611 = vmatprep.subr.mxu0 0.0
      %1612 = vmatpush1.xpose.msra.mxu0 0.0
      %1613 = vmatprep.mubr.f32.mxu0 0.0
      %1614 = vmatmul.mubr.f32.gmra.mrb[0].mxu0 %v1541
      %v1615 = vpop.f32.mrb[0].mxu0
      %v1616 = vadd.f32 0.0, %v1615
      %v1617 = vpop.f32.mrb[0].mxu0
      %1618 = vdwg.mxu0
      %v1620 = vsel %vm257, %v823, 0
      %v1623 = vsel %vm257, %v175, 0
      %v1626 = vsel %vm257, %v176, 0
      %1628 = vmatprep.subr.mxu0 0.0
      %1629 = vmatpush1.xpose.msra.mxu0 %v1623
      %1630 = vmatprep.subr.mxu0 0.0
      %1631 = vmatpush1.xpose.msra.mxu0 %v1626
      %1632 = vmatprep.subr.mxu0 0.0
      %1633 = vmatpush1.xpose.msra.mxu0 0.0
      %1634 = vmatprep.subr.mxu0 0.0
      %1635 = vmatpush1.xpose.msra.mxu0 0.0
      %1636 = vmatprep.subr.mxu0 0.0
      %1637 = vmatpush1.xpose.msra.mxu0 0.0
      %1638 = vmatprep.subr.mxu0 0.0
      %1639 = vmatpush1.xpose.msra.mxu0 0.0
      %1640 = vmatprep.subr.mxu0 0.0
      %1641 = vmatpush1.xpose.msra.mxu0 0.0
      %1642 = vmatprep.subr.mxu0 0.0
      %1643 = vmatpush1.xpose.msra.mxu0 0.0
      %1644 = vmatprep.subr.mxu0 0.0
      %1645 = vmatpush1.xpose.msra.mxu0 0.0
      %1646 = vmatprep.subr.mxu0 0.0
      %1647 = vmatpush1.xpose.msra.mxu0 0.0
      %1648 = vmatprep.subr.mxu0 0.0
      %1649 = vmatpush1.xpose.msra.mxu0 0.0
      %1650 = vmatprep.subr.mxu0 0.0
      %1651 = vmatpush1.xpose.msra.mxu0 0.0
      %1652 = vmatprep.subr.mxu0 0.0
      %1653 = vmatpush1.xpose.msra.mxu0 0.0
      %1654 = vmatprep.subr.mxu0 0.0
      %1655 = vmatpush1.xpose.msra.mxu0 0.0
      %1656 = vmatprep.subr.mxu0 0.0
      %1657 = vmatpush1.xpose.msra.mxu0 0.0
      %1658 = vmatprep.subr.mxu0 0.0
      %1659 = vmatpush1.xpose.msra.mxu0 0.0
      %1660 = vmatprep.subr.mxu0 0.0
      %1661 = vmatpush1.xpose.msra.mxu0 0.0
      %1662 = vmatprep.subr.mxu0 0.0
      %1663 = vmatpush1.xpose.msra.mxu0 0.0
      %1664 = vmatprep.subr.mxu0 0.0
      %1665 = vmatpush1.xpose.msra.mxu0 0.0
      %1666 = vmatprep.subr.mxu0 0.0
      %1667 = vmatpush1.xpose.msra.mxu0 0.0
      %1668 = vmatprep.subr.mxu0 0.0
      %1669 = vmatpush1.xpose.msra.mxu0 0.0
      %1670 = vmatprep.subr.mxu0 0.0
      %1671 = vmatpush1.xpose.msra.mxu0 0.0
      %1672 = vmatprep.subr.mxu0 0.0
      %1673 = vmatpush1.xpose.msra.mxu0 0.0
      %1674 = vmatprep.subr.mxu0 0.0
      %1675 = vmatpush1.xpose.msra.mxu0 0.0
      %1676 = vmatprep.subr.mxu0 0.0
      %1677 = vmatpush1.xpose.msra.mxu0 0.0
      %1678 = vmatprep.subr.mxu0 0.0
      %1679 = vmatpush1.xpose.msra.mxu0 0.0
      %1680 = vmatprep.subr.mxu0 0.0
      %1681 = vmatpush1.xpose.msra.mxu0 0.0
      %1682 = vmatprep.subr.mxu0 0.0
      %1683 = vmatpush1.xpose.msra.mxu0 0.0
      %1684 = vmatprep.subr.mxu0 0.0
      %1685 = vmatpush1.xpose.msra.mxu0 0.0
      %1686 = vmatprep.subr.mxu0 0.0
      %1687 = vmatpush1.xpose.msra.mxu0 0.0
      %1688 = vmatprep.subr.mxu0 0.0
      %1689 = vmatpush1.xpose.msra.mxu0 0.0
      %1690 = vmatprep.subr.mxu0 0.0
      %1691 = vmatpush1.xpose.msra.mxu0 0.0
      %1692 = vmatprep.mubr.f32.mxu0 0.0
      %1693 = vmatmul.mubr.f32.gmra.mrb[0].mxu0 %v1620
      %v1694 = vpop.f32.mrb[0].mxu0
      %v1695 = vadd.f32 0.0, %v1694
      %v1696 = vpop.f32.mrb[0].mxu0
      %1697 = vdwg.mxu0
      %v1698 = vmul.f32 %v816, %v816
      %v1699 = vmul.f32 %v817, %v817
      %v1700 = vmul.f32 %v818, %v818
      %v1701 = vmul.f32 %v819, %v819
      %v1702 = vmul.f32 %v820, %v820
      %v1703 = vmul.f32 %v821, %v821
      %v1704 = vmul.f32 %v822, %v822
      %v1705 = vmul.f32 %v823, %v823
      %vm1706 = vcmask 58368
      %v1707 = vsel %vm1706, %v1698, 0.0
      %1708 = vadd.xlane.f32.xlu0 %v1707
      %v1709 = vpop.xlane.xlu0 %1708
      %v1710 = vsel %vm1706, %v1699, 0.0
      %1711 = vadd.xlane.f32.xlu0 %v1710
      %v1712 = vpop.xlane.xlu0 %1711
      %v1713 = vsel %vm1706, %v1700, 0.0
      %1714 = vadd.xlane.f32.xlu0 %v1713
      %v1715 = vpop.xlane.xlu0 %1714
      %v1716 = vsel %vm1706, %v1701, 0.0
      %1717 = vadd.xlane.f32.xlu0 %v1716
      %v1718 = vpop.xlane.xlu0 %1717
      %v1719 = vsel %vm1706, %v1702, 0.0
      %1720 = vadd.xlane.f32.xlu0 %v1719
      %v1721 = vpop.xlane.xlu0 %1720
      %v1722 = vsel %vm1706, %v1703, 0.0
      %1723 = vadd.xlane.f32.xlu0 %v1722
      %v1724 = vpop.xlane.xlu0 %1723
      %v1725 = vsel %vm1706, %v1704, 0.0
      %1726 = vadd.xlane.f32.xlu0 %v1725
      %v1727 = vpop.xlane.xlu0 %1726
      %v1728 = vsel %vm1706, %v1705, 0.0
      %1729 = vadd.xlane.f32.xlu0 %v1728
      %v1730 = vpop.xlane.xlu0 %1729
      %v1731 = vrsqrt.pop %v1709
      %v1732 = vmul.f32 %v1709, %v1731
      %vm1733 = vcmp.eq.f32.partialorder %v1709, inf
      %v1734 = vsel %vm1733, %v1709, %v1732
      %vm1735 = vcmp.eq.f32.partialorder %v1709, 0.0
      %v1736 = vand.u32 %v1709, 2147483648
      %v1737 = vsel %vm1735, %v1736, %v1734
      %v1738 = vrsqrt.pop %v1712
      %v1739 = vmul.f32 %v1712, %v1738
      %vm1740 = vcmp.eq.f32.partialorder %v1712, inf
      %v1741 = vsel %vm1740, %v1712, %v1739
      %vm1742 = vcmp.eq.f32.partialorder %v1712, 0.0
      %v1743 = vand.u32 %v1712, 2147483648
      %v1744 = vsel %vm1742, %v1743, %v1741
      %v1745 = vrsqrt.pop %v1715
      %v1746 = vmul.f32 %v1715, %v1745
      %vm1747 = vcmp.eq.f32.partialorder %v1715, inf
      %v1748 = vsel %vm1747, %v1715, %v1746
      %vm1749 = vcmp.eq.f32.partialorder %v1715, 0.0
      %v1750 = vand.u32 %v1715, 2147483648
      %v1751 = vsel %vm1749, %v1750, %v1748
      %v1752 = vrsqrt.pop %v1718
      %v1753 = vmul.f32 %v1718, %v1752
      %vm1754 = vcmp.eq.f32.partialorder %v1718, inf
      %v1755 = vsel %vm1754, %v1718, %v1753
      %vm1756 = vcmp.eq.f32.partialorder %v1718, 0.0
      %v1757 = vand.u32 %v1718, 2147483648
      %v1758 = vsel %vm1756, %v1757, %v1755
      %v1759 = vrsqrt.pop %v1721
      %v1760 = vmul.f32 %v1721, %v1759
      %vm1761 = vcmp.eq.f32.partialorder %v1721, inf
      %v1762 = vsel %vm1761, %v1721, %v1760
      %vm1763 = vcmp.eq.f32.partialorder %v1721, 0.0
      %v1764 = vand.u32 %v1721, 2147483648
      %v1765 = vsel %vm1763, %v1764, %v1762
      %v1766 = vrsqrt.pop %v1724
      %v1767 = vmul.f32 %v1724, %v1766
      %vm1768 = vcmp.eq.f32.partialorder %v1724, inf
      %v1769 = vsel %vm1768, %v1724, %v1767
      %vm1770 = vcmp.eq.f32.partialorder %v1724, 0.0
      %v1771 = vand.u32 %v1724, 2147483648
      %v1772 = vsel %vm1770, %v1771, %v1769
      %v1773 = vrsqrt.pop %v1727
      %v1774 = vmul.f32 %v1727, %v1773
      %vm1775 = vcmp.eq.f32.partialorder %v1727, inf
      %v1776 = vsel %vm1775, %v1727, %v1774
      %vm1777 = vcmp.eq.f32.partialorder %v1727, 0.0
      %v1778 = vand.u32 %v1727, 2147483648
      %v1779 = vsel %vm1777, %v1778, %v1776
      %v1780 = vrsqrt.pop %v1730
      %v1781 = vmul.f32 %v1730, %v1780
      %vm1782 = vcmp.eq.f32.partialorder %v1730, inf
      %v1783 = vsel %vm1782, %v1730, %v1781
      %vm1784 = vcmp.eq.f32.partialorder %v1730, 0.0
      %v1785 = vand.u32 %v1730, 2147483648
      %v1786 = vsel %vm1784, %v1785, %v1783
      %v1803 = vlaneseq
      %v1804 = vand.u32 %v1803, 127
      %v1805 = vlaneseq
      %v1806 = vshrl.u32 %v1805, 7
      %v1807 = vsub.s32 %v1804, %v1806
      %v1808 = vrot.slane %v595, %v1807
      %v1809 = vadd.s32 %v1804, 4294967288
      %v1810 = vlaneseq
      %v1811 = vshrl.u32 %v1810, 7
      %v1812 = vsub.s32 %v1809, %v1811
      %v1813 = vrot.slane %v602, %v1812
      %vm1814 = vcmask 130112
      %v1815 = vsel %vm1814, %v1813, %v1808
      %v1816 = vlaneseq
      %v1817 = vshrl.u32 %v1816, 7
      %v1818 = vsub.s32 %v1804, %v1817
      %v1819 = vrot.slane %v609, %v1818
      %v1820 = vlaneseq
      %v1821 = vshrl.u32 %v1820, 7
      %v1822 = vsub.s32 %v1809, %v1821
      %v1823 = vrot.slane %v616, %v1822
      %v1824 = vsel %vm1814, %v1823, %v1819
      %v1825 = vlaneseq
      %v1826 = vshrl.u32 %v1825, 7
      %v1827 = vsub.s32 %v1804, %v1826
      %v1828 = vrot.slane %v623, %v1827
      %v1829 = vlaneseq
      %v1830 = vshrl.u32 %v1829, 7
      %v1831 = vsub.s32 %v1809, %v1830
      %v1832 = vrot.slane %v630, %v1831
      %v1833 = vsel %vm1814, %v1832, %v1828
      %v1834 = vlaneseq
      %v1835 = vshrl.u32 %v1834, 7
      %v1836 = vsub.s32 %v1804, %v1835
      %v1837 = vrot.slane %v637, %v1836
      %v1838 = vlaneseq
      %v1839 = vshrl.u32 %v1838, 7
      %v1840 = vsub.s32 %v1809, %v1839
      %v1841 = vrot.slane %v644, %v1840
      %v1842 = vsel %vm1814, %v1841, %v1837
      %v1843 = vlaneseq
      %v1844 = vshrl.u32 %v1843, 7
      %v1845 = vsub.s32 %v1804, %v1844
      %v1846 = vrot.slane %v651, %v1845
      %v1847 = vlaneseq
      %v1848 = vshrl.u32 %v1847, 7
      %v1849 = vsub.s32 %v1809, %v1848
      %v1850 = vrot.slane %v658, %v1849
      %v1851 = vsel %vm1814, %v1850, %v1846
      %v1852 = vlaneseq
      %v1853 = vshrl.u32 %v1852, 7
      %v1854 = vsub.s32 %v1804, %v1853
      %v1855 = vrot.slane %v665, %v1854
      %v1856 = vlaneseq
      %v1857 = vshrl.u32 %v1856, 7
      %v1858 = vsub.s32 %v1809, %v1857
      %v1859 = vrot.slane %v672, %v1858
      %v1860 = vsel %vm1814, %v1859, %v1855
      %v1861 = vlaneseq
      %v1862 = vshrl.u32 %v1861, 7
      %v1863 = vsub.s32 %v1804, %v1862
      %v1864 = vrot.slane %v679, %v1863
      %v1865 = vlaneseq
      %v1866 = vshrl.u32 %v1865, 7
      %v1867 = vsub.s32 %v1809, %v1866
      %v1868 = vrot.slane %v686, %v1867
      %v1869 = vsel %vm1814, %v1868, %v1864
      %v1870 = vlaneseq
      %v1871 = vshrl.u32 %v1870, 7
      %v1872 = vsub.s32 %v1804, %v1871
      %v1873 = vrot.slane %v693, %v1872
      %v1874 = vlaneseq
      %v1875 = vshrl.u32 %v1874, 7
      %v1876 = vsub.s32 %v1809, %v1875
      %v1877 = vrot.slane %v700, %v1876
      %v1878 = vsel %vm1814, %v1877, %v1873
      %vm1879 = vcmask 1041409
      %v1888 = vmul.f32 %v1737, %v1815
      %v1889 = vmul.f32 %v1744, %v1824
      %v1890 = vmul.f32 %v1751, %v1833
      %v1891 = vmul.f32 %v1758, %v1842
      %v1892 = vmul.f32 %v1765, %v1851
      %v1893 = vmul.f32 %v1772, %v1860
      %v1894 = vmul.f32 %v1779, %v1869
      %v1895 = vmul.f32 %v1786, %v1878
      %v1896 = vmax.f32 %v1888, 1e-08
      %v1897 = vmax.f32 %v1889, 1e-08
      %v1898 = vmax.f32 %v1890, 1e-08
      %v1899 = vmax.f32 %v1891, 1e-08
      %v1900 = vmax.f32 %v1892, 1e-08
      %v1901 = vmax.f32 %v1893, 1e-08
      %v1902 = vmax.f32 %v1894, 1e-08
      %v1903 = vmax.f32 %v1895, 1e-08
      %v1904 = vrcp.pop %v1896
      %v1905 = vmul.f32 %v1142, %v1904
      %v1906 = vrcp.pop %v1897
      %v1907 = vmul.f32 %v1221, %v1906
      %v1908 = vrcp.pop %v1898
      %v1909 = vmul.f32 %v1300, %v1908
      %v1910 = vrcp.pop %v1899
      %v1911 = vmul.f32 %v1379, %v1910
      %v1912 = vrcp.pop %v1900
      %v1913 = vmul.f32 %v1458, %v1912
      %v1914 = vrcp.pop %v1901
      %v1915 = vmul.f32 %v1537, %v1914
      %v1916 = vrcp.pop %v1902
      %v1917 = vmul.f32 %v1616, %v1916
      %v1918 = vrcp.pop %v1903
      %v1919 = vmul.f32 %v1695, %v1918
      %1921 = vset.pattern.permute.xlu0 8
      %1922 = vperm.xlu0 %1921, %v888
      %v1923 = vpop.permute.xlu0 %1922
      %1926 = vset.pattern.permute.xlu0 8
      %1927 = vperm.xlu0 %1926, %v889
      %v1928 = vpop.permute.xlu0 %1927
      %1931 = vset.pattern.permute.xlu0 8
      %1932 = vperm.xlu0 %1931, %v890
      %v1933 = vpop.permute.xlu0 %1932
      %1936 = vset.pattern.permute.xlu0 8
      %1937 = vperm.xlu0 %1936, %v891
      %v1938 = vpop.permute.xlu0 %1937
      %1941 = vset.pattern.permute.xlu0 8
      %1942 = vperm.xlu0 %1941, %v892
      %v1943 = vpop.permute.xlu0 %1942
      %1946 = vset.pattern.permute.xlu0 8
      %1947 = vperm.xlu0 %1946, %v893
      %v1948 = vpop.permute.xlu0 %1947
      %1951 = vset.pattern.permute.xlu0 8
      %1952 = vperm.xlu0 %1951, %v894
      %v1953 = vpop.permute.xlu0 %1952
      %1956 = vset.pattern.permute.xlu0 8
      %1957 = vperm.xlu0 %1956, %v895
      %v1958 = vpop.permute.xlu0 %1957
      %v1960 = vmul.f32 %v1923, %v1905
      %v1961 = vmul.f32 %v1928, %v1907
      %v1962 = vmul.f32 %v1933, %v1909
      %v1963 = vmul.f32 %v1938, %v1911
      %v1964 = vmul.f32 %v1943, %v1913
      %v1965 = vmul.f32 %v1948, %v1915
      %v1966 = vmul.f32 %v1953, %v1917
      %v1967 = vmul.f32 %v1958, %v1919
      %vm1968 = vcmask 123904
      %v1969 = vsel %vm1968, %v1960, -inf
      %1970 = vmax.xlane.f32.xlu0 %v1969
      %v1971 = vpop.xlane.xlu0 %1970
      %v1972 = vsel %vm1968, %v1961, -inf
      %1973 = vmax.xlane.f32.xlu0 %v1972
      %v1974 = vpop.xlane.xlu0 %1973
      %v1975 = vsel %vm1968, %v1962, -inf
      %1976 = vmax.xlane.f32.xlu0 %v1975
      %v1977 = vpop.xlane.xlu0 %1976
      %v1978 = vsel %vm1968, %v1963, -inf
      %1979 = vmax.xlane.f32.xlu0 %v1978
      %v1980 = vpop.xlane.xlu0 %1979
      %v1981 = vsel %vm1968, %v1964, -inf
      %1982 = vmax.xlane.f32.xlu0 %v1981
      %v1983 = vpop.xlane.xlu0 %1982
      %v1984 = vsel %vm1968, %v1965, -inf
      %1985 = vmax.xlane.f32.xlu0 %v1984
      %v1986 = vpop.xlane.xlu0 %1985
      %v1987 = vsel %vm1968, %v1966, -inf
      %1988 = vmax.xlane.f32.xlu0 %v1987
      %v1989 = vpop.xlane.xlu0 %1988
      %v1990 = vsel %vm1968, %v1967, -inf
      %1991 = vmax.xlane.f32.xlu0 %v1990
      %v1992 = vpop.xlane.xlu0 %1991
      %v1993 = vsub.f32 %v1960, %v1971
      %v1994 = vsub.f32 %v1961, %v1974
      %v1995 = vsub.f32 %v1962, %v1977
      %v1996 = vsub.f32 %v1963, %v1980
      %v1997 = vsub.f32 %v1964, %v1983
      %v1998 = vsub.f32 %v1965, %v1986
      %v1999 = vsub.f32 %v1966, %v1989
      %v2000 = vsub.f32 %v1967, %v1992
      %v2001 = vmul.f32 %v1993, 1.442695
      %v2002 = vpow.pop %v2001
      %v2003 = vmul.f32 %v1994, 1.442695
      %v2004 = vpow.pop %v2003
      %v2005 = vmul.f32 %v1995, 1.442695
      %v2006 = vpow.pop %v2005
      %v2007 = vmul.f32 %v1996, 1.442695
      %v2008 = vpow.pop %v2007
      %v2009 = vmul.f32 %v1997, 1.442695
      %v2010 = vpow.pop %v2009
      %v2011 = vmul.f32 %v1998, 1.442695
      %v2012 = vpow.pop %v2011
      %v2013 = vmul.f32 %v1999, 1.442695
      %v2014 = vpow.pop %v2013
      %v2015 = vmul.f32 %v2000, 1.442695
      %v2016 = vpow.pop %v2015
      %v2017 = vsel %vm1968, %v2002, 0.0
      %2018 = vadd.xlane.f32.xlu0 %v2017
      %v2019 = vpop.xlane.xlu0 %2018
      %v2020 = vsel %vm1968, %v2004, 0.0
      %2021 = vadd.xlane.f32.xlu0 %v2020
      %v2022 = vpop.xlane.xlu0 %2021
      %v2023 = vsel %vm1968, %v2006, 0.0
      %2024 = vadd.xlane.f32.xlu0 %v2023
      %v2025 = vpop.xlane.xlu0 %2024
      %v2026 = vsel %vm1968, %v2008, 0.0
      %2027 = vadd.xlane.f32.xlu0 %v2026
      %v2028 = vpop.xlane.xlu0 %2027
      %v2029 = vsel %vm1968, %v2010, 0.0
      %2030 = vadd.xlane.f32.xlu0 %v2029
      %v2031 = vpop.xlane.xlu0 %2030
      %v2032 = vsel %vm1968, %v2012, 0.0
      %2033 = vadd.xlane.f32.xlu0 %v2032
      %v2034 = vpop.xlane.xlu0 %2033
      %v2035 = vsel %vm1968, %v2014, 0.0
      %2036 = vadd.xlane.f32.xlu0 %v2035
      %v2037 = vpop.xlane.xlu0 %2036
      %v2038 = vsel %vm1968, %v2016, 0.0
      %2039 = vadd.xlane.f32.xlu0 %v2038
      %v2040 = vpop.xlane.xlu0 %2039
      %v2041 = vrcp.pop %v2019
      %v2042 = vmul.f32 %v2002, %v2041
      %v2043 = vrcp.pop %v2022
      %v2044 = vmul.f32 %v2004, %v2043
      %v2045 = vrcp.pop %v2025
      %v2046 = vmul.f32 %v2006, %v2045
      %v2047 = vrcp.pop %v2028
      %v2048 = vmul.f32 %v2008, %v2047
      %v2049 = vrcp.pop %v2031
      %v2050 = vmul.f32 %v2010, %v2049
      %v2051 = vrcp.pop %v2034
      %v2052 = vmul.f32 %v2012, %v2051
      %v2053 = vrcp.pop %v2037
      %v2054 = vmul.f32 %v2014, %v2053
      %v2055 = vrcp.pop %v2040
      %v2056 = vmul.f32 %v2016, %v2055
      %v2058 = vcombine.high %v177, %v177
      %v2060 = vunpack.c.l.s4 1966171168
      %v2061 = vunpack.c.0.s8 %v2060
      %v2062 = vlaneseq
      %v2063 = vshrl.u32 %v2062, 7
      %v2064 = vsub.s32 %v2061, %v2063
      %v2065 = vrot.slane %v177, %v2064
      %v2067 = vunpack.c.l.s4 1966171168
      %v2068 = vunpack.c.0.s8 %v2067
      %v2069 = vlaneseq
      %v2070 = vshrl.u32 %v2069, 7
      %v2071 = vsub.s32 %v2068, %v2070
      %v2072 = vrot.slane %v2058, %v2071
      %v2073 = vcombine.high %v2065, %v2065
      %v2074 = vcombine.high %v2072, %v2072
      %v2076 = vunpack.c.l.s4 1966171168
      %v2077 = vunpack.c.0.s8 %v2076
      %v2078 = vlaneseq
      %v2079 = vshrl.u32 %v2078, 7
      %v2080 = vsub.s32 %v2077, %v2079
      %v2081 = vrot.slane %v2065, %v2080
      %v2083 = vunpack.c.l.s4 1966171168
      %v2084 = vunpack.c.0.s8 %v2083
      %v2085 = vlaneseq
      %v2086 = vshrl.u32 %v2085, 7
      %v2087 = vsub.s32 %v2084, %v2086
      %v2088 = vrot.slane %v2072, %v2087
      %v2090 = vunpack.c.l.s4 1966171168
      %v2091 = vunpack.c.0.s8 %v2090
      %v2092 = vlaneseq
      %v2093 = vshrl.u32 %v2092, 7
      %v2094 = vsub.s32 %v2091, %v2093
      %v2095 = vrot.slane %v2073, %v2094
      %v2097 = vunpack.c.l.s4 1966171168
      %v2098 = vunpack.c.0.s8 %v2097
      %v2099 = vlaneseq
      %v2100 = vshrl.u32 %v2099, 7
      %v2101 = vsub.s32 %v2098, %v2100
      %v2102 = vrot.slane %v2074, %v2101
      %v2103 = vcombine.high %v2081, %v2081
      %v2104 = vcombine.high %v2088, %v2088
      %v2105 = vcombine.high %v2095, %v2095
      %v2106 = vcombine.high %v2102, %v2102
      %v2116 = vcombine.high %v178, %v178
      %v2118 = vunpack.c.l.s4 1966171168
      %v2119 = vunpack.c.0.s8 %v2118
      %v2120 = vlaneseq
      %v2121 = vshrl.u32 %v2120, 7
      %v2122 = vsub.s32 %v2119, %v2121
      %v2123 = vrot.slane %v178, %v2122
      %v2125 = vunpack.c.l.s4 1966171168
      %v2126 = vunpack.c.0.s8 %v2125
      %v2127 = vlaneseq
      %v2128 = vshrl.u32 %v2127, 7
      %v2129 = vsub.s32 %v2126, %v2128
      %v2130 = vrot.slane %v2116, %v2129
      %v2131 = vcombine.high %v2123, %v2123
      %v2132 = vcombine.high %v2130, %v2130
      %v2134 = vunpack.c.l.s4 1966171168
      %v2135 = vunpack.c.0.s8 %v2134
      %v2136 = vlaneseq
      %v2137 = vshrl.u32 %v2136, 7
      %v2138 = vsub.s32 %v2135, %v2137
      %v2139 = vrot.slane %v2123, %v2138
      %v2141 = vunpack.c.l.s4 1966171168
      %v2142 = vunpack.c.0.s8 %v2141
      %v2143 = vlaneseq
      %v2144 = vshrl.u32 %v2143, 7
      %v2145 = vsub.s32 %v2142, %v2144
      %v2146 = vrot.slane %v2130, %v2145
      %v2148 = vunpack.c.l.s4 1966171168
      %v2149 = vunpack.c.0.s8 %v2148
      %v2150 = vlaneseq
      %v2151 = vshrl.u32 %v2150, 7
      %v2152 = vsub.s32 %v2149, %v2151
      %v2153 = vrot.slane %v2131, %v2152
      %v2155 = vunpack.c.l.s4 1966171168
      %v2156 = vunpack.c.0.s8 %v2155
      %v2157 = vlaneseq
      %v2158 = vshrl.u32 %v2157, 7
      %v2159 = vsub.s32 %v2156, %v2158
      %v2160 = vrot.slane %v2132, %v2159
      %v2161 = vcombine.high %v2139, %v2139
      %v2162 = vcombine.high %v2146, %v2146
      %v2163 = vcombine.high %v2153, %v2153
      %v2164 = vcombine.high %v2160, %v2160
      %v2165 = vlaneseq
      %v2166 = vshrl.u32 %v2165, 7
      %v2167 = vsub.s32 0, %v2166
      %v2168 = vrot.slane %v2139, %v2167
      %v2169 = vlaneseq
      %v2170 = vshrl.u32 %v2169, 7
      %v2171 = vsub.s32 0, %v2170
      %v2172 = vrot.slane %v2153, %v2171
      %v2173 = vlaneseq
      %v2174 = vshrl.u32 %v2173, 7
      %v2175 = vsub.s32 0, %v2174
      %v2176 = vrot.slane %v2161, %v2175
      %v2177 = vlaneseq
      %v2178 = vshrl.u32 %v2177, 7
      %v2179 = vsub.s32 0, %v2178
      %v2180 = vrot.slane %v2163, %v2179
      %v2181 = vlaneseq
      %v2182 = vshrl.u32 %v2181, 7
      %v2183 = vsub.s32 0, %v2182
      %v2184 = vrot.slane %v2146, %v2183
      %v2185 = vlaneseq
      %v2186 = vshrl.u32 %v2185, 7
      %v2187 = vsub.s32 0, %v2186
      %v2188 = vrot.slane %v2160, %v2187
      %v2189 = vlaneseq
      %v2190 = vshrl.u32 %v2189, 7
      %v2191 = vsub.s32 0, %v2190
      %v2192 = vrot.slane %v2162, %v2191
      %v2193 = vlaneseq
      %v2194 = vshrl.u32 %v2193, 7
      %v2195 = vsub.s32 0, %v2194
      %v2196 = vrot.slane %v2164, %v2195
      %v2205 = vsel %vm815, %v2081, %v2168
      %v2206 = vsel %vm815, %v2095, %v2172
      %v2207 = vsel %vm815, %v2103, %v2176
      %v2208 = vsel %vm815, %v2105, %v2180
      %v2209 = vsel %vm815, %v2088, %v2184
      %v2210 = vsel %vm815, %v2102, %v2188
      %v2211 = vsel %vm815, %v2104, %v2192
      %v2212 = vsel %vm815, %v2106, %v2196
      %2214 = vset.pattern.permute.xlu0 9
      %2215 = vperm.xlu0 %2214, %v928
      %v2216 = vpop.permute.xlu0 %2215
      %2219 = vset.pattern.permute.xlu0 9
      %2220 = vperm.xlu0 %2219, %v929
      %v2221 = vpop.permute.xlu0 %2220
      %2224 = vset.pattern.permute.xlu0 9
      %2225 = vperm.xlu0 %2224, %v930
      %v2226 = vpop.permute.xlu0 %2225
      %2229 = vset.pattern.permute.xlu0 9
      %2230 = vperm.xlu0 %2229, %v931
      %v2231 = vpop.permute.xlu0 %2230
      %2234 = vset.pattern.permute.xlu0 9
      %2235 = vperm.xlu0 %2234, %v932
      %v2236 = vpop.permute.xlu0 %2235
      %2239 = vset.pattern.permute.xlu0 9
      %2240 = vperm.xlu0 %2239, %v933
      %v2241 = vpop.permute.xlu0 %2240
      %2244 = vset.pattern.permute.xlu0 9
      %2245 = vperm.xlu0 %2244, %v934
      %v2246 = vpop.permute.xlu0 %2245
      %2249 = vset.pattern.permute.xlu0 9
      %2250 = vperm.xlu0 %2249, %v935
      %v2251 = vpop.permute.xlu0 %2250
      %v2253 = vmul.f32 %v2216, %v2042
      %v2254 = vmul.f32 %v2221, %v2044
      %v2255 = vmul.f32 %v2226, %v2046
      %v2256 = vmul.f32 %v2231, %v2048
      %v2257 = vmul.f32 %v2236, %v2050
      %v2258 = vmul.f32 %v2241, %v2052
      %v2259 = vmul.f32 %v2246, %v2054
      %v2260 = vmul.f32 %v2251, %v2056
      %v2261 = vsub.f32 1.0, %v928
      %v2262 = vsub.f32 1.0, %v929
      %v2263 = vsub.f32 1.0, %v930
      %v2264 = vsub.f32 1.0, %v931
      %v2265 = vsub.f32 1.0, %v932
      %v2266 = vsub.f32 1.0, %v933
      %v2267 = vsub.f32 1.0, %v934
      %v2268 = vsub.f32 1.0, %v935
      %2270 = vset.pattern.permute.xlu0 9
      %2271 = vperm.xlu0 %2270, %v2261
      %v2272 = vpop.permute.xlu0 %2271
      %2275 = vset.pattern.permute.xlu0 9
      %2276 = vperm.xlu0 %2275, %v2262
      %v2277 = vpop.permute.xlu0 %2276
      %2280 = vset.pattern.permute.xlu0 9
      %2281 = vperm.xlu0 %2280, %v2263
      %v2282 = vpop.permute.xlu0 %2281
      %2285 = vset.pattern.permute.xlu0 9
      %2286 = vperm.xlu0 %2285, %v2264
      %v2287 = vpop.permute.xlu0 %2286
      %2290 = vset.pattern.permute.xlu0 9
      %2291 = vperm.xlu0 %2290, %v2265
      %v2292 = vpop.permute.xlu0 %2291
      %2295 = vset.pattern.permute.xlu0 9
      %2296 = vperm.xlu0 %2295, %v2266
      %v2297 = vpop.permute.xlu0 %2296
      %2300 = vset.pattern.permute.xlu0 9
      %2301 = vperm.xlu0 %2300, %v2267
      %v2302 = vpop.permute.xlu0 %2301
      %2305 = vset.pattern.permute.xlu0 9
      %2306 = vperm.xlu0 %2305, %v2268
      %v2307 = vpop.permute.xlu0 %2306
      %v2309 = vmul.f32 %v2272, %v2205
      %v2310 = vmul.f32 %v2277, %v2206
      %v2311 = vmul.f32 %v2282, %v2207
      %v2312 = vmul.f32 %v2287, %v2208
      %v2313 = vmul.f32 %v2292, %v2209
      %v2314 = vmul.f32 %v2297, %v2210
      %v2315 = vmul.f32 %v2302, %v2211
      %v2316 = vmul.f32 %v2307, %v2212
      %v2317 = vadd.f32 %v2253, %v2309
      %v2318 = vadd.f32 %v2254, %v2310
      %v2319 = vadd.f32 %v2255, %v2311
      %v2320 = vadd.f32 %v2256, %v2312
      %v2321 = vadd.f32 %v2257, %v2313
      %v2322 = vadd.f32 %v2258, %v2314
      %v2323 = vadd.f32 %v2259, %v2315
      %v2324 = vadd.f32 %v2260, %v2316
      %2333 = vrot.lane.b32.xlu0 %v2317, 113
      %v2334 = vpop.permute.xlu0 %2333
      %2335 = vrot.lane.b32.xlu0 %v2318, 113
      %v2336 = vpop.permute.xlu0 %2335
      %2337 = vrot.lane.b32.xlu0 %v2319, 113
      %v2338 = vpop.permute.xlu0 %2337
      %2339 = vrot.lane.b32.xlu0 %v2320, 113
      %v2340 = vpop.permute.xlu0 %2339
      %2341 = vrot.lane.b32.xlu0 %v2321, 113
      %v2342 = vpop.permute.xlu0 %2341
      %2343 = vrot.lane.b32.xlu0 %v2322, 113
      %v2344 = vpop.permute.xlu0 %2343
      %2345 = vrot.lane.b32.xlu0 %v2323, 113
      %v2346 = vpop.permute.xlu0 %2345
      %2347 = vrot.lane.b32.xlu0 %v2324, 113
      %v2348 = vpop.permute.xlu0 %2347
      %2357 = vrot.lane.b32.xlu0 %v2317, 1
      %v2358 = vpop.permute.xlu0 %2357
      %2359 = vrot.lane.b32.xlu0 %v2318, 1
      %v2360 = vpop.permute.xlu0 %2359
      %2361 = vrot.lane.b32.xlu0 %v2319, 1
      %v2362 = vpop.permute.xlu0 %2361
      %2363 = vrot.lane.b32.xlu0 %v2320, 1
      %v2364 = vpop.permute.xlu0 %2363
      %2365 = vrot.lane.b32.xlu0 %v2321, 1
      %v2366 = vpop.permute.xlu0 %2365
      %2367 = vrot.lane.b32.xlu0 %v2322, 1
      %v2368 = vpop.permute.xlu0 %2367
      %2369 = vrot.lane.b32.xlu0 %v2323, 1
      %v2370 = vpop.permute.xlu0 %2369
      %2371 = vrot.lane.b32.xlu0 %v2324, 1
      %v2372 = vpop.permute.xlu0 %2371
      %vm2381 = vcmask 7168
      %v2382 = vsel %vm2381, %v2334, %v2358
      %v2383 = vsel %vm2381, %v2336, %v2360
      %v2384 = vsel %vm2381, %v2338, %v2362
      %v2385 = vsel %vm2381, %v2340, %v2364
      %v2386 = vsel %vm2381, %v2342, %v2366
      %v2387 = vsel %vm2381, %v2344, %v2368
      %v2388 = vsel %vm2381, %v2346, %v2370
      %v2389 = vsel %vm2381, %v2348, %v2372
      %2390 = vrot.lane.b32.xlu0 %v2317, 127
      %v2391 = vpop.permute.xlu0 %2390
      %2392 = vrot.lane.b32.xlu0 %v2318, 127
      %v2393 = vpop.permute.xlu0 %2392
      %2394 = vrot.lane.b32.xlu0 %v2319, 127
      %v2395 = vpop.permute.xlu0 %2394
      %2396 = vrot.lane.b32.xlu0 %v2320, 127
      %v2397 = vpop.permute.xlu0 %2396
      %2398 = vrot.lane.b32.xlu0 %v2321, 127
      %v2399 = vpop.permute.xlu0 %2398
      %2400 = vrot.lane.b32.xlu0 %v2322, 127
      %v2401 = vpop.permute.xlu0 %2400
      %2402 = vrot.lane.b32.xlu0 %v2323, 127
      %v2403 = vpop.permute.xlu0 %2402
      %2404 = vrot.lane.b32.xlu0 %v2324, 127
      %v2405 = vpop.permute.xlu0 %2404
      %2414 = vrot.lane.b32.xlu0 %v2317, 15
      %v2415 = vpop.permute.xlu0 %2414
      %2416 = vrot.lane.b32.xlu0 %v2318, 15
      %v2417 = vpop.permute.xlu0 %2416
      %2418 = vrot.lane.b32.xlu0 %v2319, 15
      %v2419 = vpop.permute.xlu0 %2418
      %2420 = vrot.lane.b32.xlu0 %v2320, 15
      %v2421 = vpop.permute.xlu0 %2420
      %2422 = vrot.lane.b32.xlu0 %v2321, 15
      %v2423 = vpop.permute.xlu0 %2422
      %2424 = vrot.lane.b32.xlu0 %v2322, 15
      %v2425 = vpop.permute.xlu0 %2424
      %2426 = vrot.lane.b32.xlu0 %v2323, 15
      %v2427 = vpop.permute.xlu0 %2426
      %2428 = vrot.lane.b32.xlu0 %v2324, 15
      %v2429 = vpop.permute.xlu0 %2428
      %vm2438 = vcmask 121856
      %v2439 = vsel %vm2438, %v2391, %v2415
      %v2440 = vsel %vm2438, %v2393, %v2417
      %v2441 = vsel %vm2438, %v2395, %v2419
      %v2442 = vsel %vm2438, %v2397, %v2421
      %v2443 = vsel %vm2438, %v2399, %v2423
      %v2444 = vsel %vm2438, %v2401, %v2425
      %v2445 = vsel %vm2438, %v2403, %v2427
      %v2446 = vsel %vm2438, %v2405, %v2429
      %2448 = vset.pattern.permute.xlu0 10
      %2449 = vperm.xlu0 %2448, %v1043
      %v2450 = vpop.permute.xlu0 %2449
      %2453 = vset.pattern.permute.xlu0 10
      %2454 = vperm.xlu0 %2453, %v1045
      %v2455 = vpop.permute.xlu0 %2454
      %2458 = vset.pattern.permute.xlu0 10
      %2459 = vperm.xlu0 %2458, %v1047
      %v2460 = vpop.permute.xlu0 %2459
      %2463 = vset.pattern.permute.xlu0 10
      %2464 = vperm.xlu0 %2463, %v1049
      %v2465 = vpop.permute.xlu0 %2464
      %2468 = vset.pattern.permute.xlu0 10
      %2469 = vperm.xlu0 %2468, %v1051
      %v2470 = vpop.permute.xlu0 %2469
      %2473 = vset.pattern.permute.xlu0 10
      %2474 = vperm.xlu0 %2473, %v1053
      %v2475 = vpop.permute.xlu0 %2474
      %2478 = vset.pattern.permute.xlu0 10
      %2479 = vperm.xlu0 %2478, %v1055
      %v2480 = vpop.permute.xlu0 %2479
      %2483 = vset.pattern.permute.xlu0 10
      %2484 = vperm.xlu0 %2483, %v1057
      %v2485 = vpop.permute.xlu0 %2484
      %v2487 = vmul.f32 %v2450, %v2382
      %v2488 = vmul.f32 %v2455, %v2383
      %v2489 = vmul.f32 %v2460, %v2384
      %v2490 = vmul.f32 %v2465, %v2385
      %v2491 = vmul.f32 %v2470, %v2386
      %v2492 = vmul.f32 %v2475, %v2387
      %v2493 = vmul.f32 %v2480, %v2388
      %v2494 = vmul.f32 %v2485, %v2389
      %2495 = vset.pattern.permute.xlu0 11
      %2496 = vperm.xlu0 %2495, %v1043
      %v2497 = vpop.permute.xlu0 %2496
      %2499 = vset.pattern.permute.xlu0 11
      %2500 = vperm.xlu0 %2499, %v1045
      %v2501 = vpop.permute.xlu0 %2500
      %2503 = vset.pattern.permute.xlu0 11
      %2504 = vperm.xlu0 %2503, %v1047
      %v2505 = vpop.permute.xlu0 %2504
      %2507 = vset.pattern.permute.xlu0 11
      %2508 = vperm.xlu0 %2507, %v1049
      %v2509 = vpop.permute.xlu0 %2508
      %2511 = vset.pattern.permute.xlu0 11
      %2512 = vperm.xlu0 %2511, %v1051
      %v2513 = vpop.permute.xlu0 %2512
      %2515 = vset.pattern.permute.xlu0 11
      %2516 = vperm.xlu0 %2515, %v1053
      %v2517 = vpop.permute.xlu0 %2516
      %2519 = vset.pattern.permute.xlu0 11
      %2520 = vperm.xlu0 %2519, %v1055
      %v2521 = vpop.permute.xlu0 %2520
      %2523 = vset.pattern.permute.xlu0 11
      %2524 = vperm.xlu0 %2523, %v1057
      %v2525 = vpop.permute.xlu0 %2524
      %v2527 = vmul.f32 %v2497, %v2317
      %v2528 = vmul.f32 %v2501, %v2318
      %v2529 = vmul.f32 %v2505, %v2319
      %v2530 = vmul.f32 %v2509, %v2320
      %v2531 = vmul.f32 %v2513, %v2321
      %v2532 = vmul.f32 %v2517, %v2322
      %v2533 = vmul.f32 %v2521, %v2323
      %v2534 = vmul.f32 %v2525, %v2324
      %v2535 = vadd.f32 %v2487, %v2527
      %v2536 = vadd.f32 %v2488, %v2528
      %v2537 = vadd.f32 %v2489, %v2529
      %v2538 = vadd.f32 %v2490, %v2530
      %v2539 = vadd.f32 %v2491, %v2531
      %v2540 = vadd.f32 %v2492, %v2532
      %v2541 = vadd.f32 %v2493, %v2533
      %v2542 = vadd.f32 %v2494, %v2534
      %2543 = vset.pattern.permute.xlu0 12
      %2544 = vperm.xlu0 %2543, %v1043
      %v2545 = vpop.permute.xlu0 %2544
      %2547 = vset.pattern.permute.xlu0 12
      %2548 = vperm.xlu0 %2547, %v1045
      %v2549 = vpop.permute.xlu0 %2548
      %2551 = vset.pattern.permute.xlu0 12
      %2552 = vperm.xlu0 %2551, %v1047
      %v2553 = vpop.permute.xlu0 %2552
      %2555 = vset.pattern.permute.xlu0 12
      %2556 = vperm.xlu0 %2555, %v1049
      %v2557 = vpop.permute.xlu0 %2556
      %2559 = vset.pattern.permute.xlu0 12
      %2560 = vperm.xlu0 %2559, %v1051
      %v2561 = vpop.permute.xlu0 %2560
      %2563 = vset.pattern.permute.xlu0 12
      %2564 = vperm.xlu0 %2563, %v1053
      %v2565 = vpop.permute.xlu0 %2564
      %2567 = vset.pattern.permute.xlu0 12
      %2568 = vperm.xlu0 %2567, %v1055
      %v2569 = vpop.permute.xlu0 %2568
      %2571 = vset.pattern.permute.xlu0 12
      %2572 = vperm.xlu0 %2571, %v1057
      %v2573 = vpop.permute.xlu0 %2572
      %v2575 = vmul.f32 %v2545, %v2439
      %v2576 = vmul.f32 %v2549, %v2440
      %v2577 = vmul.f32 %v2553, %v2441
      %v2578 = vmul.f32 %v2557, %v2442
      %v2579 = vmul.f32 %v2561, %v2443
      %v2580 = vmul.f32 %v2565, %v2444
      %v2581 = vmul.f32 %v2569, %v2445
      %v2582 = vmul.f32 %v2573, %v2446
      %v2583 = vadd.f32 %v2535, %v2575
      %v2584 = vadd.f32 %v2536, %v2576
      %v2585 = vadd.f32 %v2537, %v2577
      %v2586 = vadd.f32 %v2538, %v2578
      %v2587 = vadd.f32 %v2539, %v2579
      %v2588 = vadd.f32 %v2540, %v2580
      %v2589 = vadd.f32 %v2541, %v2581
      %v2590 = vadd.f32 %v2542, %v2582
      %v2591 = vmax.f32 %v2583, 1e-30
      %v2592 = vmax.f32 %v2584, 1e-30
      %v2593 = vmax.f32 %v2585, 1e-30
      %v2594 = vmax.f32 %v2586, 1e-30
      %v2595 = vmax.f32 %v2587, 1e-30
      %v2596 = vmax.f32 %v2588, 1e-30
      %v2597 = vmax.f32 %v2589, 1e-30
      %v2598 = vmax.f32 %v2590, 1e-30
      %v2599 = vlog2.pop %v2591
      %v2600 = vmul.f32 %v2599, 0.6931472
      %v2601 = vlog2.pop %v2592
      %v2602 = vmul.f32 %v2601, 0.6931472
      %v2603 = vlog2.pop %v2593
      %v2604 = vmul.f32 %v2603, 0.6931472
      %v2605 = vlog2.pop %v2594
      %v2606 = vmul.f32 %v2605, 0.6931472
      %v2607 = vlog2.pop %v2595
      %v2608 = vmul.f32 %v2607, 0.6931472
      %v2609 = vlog2.pop %v2596
      %v2610 = vmul.f32 %v2609, 0.6931472
      %v2611 = vlog2.pop %v2597
      %v2612 = vmul.f32 %v2611, 0.6931472
      %v2613 = vlog2.pop %v2598
      %v2614 = vmul.f32 %v2613, 0.6931472
      %2616 = vset.pattern.permute.xlu0 13
      %2617 = vperm.xlu0 %2616, %v1058
      %v2618 = vpop.permute.xlu0 %2617
      %2621 = vset.pattern.permute.xlu0 13
      %2622 = vperm.xlu0 %2621, %v1059
      %v2623 = vpop.permute.xlu0 %2622
      %2626 = vset.pattern.permute.xlu0 13
      %2627 = vperm.xlu0 %2626, %v1060
      %v2628 = vpop.permute.xlu0 %2627
      %2631 = vset.pattern.permute.xlu0 13
      %2632 = vperm.xlu0 %2631, %v1061
      %v2633 = vpop.permute.xlu0 %2632
      %2636 = vset.pattern.permute.xlu0 13
      %2637 = vperm.xlu0 %2636, %v1062
      %v2638 = vpop.permute.xlu0 %2637
      %2641 = vset.pattern.permute.xlu0 13
      %2642 = vperm.xlu0 %2641, %v1063
      %v2643 = vpop.permute.xlu0 %2642
      %2646 = vset.pattern.permute.xlu0 13
      %2647 = vperm.xlu0 %2646, %v1064
      %v2648 = vpop.permute.xlu0 %2647
      %2651 = vset.pattern.permute.xlu0 13
      %2652 = vperm.xlu0 %2651, %v1065
      %v2653 = vpop.permute.xlu0 %2652
      %v2655 = vmul.f32 %v2618, %v2600
      %v2656 = vmul.f32 %v2623, %v2602
      %v2657 = vmul.f32 %v2628, %v2604
      %v2658 = vmul.f32 %v2633, %v2606
      %v2659 = vmul.f32 %v2638, %v2608
      %v2660 = vmul.f32 %v2643, %v2610
      %v2661 = vmul.f32 %v2648, %v2612
      %v2662 = vmul.f32 %v2653, %v2614
      %v2663 = vmul.f32 %v2655, 1.442695
      %v2664 = vpow.pop %v2663
      %v2665 = vmul.f32 %v2656, 1.442695
      %v2666 = vpow.pop %v2665
      %v2667 = vmul.f32 %v2657, 1.442695
      %v2668 = vpow.pop %v2667
      %v2669 = vmul.f32 %v2658, 1.442695
      %v2670 = vpow.pop %v2669
      %v2671 = vmul.f32 %v2659, 1.442695
      %v2672 = vpow.pop %v2671
      %v2673 = vmul.f32 %v2660, 1.442695
      %v2674 = vpow.pop %v2673
      %v2675 = vmul.f32 %v2661, 1.442695
      %v2676 = vpow.pop %v2675
      %v2677 = vmul.f32 %v2662, 1.442695
      %v2678 = vpow.pop %v2677
      %v2679 = vsel %vm1968, %v2664, 0.0
      %2680 = vadd.xlane.f32.xlu0 %v2679
      %v2681 = vpop.xlane.xlu0 %2680
      %v2682 = vsel %vm1968, %v2666, 0.0
      %2683 = vadd.xlane.f32.xlu0 %v2682
      %v2684 = vpop.xlane.xlu0 %2683
      %v2685 = vsel %vm1968, %v2668, 0.0
      %2686 = vadd.xlane.f32.xlu0 %v2685
      %v2687 = vpop.xlane.xlu0 %2686
      %v2688 = vsel %vm1968, %v2670, 0.0
      %2689 = vadd.xlane.f32.xlu0 %v2688
      %v2690 = vpop.xlane.xlu0 %2689
      %v2691 = vsel %vm1968, %v2672, 0.0
      %2692 = vadd.xlane.f32.xlu0 %v2691
      %v2693 = vpop.xlane.xlu0 %2692
      %v2694 = vsel %vm1968, %v2674, 0.0
      %2695 = vadd.xlane.f32.xlu0 %v2694
      %v2696 = vpop.xlane.xlu0 %2695
      %v2697 = vsel %vm1968, %v2676, 0.0
      %2698 = vadd.xlane.f32.xlu0 %v2697
      %v2699 = vpop.xlane.xlu0 %2698
      %v2700 = vsel %vm1968, %v2678, 0.0
      %2701 = vadd.xlane.f32.xlu0 %v2700
      %v2702 = vpop.xlane.xlu0 %2701
      %v2703 = vadd.f32 %v2681, 1e-16
      %v2704 = vadd.f32 %v2684, 1e-16
      %v2705 = vadd.f32 %v2687, 1e-16
      %v2706 = vadd.f32 %v2690, 1e-16
      %v2707 = vadd.f32 %v2693, 1e-16
      %v2708 = vadd.f32 %v2696, 1e-16
      %v2709 = vadd.f32 %v2699, 1e-16
      %v2710 = vadd.f32 %v2702, 1e-16
      %v2711 = vrcp.pop %v2703
      %v2712 = vmul.f32 %v2664, %v2711
      %v2713 = vrcp.pop %v2704
      %v2714 = vmul.f32 %v2666, %v2713
      %v2715 = vrcp.pop %v2705
      %v2716 = vmul.f32 %v2668, %v2715
      %v2717 = vrcp.pop %v2706
      %v2718 = vmul.f32 %v2670, %v2717
      %v2719 = vrcp.pop %v2707
      %v2720 = vmul.f32 %v2672, %v2719
      %v2721 = vrcp.pop %v2708
      %v2722 = vmul.f32 %v2674, %v2721
      %v2723 = vrcp.pop %v2709
      %v2724 = vmul.f32 %v2676, %v2723
      %v2725 = vrcp.pop %v2710
      %v2726 = vmul.f32 %v2678, %v2725
      %vm2727 = vcmask 130048
      %v2729 = vsel %vm2727, %v2712, 0
      %2731 = vmatprep.subr.mxu0 0.0
      %2732 = vmatpush1.msra.mxu0 %v161
      %2733 = vmatprep.subr.mxu0 0.0
      %2734 = vmatpush1.msra.mxu0 %v162
      %2735 = vmatprep.subr.mxu0 0.0
      %2736 = vmatpush1.msra.mxu0 0.0
      %2737 = vmatprep.subr.mxu0 0.0
      %2738 = vmatpush1.msra.mxu0 0.0
      %2739 = vmatprep.subr.mxu0 0.0
      %2740 = vmatpush1.msra.mxu0 0.0
      %2741 = vmatprep.subr.mxu0 0.0
      %2742 = vmatpush1.msra.mxu0 0.0
      %2743 = vmatprep.subr.mxu0 0.0
      %2744 = vmatpush1.msra.mxu0 0.0
      %2745 = vmatprep.subr.mxu0 0.0
      %2746 = vmatpush1.msra.mxu0 0.0
      %2747 = vmatprep.subr.mxu0 0.0
      %2748 = vmatpush1.msra.mxu0 0.0
      %2749 = vmatprep.subr.mxu0 0.0
      %2750 = vmatpush1.msra.mxu0 0.0
      %2751 = vmatprep.subr.mxu0 0.0
      %2752 = vmatpush1.msra.mxu0 0.0
      %2753 = vmatprep.subr.mxu0 0.0
      %2754 = vmatpush1.msra.mxu0 0.0
      %2755 = vmatprep.subr.mxu0 0.0
      %2756 = vmatpush1.msra.mxu0 0.0
      %2757 = vmatprep.subr.mxu0 0.0
      %2758 = vmatpush1.msra.mxu0 0.0
      %2759 = vmatprep.subr.mxu0 0.0
      %2760 = vmatpush1.msra.mxu0 0.0
      %2761 = vmatprep.subr.mxu0 0.0
      %2762 = vmatpush1.msra.mxu0 0.0
      %2763 = vmatprep.subr.mxu0 0.0
      %2764 = vmatpush1.msra.mxu0 0.0
      %2765 = vmatprep.subr.mxu0 0.0
      %2766 = vmatpush1.msra.mxu0 0.0
      %2767 = vmatprep.subr.mxu0 0.0
      %2768 = vmatpush1.msra.mxu0 0.0
      %2769 = vmatprep.subr.mxu0 0.0
      %2770 = vmatpush1.msra.mxu0 0.0
      %2771 = vmatprep.subr.mxu0 0.0
      %2772 = vmatpush1.msra.mxu0 0.0
      %2773 = vmatprep.subr.mxu0 0.0
      %2774 = vmatpush1.msra.mxu0 0.0
      %2775 = vmatprep.subr.mxu0 0.0
      %2776 = vmatpush1.msra.mxu0 0.0
      %2777 = vmatprep.subr.mxu0 0.0
      %2778 = vmatpush1.msra.mxu0 0.0
      %2779 = vmatprep.subr.mxu0 0.0
      %2780 = vmatpush1.msra.mxu0 0.0
      %2781 = vmatprep.subr.mxu0 0.0
      %2782 = vmatpush1.msra.mxu0 0.0
      %2783 = vmatprep.subr.mxu0 0.0
      %2784 = vmatpush1.msra.mxu0 0.0
      %2785 = vmatprep.subr.mxu0 0.0
      %2786 = vmatpush1.msra.mxu0 0.0
      %2787 = vmatprep.subr.mxu0 0.0
      %2788 = vmatpush1.msra.mxu0 0.0
      %2789 = vmatprep.subr.mxu0 0.0
      %2790 = vmatpush1.msra.mxu0 0.0
      %2791 = vmatprep.subr.mxu0 0.0
      %2792 = vmatpush1.msra.mxu0 0.0
      %2793 = vmatprep.subr.mxu0 0.0
      %2794 = vmatpush1.msra.mxu0 0.0
      %2795 = vmatprep.mubr.f32.mxu0 0.0
      %2796 = vmatmul.mubr.f32.gmra.mrb[0].mxu0 %v2729
      %v2797 = vpop.f32.mrb[0].mxu0
      %v2798 = vadd.f32 0.0, %v2797
      %v2799 = vpop.f32.mrb[0].mxu0
      %2800 = vdwg.mxu0
      %v2802 = vsel %vm2727, %v2714, 0
      %2804 = vmatprep.subr.mxu0 0.0
      %2805 = vmatpush1.msra.mxu0 %v163
      %2806 = vmatprep.subr.mxu0 0.0
      %2807 = vmatpush1.msra.mxu0 %v164
      %2808 = vmatprep.subr.mxu0 0.0
      %2809 = vmatpush1.msra.mxu0 0.0
      %2810 = vmatprep.subr.mxu0 0.0
      %2811 = vmatpush1.msra.mxu0 0.0
      %2812 = vmatprep.subr.mxu0 0.0
      %2813 = vmatpush1.msra.mxu0 0.0
      %2814 = vmatprep.subr.mxu0 0.0
      %2815 = vmatpush1.msra.mxu0 0.0
      %2816 = vmatprep.subr.mxu0 0.0
      %2817 = vmatpush1.msra.mxu0 0.0
      %2818 = vmatprep.subr.mxu0 0.0
      %2819 = vmatpush1.msra.mxu0 0.0
      %2820 = vmatprep.subr.mxu0 0.0
      %2821 = vmatpush1.msra.mxu0 0.0
      %2822 = vmatprep.subr.mxu0 0.0
      %2823 = vmatpush1.msra.mxu0 0.0
      %2824 = vmatprep.subr.mxu0 0.0
      %2825 = vmatpush1.msra.mxu0 0.0
      %2826 = vmatprep.subr.mxu0 0.0
      %2827 = vmatpush1.msra.mxu0 0.0
      %2828 = vmatprep.subr.mxu0 0.0
      %2829 = vmatpush1.msra.mxu0 0.0
      %2830 = vmatprep.subr.mxu0 0.0
      %2831 = vmatpush1.msra.mxu0 0.0
      %2832 = vmatprep.subr.mxu0 0.0
      %2833 = vmatpush1.msra.mxu0 0.0
      %2834 = vmatprep.subr.mxu0 0.0
      %2835 = vmatpush1.msra.mxu0 0.0
      %2836 = vmatprep.subr.mxu0 0.0
      %2837 = vmatpush1.msra.mxu0 0.0
      %2838 = vmatprep.subr.mxu0 0.0
      %2839 = vmatpush1.msra.mxu0 0.0
      %2840 = vmatprep.subr.mxu0 0.0
      %2841 = vmatpush1.msra.mxu0 0.0
      %2842 = vmatprep.subr.mxu0 0.0
      %2843 = vmatpush1.msra.mxu0 0.0
      %2844 = vmatprep.subr.mxu0 0.0
      %2845 = vmatpush1.msra.mxu0 0.0
      %2846 = vmatprep.subr.mxu0 0.0
      %2847 = vmatpush1.msra.mxu0 0.0
      %2848 = vmatprep.subr.mxu0 0.0
      %2849 = vmatpush1.msra.mxu0 0.0
      %2850 = vmatprep.subr.mxu0 0.0
      %2851 = vmatpush1.msra.mxu0 0.0
      %2852 = vmatprep.subr.mxu0 0.0
      %2853 = vmatpush1.msra.mxu0 0.0
      %2854 = vmatprep.subr.mxu0 0.0
      %2855 = vmatpush1.msra.mxu0 0.0
      %2856 = vmatprep.subr.mxu0 0.0
      %2857 = vmatpush1.msra.mxu0 0.0
      %2858 = vmatprep.subr.mxu0 0.0
      %2859 = vmatpush1.msra.mxu0 0.0
      %2860 = vmatprep.subr.mxu0 0.0
      %2861 = vmatpush1.msra.mxu0 0.0
      %2862 = vmatprep.subr.mxu0 0.0
      %2863 = vmatpush1.msra.mxu0 0.0
      %2864 = vmatprep.subr.mxu0 0.0
      %2865 = vmatpush1.msra.mxu0 0.0
      %2866 = vmatprep.subr.mxu0 0.0
      %2867 = vmatpush1.msra.mxu0 0.0
      %2868 = vmatprep.mubr.f32.mxu0 0.0
      %2869 = vmatmul.mubr.f32.gmra.mrb[0].mxu0 %v2802
      %v2870 = vpop.f32.mrb[0].mxu0
      %v2871 = vadd.f32 0.0, %v2870
      %v2872 = vpop.f32.mrb[0].mxu0
      %2873 = vdwg.mxu0
      %v2875 = vsel %vm2727, %v2716, 0
      %2877 = vmatprep.subr.mxu0 0.0
      %2878 = vmatpush1.msra.mxu0 %v165
      %2879 = vmatprep.subr.mxu0 0.0
      %2880 = vmatpush1.msra.mxu0 %v166
      %2881 = vmatprep.subr.mxu0 0.0
      %2882 = vmatpush1.msra.mxu0 0.0
      %2883 = vmatprep.subr.mxu0 0.0
      %2884 = vmatpush1.msra.mxu0 0.0
      %2885 = vmatprep.subr.mxu0 0.0
      %2886 = vmatpush1.msra.mxu0 0.0
      %2887 = vmatprep.subr.mxu0 0.0
      %2888 = vmatpush1.msra.mxu0 0.0
      %2889 = vmatprep.subr.mxu0 0.0
      %2890 = vmatpush1.msra.mxu0 0.0
      %2891 = vmatprep.subr.mxu0 0.0
      %2892 = vmatpush1.msra.mxu0 0.0
      %2893 = vmatprep.subr.mxu0 0.0
      %2894 = vmatpush1.msra.mxu0 0.0
      %2895 = vmatprep.subr.mxu0 0.0
      %2896 = vmatpush1.msra.mxu0 0.0
      %2897 = vmatprep.subr.mxu0 0.0
      %2898 = vmatpush1.msra.mxu0 0.0
      %2899 = vmatprep.subr.mxu0 0.0
      %2900 = vmatpush1.msra.mxu0 0.0
      %2901 = vmatprep.subr.mxu0 0.0
      %2902 = vmatpush1.msra.mxu0 0.0
      %2903 = vmatprep.subr.mxu0 0.0
      %2904 = vmatpush1.msra.mxu0 0.0
      %2905 = vmatprep.subr.mxu0 0.0
      %2906 = vmatpush1.msra.mxu0 0.0
      %2907 = vmatprep.subr.mxu0 0.0
      %2908 = vmatpush1.msra.mxu0 0.0
      %2909 = vmatprep.subr.mxu0 0.0
      %2910 = vmatpush1.msra.mxu0 0.0
      %2911 = vmatprep.subr.mxu0 0.0
      %2912 = vmatpush1.msra.mxu0 0.0
      %2913 = vmatprep.subr.mxu0 0.0
      %2914 = vmatpush1.msra.mxu0 0.0
      %2915 = vmatprep.subr.mxu0 0.0
      %2916 = vmatpush1.msra.mxu0 0.0
      %2917 = vmatprep.subr.mxu0 0.0
      %2918 = vmatpush1.msra.mxu0 0.0
      %2919 = vmatprep.subr.mxu0 0.0
      %2920 = vmatpush1.msra.mxu0 0.0
      %2921 = vmatprep.subr.mxu0 0.0
      %2922 = vmatpush1.msra.mxu0 0.0
      %2923 = vmatprep.subr.mxu0 0.0
      %2924 = vmatpush1.msra.mxu0 0.0
      %2925 = vmatprep.subr.mxu0 0.0
      %2926 = vmatpush1.msra.mxu0 0.0
      %2927 = vmatprep.subr.mxu0 0.0
      %2928 = vmatpush1.msra.mxu0 0.0
      %2929 = vmatprep.subr.mxu0 0.0
      %2930 = vmatpush1.msra.mxu0 0.0
      %2931 = vmatprep.subr.mxu0 0.0
      %2932 = vmatpush1.msra.mxu0 0.0
      %2933 = vmatprep.subr.mxu0 0.0
      %2934 = vmatpush1.msra.mxu0 0.0
      %2935 = vmatprep.subr.mxu0 0.0
      %2936 = vmatpush1.msra.mxu0 0.0
      %2937 = vmatprep.subr.mxu0 0.0
      %2938 = vmatpush1.msra.mxu0 0.0
      %2939 = vmatprep.subr.mxu0 0.0
      %2940 = vmatpush1.msra.mxu0 0.0
      %2941 = vmatprep.mubr.f32.mxu0 0.0
      %2942 = vmatmul.mubr.f32.gmra.mrb[0].mxu0 %v2875
      %v2943 = vpop.f32.mrb[0].mxu0
      %v2944 = vadd.f32 0.0, %v2943
      %v2945 = vpop.f32.mrb[0].mxu0
      %2946 = vdwg.mxu0
      %v2948 = vsel %vm2727, %v2718, 0
      %2950 = vmatprep.subr.mxu0 0.0
      %2951 = vmatpush1.msra.mxu0 %v167
      %2952 = vmatprep.subr.mxu0 0.0
      %2953 = vmatpush1.msra.mxu0 %v168
      %2954 = vmatprep.subr.mxu0 0.0
      %2955 = vmatpush1.msra.mxu0 0.0
      %2956 = vmatprep.subr.mxu0 0.0
      %2957 = vmatpush1.msra.mxu0 0.0
      %2958 = vmatprep.subr.mxu0 0.0
      %2959 = vmatpush1.msra.mxu0 0.0
      %2960 = vmatprep.subr.mxu0 0.0
      %2961 = vmatpush1.msra.mxu0 0.0
      %2962 = vmatprep.subr.mxu0 0.0
      %2963 = vmatpush1.msra.mxu0 0.0
      %2964 = vmatprep.subr.mxu0 0.0
      %2965 = vmatpush1.msra.mxu0 0.0
      %2966 = vmatprep.subr.mxu0 0.0
      %2967 = vmatpush1.msra.mxu0 0.0
      %2968 = vmatprep.subr.mxu0 0.0
      %2969 = vmatpush1.msra.mxu0 0.0
      %2970 = vmatprep.subr.mxu0 0.0
      %2971 = vmatpush1.msra.mxu0 0.0
      %2972 = vmatprep.subr.mxu0 0.0
      %2973 = vmatpush1.msra.mxu0 0.0
      %2974 = vmatprep.subr.mxu0 0.0
      %2975 = vmatpush1.msra.mxu0 0.0
      %2976 = vmatprep.subr.mxu0 0.0
      %2977 = vmatpush1.msra.mxu0 0.0
      %2978 = vmatprep.subr.mxu0 0.0
      %2979 = vmatpush1.msra.mxu0 0.0
      %2980 = vmatprep.subr.mxu0 0.0
      %2981 = vmatpush1.msra.mxu0 0.0
      %2982 = vmatprep.subr.mxu0 0.0
      %2983 = vmatpush1.msra.mxu0 0.0
      %2984 = vmatprep.subr.mxu0 0.0
      %2985 = vmatpush1.msra.mxu0 0.0
      %2986 = vmatprep.subr.mxu0 0.0
      %2987 = vmatpush1.msra.mxu0 0.0
      %2988 = vmatprep.subr.mxu0 0.0
      %2989 = vmatpush1.msra.mxu0 0.0
      %2990 = vmatprep.subr.mxu0 0.0
      %2991 = vmatpush1.msra.mxu0 0.0
      %2992 = vmatprep.subr.mxu0 0.0
      %2993 = vmatpush1.msra.mxu0 0.0
      %2994 = vmatprep.subr.mxu0 0.0
      %2995 = vmatpush1.msra.mxu0 0.0
      %2996 = vmatprep.subr.mxu0 0.0
      %2997 = vmatpush1.msra.mxu0 0.0
      %2998 = vmatprep.subr.mxu0 0.0
      %2999 = vmatpush1.msra.mxu0 0.0
      %3000 = vmatprep.subr.mxu0 0.0
      %3001 = vmatpush1.msra.mxu0 0.0
      %3002 = vmatprep.subr.mxu0 0.0
      %3003 = vmatpush1.msra.mxu0 0.0
      %3004 = vmatprep.subr.mxu0 0.0
      %3005 = vmatpush1.msra.mxu0 0.0
      %3006 = vmatprep.subr.mxu0 0.0
      %3007 = vmatpush1.msra.mxu0 0.0
      %3008 = vmatprep.subr.mxu0 0.0
      %3009 = vmatpush1.msra.mxu0 0.0
      %3010 = vmatprep.subr.mxu0 0.0
      %3011 = vmatpush1.msra.mxu0 0.0
      %3012 = vmatprep.subr.mxu0 0.0
      %3013 = vmatpush1.msra.mxu0 0.0
      %3014 = vmatprep.mubr.f32.mxu0 0.0
      %3015 = vmatmul.mubr.f32.gmra.mrb[0].mxu0 %v2948
      %v3016 = vpop.f32.mrb[0].mxu0
      %v3017 = vadd.f32 0.0, %v3016
      %v3018 = vpop.f32.mrb[0].mxu0
      %3019 = vdwg.mxu0
      %v3021 = vsel %vm2727, %v2720, 0
      %3023 = vmatprep.subr.mxu0 0.0
      %3024 = vmatpush1.msra.mxu0 %v169
      %3025 = vmatprep.subr.mxu0 0.0
      %3026 = vmatpush1.msra.mxu0 %v170
      %3027 = vmatprep.subr.mxu0 0.0
      %3028 = vmatpush1.msra.mxu0 0.0
      %3029 = vmatprep.subr.mxu0 0.0
      %3030 = vmatpush1.msra.mxu0 0.0
      %3031 = vmatprep.subr.mxu0 0.0
      %3032 = vmatpush1.msra.mxu0 0.0
      %3033 = vmatprep.subr.mxu0 0.0
      %3034 = vmatpush1.msra.mxu0 0.0
      %3035 = vmatprep.subr.mxu0 0.0
      %3036 = vmatpush1.msra.mxu0 0.0
      %3037 = vmatprep.subr.mxu0 0.0
      %3038 = vmatpush1.msra.mxu0 0.0
      %3039 = vmatprep.subr.mxu0 0.0
      %3040 = vmatpush1.msra.mxu0 0.0
      %3041 = vmatprep.subr.mxu0 0.0
      %3042 = vmatpush1.msra.mxu0 0.0
      %3043 = vmatprep.subr.mxu0 0.0
      %3044 = vmatpush1.msra.mxu0 0.0
      %3045 = vmatprep.subr.mxu0 0.0
      %3046 = vmatpush1.msra.mxu0 0.0
      %3047 = vmatprep.subr.mxu0 0.0
      %3048 = vmatpush1.msra.mxu0 0.0
      %3049 = vmatprep.subr.mxu0 0.0
      %3050 = vmatpush1.msra.mxu0 0.0
      %3051 = vmatprep.subr.mxu0 0.0
      %3052 = vmatpush1.msra.mxu0 0.0
      %3053 = vmatprep.subr.mxu0 0.0
      %3054 = vmatpush1.msra.mxu0 0.0
      %3055 = vmatprep.subr.mxu0 0.0
      %3056 = vmatpush1.msra.mxu0 0.0
      %3057 = vmatprep.subr.mxu0 0.0
      %3058 = vmatpush1.msra.mxu0 0.0
      %3059 = vmatprep.subr.mxu0 0.0
      %3060 = vmatpush1.msra.mxu0 0.0
      %3061 = vmatprep.subr.mxu0 0.0
      %3062 = vmatpush1.msra.mxu0 0.0
      %3063 = vmatprep.subr.mxu0 0.0
      %3064 = vmatpush1.msra.mxu0 0.0
      %3065 = vmatprep.subr.mxu0 0.0
      %3066 = vmatpush1.msra.mxu0 0.0
      %3067 = vmatprep.subr.mxu0 0.0
      %3068 = vmatpush1.msra.mxu0 0.0
      %3069 = vmatprep.subr.mxu0 0.0
      %3070 = vmatpush1.msra.mxu0 0.0
      %3071 = vmatprep.subr.mxu0 0.0
      %3072 = vmatpush1.msra.mxu0 0.0
      %3073 = vmatprep.subr.mxu0 0.0
      %3074 = vmatpush1.msra.mxu0 0.0
      %3075 = vmatprep.subr.mxu0 0.0
      %3076 = vmatpush1.msra.mxu0 0.0
      %3077 = vmatprep.subr.mxu0 0.0
      %3078 = vmatpush1.msra.mxu0 0.0
      %3079 = vmatprep.subr.mxu0 0.0
      %3080 = vmatpush1.msra.mxu0 0.0
      %3081 = vmatprep.subr.mxu0 0.0
      %3082 = vmatpush1.msra.mxu0 0.0
      %3083 = vmatprep.subr.mxu0 0.0
      %3084 = vmatpush1.msra.mxu0 0.0
      %3085 = vmatprep.subr.mxu0 0.0
      %3086 = vmatpush1.msra.mxu0 0.0
      %3087 = vmatprep.mubr.f32.mxu0 0.0
      %3088 = vmatmul.mubr.f32.gmra.mrb[0].mxu0 %v3021
      %v3089 = vpop.f32.mrb[0].mxu0
      %v3090 = vadd.f32 0.0, %v3089
      %v3091 = vpop.f32.mrb[0].mxu0
      %3092 = vdwg.mxu0
      %v3094 = vsel %vm2727, %v2722, 0
      %3096 = vmatprep.subr.mxu0 0.0
      %3097 = vmatpush1.msra.mxu0 %v171
      %3098 = vmatprep.subr.mxu0 0.0
      %3099 = vmatpush1.msra.mxu0 %v172
      %3100 = vmatprep.subr.mxu0 0.0
      %3101 = vmatpush1.msra.mxu0 0.0
      %3102 = vmatprep.subr.mxu0 0.0
      %3103 = vmatpush1.msra.mxu0 0.0
      %3104 = vmatprep.subr.mxu0 0.0
      %3105 = vmatpush1.msra.mxu0 0.0
      %3106 = vmatprep.subr.mxu0 0.0
      %3107 = vmatpush1.msra.mxu0 0.0
      %3108 = vmatprep.subr.mxu0 0.0
      %3109 = vmatpush1.msra.mxu0 0.0
      %3110 = vmatprep.subr.mxu0 0.0
      %3111 = vmatpush1.msra.mxu0 0.0
      %3112 = vmatprep.subr.mxu0 0.0
      %3113 = vmatpush1.msra.mxu0 0.0
      %3114 = vmatprep.subr.mxu0 0.0
      %3115 = vmatpush1.msra.mxu0 0.0
      %3116 = vmatprep.subr.mxu0 0.0
      %3117 = vmatpush1.msra.mxu0 0.0
      %3118 = vmatprep.subr.mxu0 0.0
      %3119 = vmatpush1.msra.mxu0 0.0
      %3120 = vmatprep.subr.mxu0 0.0
      %3121 = vmatpush1.msra.mxu0 0.0
      %3122 = vmatprep.subr.mxu0 0.0
      %3123 = vmatpush1.msra.mxu0 0.0
      %3124 = vmatprep.subr.mxu0 0.0
      %3125 = vmatpush1.msra.mxu0 0.0
      %3126 = vmatprep.subr.mxu0 0.0
      %3127 = vmatpush1.msra.mxu0 0.0
      %3128 = vmatprep.subr.mxu0 0.0
      %3129 = vmatpush1.msra.mxu0 0.0
      %3130 = vmatprep.subr.mxu0 0.0
      %3131 = vmatpush1.msra.mxu0 0.0
      %3132 = vmatprep.subr.mxu0 0.0
      %3133 = vmatpush1.msra.mxu0 0.0
      %3134 = vmatprep.subr.mxu0 0.0
      %3135 = vmatpush1.msra.mxu0 0.0
      %3136 = vmatprep.subr.mxu0 0.0
      %3137 = vmatpush1.msra.mxu0 0.0
      %3138 = vmatprep.subr.mxu0 0.0
      %3139 = vmatpush1.msra.mxu0 0.0
      %3140 = vmatprep.subr.mxu0 0.0
      %3141 = vmatpush1.msra.mxu0 0.0
      %3142 = vmatprep.subr.mxu0 0.0
      %3143 = vmatpush1.msra.mxu0 0.0
      %3144 = vmatprep.subr.mxu0 0.0
      %3145 = vmatpush1.msra.mxu0 0.0
      %3146 = vmatprep.subr.mxu0 0.0
      %3147 = vmatpush1.msra.mxu0 0.0
      %3148 = vmatprep.subr.mxu0 0.0
      %3149 = vmatpush1.msra.mxu0 0.0
      %3150 = vmatprep.subr.mxu0 0.0
      %3151 = vmatpush1.msra.mxu0 0.0
      %3152 = vmatprep.subr.mxu0 0.0
      %3153 = vmatpush1.msra.mxu0 0.0
      %3154 = vmatprep.subr.mxu0 0.0
      %3155 = vmatpush1.msra.mxu0 0.0
      %3156 = vmatprep.subr.mxu0 0.0
      %3157 = vmatpush1.msra.mxu0 0.0
      %3158 = vmatprep.subr.mxu0 0.0
      %3159 = vmatpush1.msra.mxu0 0.0
      %3160 = vmatprep.mubr.f32.mxu0 0.0
      %3161 = vmatmul.mubr.f32.gmra.mrb[0].mxu0 %v3094
      %v3162 = vpop.f32.mrb[0].mxu0
      %v3163 = vadd.f32 0.0, %v3162
      %v3164 = vpop.f32.mrb[0].mxu0
      %3165 = vdwg.mxu0
      %v3167 = vsel %vm2727, %v2724, 0
      %3169 = vmatprep.subr.mxu0 0.0
      %3170 = vmatpush1.msra.mxu0 %v173
      %3171 = vmatprep.subr.mxu0 0.0
      %3172 = vmatpush1.msra.mxu0 %v174
      %3173 = vmatprep.subr.mxu0 0.0
      %3174 = vmatpush1.msra.mxu0 0.0
      %3175 = vmatprep.subr.mxu0 0.0
      %3176 = vmatpush1.msra.mxu0 0.0
      %3177 = vmatprep.subr.mxu0 0.0
      %3178 = vmatpush1.msra.mxu0 0.0
      %3179 = vmatprep.subr.mxu0 0.0
      %3180 = vmatpush1.msra.mxu0 0.0
      %3181 = vmatprep.subr.mxu0 0.0
      %3182 = vmatpush1.msra.mxu0 0.0
      %3183 = vmatprep.subr.mxu0 0.0
      %3184 = vmatpush1.msra.mxu0 0.0
      %3185 = vmatprep.subr.mxu0 0.0
      %3186 = vmatpush1.msra.mxu0 0.0
      %3187 = vmatprep.subr.mxu0 0.0
      %3188 = vmatpush1.msra.mxu0 0.0
      %3189 = vmatprep.subr.mxu0 0.0
      %3190 = vmatpush1.msra.mxu0 0.0
      %3191 = vmatprep.subr.mxu0 0.0
      %3192 = vmatpush1.msra.mxu0 0.0
      %3193 = vmatprep.subr.mxu0 0.0
      %3194 = vmatpush1.msra.mxu0 0.0
      %3195 = vmatprep.subr.mxu0 0.0
      %3196 = vmatpush1.msra.mxu0 0.0
      %3197 = vmatprep.subr.mxu0 0.0
      %3198 = vmatpush1.msra.mxu0 0.0
      %3199 = vmatprep.subr.mxu0 0.0
      %3200 = vmatpush1.msra.mxu0 0.0
      %3201 = vmatprep.subr.mxu0 0.0
      %3202 = vmatpush1.msra.mxu0 0.0
      %3203 = vmatprep.subr.mxu0 0.0
      %3204 = vmatpush1.msra.mxu0 0.0
      %3205 = vmatprep.subr.mxu0 0.0
      %3206 = vmatpush1.msra.mxu0 0.0
      %3207 = vmatprep.subr.mxu0 0.0
      %3208 = vmatpush1.msra.mxu0 0.0
      %3209 = vmatprep.subr.mxu0 0.0
      %3210 = vmatpush1.msra.mxu0 0.0
      %3211 = vmatprep.subr.mxu0 0.0
      %3212 = vmatpush1.msra.mxu0 0.0
      %3213 = vmatprep.subr.mxu0 0.0
      %3214 = vmatpush1.msra.mxu0 0.0
      %3215 = vmatprep.subr.mxu0 0.0
      %3216 = vmatpush1.msra.mxu0 0.0
      %3217 = vmatprep.subr.mxu0 0.0
      %3218 = vmatpush1.msra.mxu0 0.0
      %3219 = vmatprep.subr.mxu0 0.0
      %3220 = vmatpush1.msra.mxu0 0.0
      %3221 = vmatprep.subr.mxu0 0.0
      %3222 = vmatpush1.msra.mxu0 0.0
      %3223 = vmatprep.subr.mxu0 0.0
      %3224 = vmatpush1.msra.mxu0 0.0
      %3225 = vmatprep.subr.mxu0 0.0
      %3226 = vmatpush1.msra.mxu0 0.0
      %3227 = vmatprep.subr.mxu0 0.0
      %3228 = vmatpush1.msra.mxu0 0.0
      %3229 = vmatprep.subr.mxu0 0.0
      %3230 = vmatpush1.msra.mxu0 0.0
      %3231 = vmatprep.subr.mxu0 0.0
      %3232 = vmatpush1.msra.mxu0 0.0
      %3233 = vmatprep.mubr.f32.mxu0 0.0
      %3234 = vmatmul.mubr.f32.gmra.mrb[0].mxu0 %v3167
      %v3235 = vpop.f32.mrb[0].mxu0
      %v3236 = vadd.f32 0.0, %v3235
      %v3237 = vpop.f32.mrb[0].mxu0
      %3238 = vdwg.mxu0
      %v3240 = vsel %vm2727, %v2726, 0
      %3242 = vmatprep.subr.mxu0 0.0
      %3243 = vmatpush1.msra.mxu0 %v175
      %3244 = vmatprep.subr.mxu0 0.0
      %3245 = vmatpush1.msra.mxu0 %v176
      %3246 = vmatprep.subr.mxu0 0.0
      %3247 = vmatpush1.msra.mxu0 0.0
      %3248 = vmatprep.subr.mxu0 0.0
      %3249 = vmatpush1.msra.mxu0 0.0
      %3250 = vmatprep.subr.mxu0 0.0
      %3251 = vmatpush1.msra.mxu0 0.0
      %3252 = vmatprep.subr.mxu0 0.0
      %3253 = vmatpush1.msra.mxu0 0.0
      %3254 = vmatprep.subr.mxu0 0.0
      %3255 = vmatpush1.msra.mxu0 0.0
      %3256 = vmatprep.subr.mxu0 0.0
      %3257 = vmatpush1.msra.mxu0 0.0
      %3258 = vmatprep.subr.mxu0 0.0
      %3259 = vmatpush1.msra.mxu0 0.0
      %3260 = vmatprep.subr.mxu0 0.0
      %3261 = vmatpush1.msra.mxu0 0.0
      %3262 = vmatprep.subr.mxu0 0.0
      %3263 = vmatpush1.msra.mxu0 0.0
      %3264 = vmatprep.subr.mxu0 0.0
      %3265 = vmatpush1.msra.mxu0 0.0
      %3266 = vmatprep.subr.mxu0 0.0
      %3267 = vmatpush1.msra.mxu0 0.0
      %3268 = vmatprep.subr.mxu0 0.0
      %3269 = vmatpush1.msra.mxu0 0.0
      %3270 = vmatprep.subr.mxu0 0.0
      %3271 = vmatpush1.msra.mxu0 0.0
      %3272 = vmatprep.subr.mxu0 0.0
      %3273 = vmatpush1.msra.mxu0 0.0
      %3274 = vmatprep.subr.mxu0 0.0
      %3275 = vmatpush1.msra.mxu0 0.0
      %3276 = vmatprep.subr.mxu0 0.0
      %3277 = vmatpush1.msra.mxu0 0.0
      %3278 = vmatprep.subr.mxu0 0.0
      %3279 = vmatpush1.msra.mxu0 0.0
      %3280 = vmatprep.subr.mxu0 0.0
      %3281 = vmatpush1.msra.mxu0 0.0
      %3282 = vmatprep.subr.mxu0 0.0
      %3283 = vmatpush1.msra.mxu0 0.0
      %3284 = vmatprep.subr.mxu0 0.0
      %3285 = vmatpush1.msra.mxu0 0.0
      %3286 = vmatprep.subr.mxu0 0.0
      %3287 = vmatpush1.msra.mxu0 0.0
      %3288 = vmatprep.subr.mxu0 0.0
      %3289 = vmatpush1.msra.mxu0 0.0
      %3290 = vmatprep.subr.mxu0 0.0
      %3291 = vmatpush1.msra.mxu0 0.0
      %3292 = vmatprep.subr.mxu0 0.0
      %3293 = vmatpush1.msra.mxu0 0.0
      %3294 = vmatprep.subr.mxu0 0.0
      %3295 = vmatpush1.msra.mxu0 0.0
      %3296 = vmatprep.subr.mxu0 0.0
      %3297 = vmatpush1.msra.mxu0 0.0
      %3298 = vmatprep.subr.mxu0 0.0
      %3299 = vmatpush1.msra.mxu0 0.0
      %3300 = vmatprep.subr.mxu0 0.0
      %3301 = vmatpush1.msra.mxu0 0.0
      %3302 = vmatprep.subr.mxu0 0.0
      %3303 = vmatpush1.msra.mxu0 0.0
      %3304 = vmatprep.subr.mxu0 0.0
      %3305 = vmatpush1.msra.mxu0 0.0
      %3306 = vmatprep.mubr.f32.mxu0 0.0
      %3307 = vmatmul.mubr.f32.gmra.mrb[0].mxu0 %v3240
      %v3308 = vpop.f32.mrb[0].mxu0
      %v3309 = vadd.f32 0.0, %v3308
      %v3310 = vpop.f32.mrb[0].mxu0
      %3311 = vdwg.mxu0
      %v3312 = vand.u32 2147483647, %v522
      %v3313 = vsub.f32 0.0, %v3312
      %v3314 = vmul.f32 %v3313, 1.442695
      %v3315 = vpow.pop %v3314
      %v3316 = vadd.f32 %v3315, 1.0
      %v3317 = vrcp.pop %v3316
      %v3318 = vmul.f32 1.0, %v3317
      %vm3319 = vcmp.ge.f32.partialorder %v522, 0.0
      %v3320 = vmul.f32 %v3315, %v3318
      %v3321 = vsel %vm3319, %v3318, %v3320
      %v3322 = vtanh.pop %v522
      %v3323 = vlaneseq
      %v3324 = vshrl.u32 %v3323, 7
      %v3325 = vsub.s32 1, %v3324
      %v3326 = vrot.slane %v2712, %v3325
      %3328 = vbcast.lane.b32.xlu0 %v3326, 256
      %v3329 = vpop.permute.xlu0 %3328
      %s3331 = sor.u32 256, 8
      %3332 = vbcast.lane.b32.xlu0 %v3326, %s3331
      %v3333 = vpop.permute.xlu0 %3332
      %v3334 = vlaneseq
      %v3335 = vshrl.u32 %v3334, 7
      %v3336 = vsub.s32 1, %v3335
      %v3337 = vrot.slane %v2714, %v3336
      %3339 = vbcast.lane.b32.xlu0 %v3337, 256
      %v3340 = vpop.permute.xlu0 %3339
      %s3342 = sor.u32 256, 8
      %3343 = vbcast.lane.b32.xlu0 %v3337, %s3342
      %v3344 = vpop.permute.xlu0 %3343
      %v3345 = vlaneseq
      %v3346 = vshrl.u32 %v3345, 7
      %v3347 = vsub.s32 1, %v3346
      %v3348 = vrot.slane %v2716, %v3347
      %3350 = vbcast.lane.b32.xlu0 %v3348, 256
      %v3351 = vpop.permute.xlu0 %3350
      %s3353 = sor.u32 256, 8
      %3354 = vbcast.lane.b32.xlu0 %v3348, %s3353
      %v3355 = vpop.permute.xlu0 %3354
      %v3356 = vlaneseq
      %v3357 = vshrl.u32 %v3356, 7
      %v3358 = vsub.s32 1, %v3357
      %v3359 = vrot.slane %v2718, %v3358
      %3361 = vbcast.lane.b32.xlu0 %v3359, 256
      %v3362 = vpop.permute.xlu0 %3361
      %s3364 = sor.u32 256, 8
      %3365 = vbcast.lane.b32.xlu0 %v3359, %s3364
      %v3366 = vpop.permute.xlu0 %3365
      %v3367 = vlaneseq
      %v3368 = vshrl.u32 %v3367, 7
      %v3369 = vsub.s32 1, %v3368
      %v3370 = vrot.slane %v2720, %v3369
      %3372 = vbcast.lane.b32.xlu0 %v3370, 256
      %v3373 = vpop.permute.xlu0 %3372
      %s3375 = sor.u32 256, 8
      %3376 = vbcast.lane.b32.xlu0 %v3370, %s3375
      %v3377 = vpop.permute.xlu0 %3376
      %v3378 = vlaneseq
      %v3379 = vshrl.u32 %v3378, 7
      %v3380 = vsub.s32 1, %v3379
      %v3381 = vrot.slane %v2722, %v3380
      %3383 = vbcast.lane.b32.xlu0 %v3381, 256
      %v3384 = vpop.permute.xlu0 %3383
      %s3386 = sor.u32 256, 8
      %3387 = vbcast.lane.b32.xlu0 %v3381, %s3386
      %v3388 = vpop.permute.xlu0 %3387
      %v3389 = vlaneseq
      %v3390 = vshrl.u32 %v3389, 7
      %v3391 = vsub.s32 1, %v3390
      %v3392 = vrot.slane %v2724, %v3391
      %3394 = vbcast.lane.b32.xlu0 %v3392, 256
      %v3395 = vpop.permute.xlu0 %3394
      %s3397 = sor.u32 256, 8
      %3398 = vbcast.lane.b32.xlu0 %v3392, %s3397
      %v3399 = vpop.permute.xlu0 %3398
      %v3400 = vlaneseq
      %v3401 = vshrl.u32 %v3400, 7
      %v3402 = vsub.s32 1, %v3401
      %v3403 = vrot.slane %v2726, %v3402
      %3405 = vbcast.lane.b32.xlu0 %v3403, 256
      %v3406 = vpop.permute.xlu0 %3405
      %s3408 = sor.u32 256, 8
      %3409 = vbcast.lane.b32.xlu0 %v3403, %s3408
      %v3410 = vpop.permute.xlu0 %3409
      %v3412 = vcombine.high %v3321, %v3321
      %v3414 = vunpack.c.l.s4 1966171168
      %v3415 = vunpack.c.0.s8 %v3414
      %v3416 = vlaneseq
      %v3417 = vshrl.u32 %v3416, 7
      %v3418 = vsub.s32 %v3415, %v3417
      %v3419 = vrot.slane %v3321, %v3418
      %v3421 = vunpack.c.l.s4 1966171168
      %v3422 = vunpack.c.0.s8 %v3421
      %v3423 = vlaneseq
      %v3424 = vshrl.u32 %v3423, 7
      %v3425 = vsub.s32 %v3422, %v3424
      %v3426 = vrot.slane %v3412, %v3425
      %v3427 = vcombine.high %v3419, %v3419
      %v3428 = vcombine.high %v3426, %v3426
      %v3430 = vunpack.c.l.s4 1966171168
      %v3431 = vunpack.c.0.s8 %v3430
      %v3432 = vlaneseq
      %v3433 = vshrl.u32 %v3432, 7
      %v3434 = vsub.s32 %v3431, %v3433
      %v3435 = vrot.slane %v3419, %v3434
      %v3437 = vunpack.c.l.s4 1966171168
      %v3438 = vunpack.c.0.s8 %v3437
      %v3439 = vlaneseq
      %v3440 = vshrl.u32 %v3439, 7
      %v3441 = vsub.s32 %v3438, %v3440
      %v3442 = vrot.slane %v3426, %v3441
      %v3444 = vunpack.c.l.s4 1966171168
      %v3445 = vunpack.c.0.s8 %v3444
      %v3446 = vlaneseq
      %v3447 = vshrl.u32 %v3446, 7
      %v3448 = vsub.s32 %v3445, %v3447
      %v3449 = vrot.slane %v3427, %v3448
      %v3451 = vunpack.c.l.s4 1966171168
      %v3452 = vunpack.c.0.s8 %v3451
      %v3453 = vlaneseq
      %v3454 = vshrl.u32 %v3453, 7
      %v3455 = vsub.s32 %v3452, %v3454
      %v3456 = vrot.slane %v3428, %v3455
      %v3457 = vcombine.high %v3435, %v3435
      %v3458 = vcombine.high %v3442, %v3442
      %v3459 = vcombine.high %v3449, %v3449
      %v3460 = vcombine.high %v3456, %v3456
      %v3461 = vlaneseq
      %v3462 = vshrl.u32 %v3461, 7
      %v3463 = vsub.s32 0, %v3462
      %v3464 = vrot.slane %v3435, %v3463
      %v3465 = vlaneseq
      %v3466 = vshrl.u32 %v3465, 7
      %v3467 = vsub.s32 0, %v3466
      %v3468 = vrot.slane %v3449, %v3467
      %v3469 = vlaneseq
      %v3470 = vshrl.u32 %v3469, 7
      %v3471 = vsub.s32 0, %v3470
      %v3472 = vrot.slane %v3457, %v3471
      %v3473 = vlaneseq
      %v3474 = vshrl.u32 %v3473, 7
      %v3475 = vsub.s32 0, %v3474
      %v3476 = vrot.slane %v3459, %v3475
      %v3477 = vlaneseq
      %v3478 = vshrl.u32 %v3477, 7
      %v3479 = vsub.s32 0, %v3478
      %v3480 = vrot.slane %v3442, %v3479
      %v3481 = vlaneseq
      %v3482 = vshrl.u32 %v3481, 7
      %v3483 = vsub.s32 0, %v3482
      %v3484 = vrot.slane %v3456, %v3483
      %v3485 = vlaneseq
      %v3486 = vshrl.u32 %v3485, 7
      %v3487 = vsub.s32 0, %v3486
      %v3488 = vrot.slane %v3458, %v3487
      %v3489 = vlaneseq
      %v3490 = vshrl.u32 %v3489, 7
      %v3491 = vsub.s32 0, %v3490
      %v3492 = vrot.slane %v3460, %v3491
      %v3501 = vmul.f32 %v3329, %v3464
      %v3502 = vmul.f32 %v3333, %v3464
      %v3503 = vmul.f32 %v3340, %v3468
      %v3504 = vmul.f32 %v3344, %v3468
      %v3505 = vmul.f32 %v3351, %v3472
      %v3506 = vmul.f32 %v3355, %v3472
      %v3507 = vmul.f32 %v3362, %v3476
      %v3508 = vmul.f32 %v3366, %v3476
      %v3509 = vmul.f32 %v3373, %v3480
      %v3510 = vmul.f32 %v3377, %v3480
      %v3511 = vmul.f32 %v3384, %v3484
      %v3512 = vmul.f32 %v3388, %v3484
      %v3513 = vmul.f32 %v3395, %v3488
      %v3514 = vmul.f32 %v3399, %v3488
      %v3515 = vmul.f32 %v3406, %v3492
      %v3516 = vmul.f32 %v3410, %v3492
      %v3517 = vsub.f32 1.0, %v3501
      %v3518 = vsub.f32 1.0, %v3502
      %v3519 = vsub.f32 1.0, %v3503
      %v3520 = vsub.f32 1.0, %v3504
      %v3521 = vsub.f32 1.0, %v3505
      %v3522 = vsub.f32 1.0, %v3506
      %v3523 = vsub.f32 1.0, %v3507
      %v3524 = vsub.f32 1.0, %v3508
      %v3525 = vsub.f32 1.0, %v3509
      %v3526 = vsub.f32 1.0, %v3510
      %v3527 = vsub.f32 1.0, %v3511
      %v3528 = vsub.f32 1.0, %v3512
      %v3529 = vsub.f32 1.0, %v3513
      %v3530 = vsub.f32 1.0, %v3514
      %v3531 = vsub.f32 1.0, %v3515
      %v3532 = vsub.f32 1.0, %v3516
      %3549 = vrot.lane.b32.xlu0 %v3517, 84
      %v3550 = vpop.permute.xlu0 %3549
      %3551 = vrot.lane.b32.xlu0 %v3518, 84
      %v3552 = vpop.permute.xlu0 %3551
      %3553 = vrot.lane.b32.xlu0 %v3519, 84
      %v3554 = vpop.permute.xlu0 %3553
      %3555 = vrot.lane.b32.xlu0 %v3520, 84
      %v3556 = vpop.permute.xlu0 %3555
      %3557 = vrot.lane.b32.xlu0 %v3521, 84
      %v3558 = vpop.permute.xlu0 %3557
      %3559 = vrot.lane.b32.xlu0 %v3522, 84
      %v3560 = vpop.permute.xlu0 %3559
      %3561 = vrot.lane.b32.xlu0 %v3523, 84
      %v3562 = vpop.permute.xlu0 %3561
      %3563 = vrot.lane.b32.xlu0 %v3524, 84
      %v3564 = vpop.permute.xlu0 %3563
      %3565 = vrot.lane.b32.xlu0 %v3525, 84
      %v3566 = vpop.permute.xlu0 %3565
      %3567 = vrot.lane.b32.xlu0 %v3526, 84
      %v3568 = vpop.permute.xlu0 %3567
      %3569 = vrot.lane.b32.xlu0 %v3527, 84
      %v3570 = vpop.permute.xlu0 %3569
      %3571 = vrot.lane.b32.xlu0 %v3528, 84
      %v3572 = vpop.permute.xlu0 %3571
      %3573 = vrot.lane.b32.xlu0 %v3529, 84
      %v3574 = vpop.permute.xlu0 %3573
      %3575 = vrot.lane.b32.xlu0 %v3530, 84
      %v3576 = vpop.permute.xlu0 %3575
      %3577 = vrot.lane.b32.xlu0 %v3531, 84
      %v3578 = vpop.permute.xlu0 %3577
      %3579 = vrot.lane.b32.xlu0 %v3532, 84
      %v3580 = vpop.permute.xlu0 %3579
      %v3597 = vmul.f32 %v161, %v3550
      %v3598 = vmul.f32 %v162, %v3552
      %v3599 = vmul.f32 %v163, %v3554
      %v3600 = vmul.f32 %v164, %v3556
      %v3601 = vmul.f32 %v165, %v3558
      %v3602 = vmul.f32 %v166, %v3560
      %v3603 = vmul.f32 %v167, %v3562
      %v3604 = vmul.f32 %v168, %v3564
      %v3605 = vmul.f32 %v169, %v3566
      %v3606 = vmul.f32 %v170, %v3568
      %v3607 = vmul.f32 %v171, %v3570
      %v3608 = vmul.f32 %v172, %v3572
      %v3609 = vmul.f32 %v173, %v3574
      %v3610 = vmul.f32 %v174, %v3576
      %v3611 = vmul.f32 %v175, %v3578
      %v3612 = vmul.f32 %v176, %v3580
      %v3614 = vcombine.high %v3322, %v3322
      %v3616 = vunpack.c.l.s4 1966171168
      %v3617 = vunpack.c.0.s8 %v3616
      %v3618 = vlaneseq
      %v3619 = vshrl.u32 %v3618, 7
      %v3620 = vsub.s32 %v3617, %v3619
      %v3621 = vrot.slane %v3322, %v3620
      %v3623 = vunpack.c.l.s4 1966171168
      %v3624 = vunpack.c.0.s8 %v3623
      %v3625 = vlaneseq
      %v3626 = vshrl.u32 %v3625, 7
      %v3627 = vsub.s32 %v3624, %v3626
      %v3628 = vrot.slane %v3614, %v3627
      %v3629 = vcombine.high %v3621, %v3621
      %v3630 = vcombine.high %v3628, %v3628
      %v3632 = vunpack.c.l.s4 1966171168
      %v3633 = vunpack.c.0.s8 %v3632
      %v3634 = vlaneseq
      %v3635 = vshrl.u32 %v3634, 7
      %v3636 = vsub.s32 %v3633, %v3635
      %v3637 = vrot.slane %v3621, %v3636
      %v3639 = vunpack.c.l.s4 1966171168
      %v3640 = vunpack.c.0.s8 %v3639
      %v3641 = vlaneseq
      %v3642 = vshrl.u32 %v3641, 7
      %v3643 = vsub.s32 %v3640, %v3642
      %v3644 = vrot.slane %v3628, %v3643
      %v3646 = vunpack.c.l.s4 1966171168
      %v3647 = vunpack.c.0.s8 %v3646
      %v3648 = vlaneseq
      %v3649 = vshrl.u32 %v3648, 7
      %v3650 = vsub.s32 %v3647, %v3649
      %v3651 = vrot.slane %v3629, %v3650
      %v3653 = vunpack.c.l.s4 1966171168
      %v3654 = vunpack.c.0.s8 %v3653
      %v3655 = vlaneseq
      %v3656 = vshrl.u32 %v3655, 7
      %v3657 = vsub.s32 %v3654, %v3656
      %v3658 = vrot.slane %v3630, %v3657
      %v3659 = vcombine.high %v3637, %v3637
      %v3660 = vcombine.high %v3644, %v3644
      %v3661 = vcombine.high %v3651, %v3651
      %v3662 = vcombine.high %v3658, %v3658
      %v3663 = vlaneseq
      %v3664 = vshrl.u32 %v3663, 7
      %v3665 = vsub.s32 0, %v3664
      %v3666 = vrot.slane %v3637, %v3665
      %v3667 = vlaneseq
      %v3668 = vshrl.u32 %v3667, 7
      %v3669 = vsub.s32 0, %v3668
      %v3670 = vrot.slane %v3651, %v3669
      %v3671 = vlaneseq
      %v3672 = vshrl.u32 %v3671, 7
      %v3673 = vsub.s32 0, %v3672
      %v3674 = vrot.slane %v3659, %v3673
      %v3675 = vlaneseq
      %v3676 = vshrl.u32 %v3675, 7
      %v3677 = vsub.s32 0, %v3676
      %v3678 = vrot.slane %v3661, %v3677
      %v3679 = vlaneseq
      %v3680 = vshrl.u32 %v3679, 7
      %v3681 = vsub.s32 0, %v3680
      %v3682 = vrot.slane %v3644, %v3681
      %v3683 = vlaneseq
      %v3684 = vshrl.u32 %v3683, 7
      %v3685 = vsub.s32 0, %v3684
      %v3686 = vrot.slane %v3658, %v3685
      %v3687 = vlaneseq
      %v3688 = vshrl.u32 %v3687, 7
      %v3689 = vsub.s32 0, %v3688
      %v3690 = vrot.slane %v3660, %v3689
      %v3691 = vlaneseq
      %v3692 = vshrl.u32 %v3691, 7
      %v3693 = vsub.s32 0, %v3692
      %v3694 = vrot.slane %v3662, %v3693
      %v3703 = vmul.f32 %v3329, %v3666
      %v3704 = vmul.f32 %v3333, %v3666
      %v3705 = vmul.f32 %v3340, %v3670
      %v3706 = vmul.f32 %v3344, %v3670
      %v3707 = vmul.f32 %v3351, %v3674
      %v3708 = vmul.f32 %v3355, %v3674
      %v3709 = vmul.f32 %v3362, %v3678
      %v3710 = vmul.f32 %v3366, %v3678
      %v3711 = vmul.f32 %v3373, %v3682
      %v3712 = vmul.f32 %v3377, %v3682
      %v3713 = vmul.f32 %v3384, %v3686
      %v3714 = vmul.f32 %v3388, %v3686
      %v3715 = vmul.f32 %v3395, %v3690
      %v3716 = vmul.f32 %v3399, %v3690
      %v3717 = vmul.f32 %v3406, %v3694
      %v3718 = vmul.f32 %v3410, %v3694
      %3735 = vrot.lane.b32.xlu0 %v3703, 76
      %v3736 = vpop.permute.xlu0 %3735
      %3737 = vrot.lane.b32.xlu0 %v3704, 76
      %v3738 = vpop.permute.xlu0 %3737
      %3739 = vrot.lane.b32.xlu0 %v3705, 76
      %v3740 = vpop.permute.xlu0 %3739
      %3741 = vrot.lane.b32.xlu0 %v3706, 76
      %v3742 = vpop.permute.xlu0 %3741
      %3743 = vrot.lane.b32.xlu0 %v3707, 76
      %v3744 = vpop.permute.xlu0 %3743
      %3745 = vrot.lane.b32.xlu0 %v3708, 76
      %v3746 = vpop.permute.xlu0 %3745
      %3747 = vrot.lane.b32.xlu0 %v3709, 76
      %v3748 = vpop.permute.xlu0 %3747
      %3749 = vrot.lane.b32.xlu0 %v3710, 76
      %v3750 = vpop.permute.xlu0 %3749
      %3751 = vrot.lane.b32.xlu0 %v3711, 76
      %v3752 = vpop.permute.xlu0 %3751
      %3753 = vrot.lane.b32.xlu0 %v3712, 76
      %v3754 = vpop.permute.xlu0 %3753
      %3755 = vrot.lane.b32.xlu0 %v3713, 76
      %v3756 = vpop.permute.xlu0 %3755
      %3757 = vrot.lane.b32.xlu0 %v3714, 76
      %v3758 = vpop.permute.xlu0 %3757
      %3759 = vrot.lane.b32.xlu0 %v3715, 76
      %v3760 = vpop.permute.xlu0 %3759
      %3761 = vrot.lane.b32.xlu0 %v3716, 76
      %v3762 = vpop.permute.xlu0 %3761
      %3763 = vrot.lane.b32.xlu0 %v3717, 76
      %v3764 = vpop.permute.xlu0 %3763
      %3765 = vrot.lane.b32.xlu0 %v3718, 76
      %v3766 = vpop.permute.xlu0 %3765
      %v3783 = vadd.f32 %v3597, %v3736
      %v3784 = vadd.f32 %v3598, %v3738
      %v3785 = vadd.f32 %v3599, %v3740
      %v3786 = vadd.f32 %v3600, %v3742
      %v3787 = vadd.f32 %v3601, %v3744
      %v3788 = vadd.f32 %v3602, %v3746
      %v3789 = vadd.f32 %v3603, %v3748
      %v3790 = vadd.f32 %v3604, %v3750
      %v3791 = vadd.f32 %v3605, %v3752
      %v3792 = vadd.f32 %v3606, %v3754
      %v3793 = vadd.f32 %v3607, %v3756
      %v3794 = vadd.f32 %v3608, %v3758
      %v3795 = vadd.f32 %v3609, %v3760
      %v3796 = vadd.f32 %v3610, %v3762
      %v3797 = vadd.f32 %v3611, %v3764
      %v3798 = vadd.f32 %v3612, %v3766
      %v3800 = vlaneseq
      %v3801 = vshrl.u32 %v3800, 7
      %v3802 = vsub.s32 0, %v3801
      %v3803 = vrot.slane %v131, %v3802
      %3806 = vrot.lane.b32.xlu0 %v443, 32
      %v3807 = vpop.permute.xlu0 %3806
      %v3808 = vsel %vm183, %v3807, 0
      %3810 = vmatprep.subr.mxu0 0.0
      %3811 = vmatpush1.msra.mxu0 %v126
      %3812 = vmatprep.subr.mxu0 0.0
      %3813 = vmatpush1.msra.mxu0 %v127
      %3814 = vmatprep.subr.mxu0 0.0
      %3815 = vmatpush1.msra.mxu0 %v128
      %3816 = vmatprep.subr.mxu0 0.0
      %3817 = vmatpush1.msra.mxu0 %v129
      %3818 = vmatprep.subr.mxu0 0.0
      %3819 = vmatpush1.msra.mxu0 0.0
      %3820 = vmatprep.subr.mxu0 0.0
      %3821 = vmatpush1.msra.mxu0 0.0
      %3822 = vmatprep.subr.mxu0 0.0
      %3823 = vmatpush1.msra.mxu0 0.0
      %3824 = vmatprep.subr.mxu0 0.0
      %3825 = vmatpush1.msra.mxu0 0.0
      %3826 = vmatprep.subr.mxu0 0.0
      %3827 = vmatpush1.msra.mxu0 0.0
      %3828 = vmatprep.subr.mxu0 0.0
      %3829 = vmatpush1.msra.mxu0 0.0
      %3830 = vmatprep.subr.mxu0 0.0
      %3831 = vmatpush1.msra.mxu0 0.0
      %3832 = vmatprep.subr.mxu0 0.0
      %3833 = vmatpush1.msra.mxu0 0.0
      %3834 = vmatprep.subr.mxu0 0.0
      %3835 = vmatpush1.msra.mxu0 0.0
      %3836 = vmatprep.subr.mxu0 0.0
      %3837 = vmatpush1.msra.mxu0 0.0
      %3838 = vmatprep.subr.mxu0 0.0
      %3839 = vmatpush1.msra.mxu0 0.0
      %3840 = vmatprep.subr.mxu0 0.0
      %3841 = vmatpush1.msra.mxu0 0.0
      %3842 = vmatprep.subr.mxu0 0.0
      %3843 = vmatpush1.msra.mxu0 0.0
      %3844 = vmatprep.subr.mxu0 0.0
      %3845 = vmatpush1.msra.mxu0 0.0
      %3846 = vmatprep.subr.mxu0 0.0
      %3847 = vmatpush1.msra.mxu0 0.0
      %3848 = vmatprep.subr.mxu0 0.0
      %3849 = vmatpush1.msra.mxu0 0.0
      %3850 = vmatprep.subr.mxu0 0.0
      %3851 = vmatpush1.msra.mxu0 0.0
      %3852 = vmatprep.subr.mxu0 0.0
      %3853 = vmatpush1.msra.mxu0 0.0
      %3854 = vmatprep.subr.mxu0 0.0
      %3855 = vmatpush1.msra.mxu0 0.0
      %3856 = vmatprep.subr.mxu0 0.0
      %3857 = vmatpush1.msra.mxu0 0.0
      %3858 = vmatprep.subr.mxu0 0.0
      %3859 = vmatpush1.msra.mxu0 0.0
      %3860 = vmatprep.subr.mxu0 0.0
      %3861 = vmatpush1.msra.mxu0 0.0
      %3862 = vmatprep.subr.mxu0 0.0
      %3863 = vmatpush1.msra.mxu0 0.0
      %3864 = vmatprep.subr.mxu0 0.0
      %3865 = vmatpush1.msra.mxu0 0.0
      %3866 = vmatprep.subr.mxu0 0.0
      %3867 = vmatpush1.msra.mxu0 0.0
      %3868 = vmatprep.subr.mxu0 0.0
      %3869 = vmatpush1.msra.mxu0 0.0
      %3870 = vmatprep.subr.mxu0 0.0
      %3871 = vmatpush1.msra.mxu0 0.0
      %3872 = vmatprep.subr.mxu0 0.0
      %3873 = vmatpush1.msra.mxu0 0.0
      %3874 = vmatprep.mubr.f32.mxu0 0.0
      %3875 = vmatmul.mubr.f32.gmra.mrb[0].mxu0 %v3808
      %v3876 = vpop.f32.mrb[0].mxu0
      %v3877 = vadd.f32 %v3803, %v3876
      %v3878 = vpop.f32.mrb[0].mxu0
      %3879 = vdwg.mxu0
      %v3888 = vrot.slane %v2871, 7
      %v3889 = vsel %vm1879, %v3888, %v2798
      %v3890 = vrot.slane %v2944, 6
      %vm3891 = vcmask 1042434
      %v3892 = vsel %vm3891, %v3890, %v3889
      %v3893 = vrot.slane %v3017, 5
      %vm3894 = vcmask 1043459
      %v3895 = vsel %vm3894, %v3893, %v3892
      %v3896 = vrot.slane %v3090, 4
      %vm3897 = vcmask 1044484
      %v3898 = vsel %vm3897, %v3896, %v3895
      %v3899 = vrot.slane %v3163, 3
      %vm3900 = vcmask 1045509
      %v3901 = vsel %vm3900, %v3899, %v3898
      %v3902 = vrot.slane %v3236, 2
      %vm3903 = vcmask 1046534
      %v3904 = vsel %vm3903, %v3902, %v3901
      %v3905 = vrot.slane %v3309, 1
      %vm3906 = vcmask 1047559
      %v3907 = vsel %vm3906, %v3905, %v3904
      %v3908 = vsel %vm257, %v3907, 0
      %3910 = vmatprep.subr.mxu0 0.0
      %3911 = vmatpush1.msra.mxu0 %v130
      %3912 = vmatprep.subr.mxu0 0.0
      %3913 = vmatpush1.msra.mxu0 0.0
      %3914 = vmatprep.subr.mxu0 0.0
      %3915 = vmatpush1.msra.mxu0 0.0
      %3916 = vmatprep.subr.mxu0 0.0
      %3917 = vmatpush1.msra.mxu0 0.0
      %3918 = vmatprep.subr.mxu0 0.0
      %3919 = vmatpush1.msra.mxu0 0.0
      %3920 = vmatprep.subr.mxu0 0.0
      %3921 = vmatpush1.msra.mxu0 0.0
      %3922 = vmatprep.subr.mxu0 0.0
      %3923 = vmatpush1.msra.mxu0 0.0
      %3924 = vmatprep.subr.mxu0 0.0
      %3925 = vmatpush1.msra.mxu0 0.0
      %3926 = vmatprep.subr.mxu0 0.0
      %3927 = vmatpush1.msra.mxu0 0.0
      %3928 = vmatprep.subr.mxu0 0.0
      %3929 = vmatpush1.msra.mxu0 0.0
      %3930 = vmatprep.subr.mxu0 0.0
      %3931 = vmatpush1.msra.mxu0 0.0
      %3932 = vmatprep.subr.mxu0 0.0
      %3933 = vmatpush1.msra.mxu0 0.0
      %3934 = vmatprep.subr.mxu0 0.0
      %3935 = vmatpush1.msra.mxu0 0.0
      %3936 = vmatprep.subr.mxu0 0.0
      %3937 = vmatpush1.msra.mxu0 0.0
      %3938 = vmatprep.subr.mxu0 0.0
      %3939 = vmatpush1.msra.mxu0 0.0
      %3940 = vmatprep.subr.mxu0 0.0
      %3941 = vmatpush1.msra.mxu0 0.0
      %3942 = vmatprep.subr.mxu0 0.0
      %3943 = vmatpush1.msra.mxu0 0.0
      %3944 = vmatprep.subr.mxu0 0.0
      %3945 = vmatpush1.msra.mxu0 0.0
      %3946 = vmatprep.subr.mxu0 0.0
      %3947 = vmatpush1.msra.mxu0 0.0
      %3948 = vmatprep.subr.mxu0 0.0
      %3949 = vmatpush1.msra.mxu0 0.0
      %3950 = vmatprep.subr.mxu0 0.0
      %3951 = vmatpush1.msra.mxu0 0.0
      %3952 = vmatprep.subr.mxu0 0.0
      %3953 = vmatpush1.msra.mxu0 0.0
      %3954 = vmatprep.subr.mxu0 0.0
      %3955 = vmatpush1.msra.mxu0 0.0
      %3956 = vmatprep.subr.mxu0 0.0
      %3957 = vmatpush1.msra.mxu0 0.0
      %3958 = vmatprep.subr.mxu0 0.0
      %3959 = vmatpush1.msra.mxu0 0.0
      %3960 = vmatprep.subr.mxu0 0.0
      %3961 = vmatpush1.msra.mxu0 0.0
      %3962 = vmatprep.subr.mxu0 0.0
      %3963 = vmatpush1.msra.mxu0 0.0
      %3964 = vmatprep.subr.mxu0 0.0
      %3965 = vmatpush1.msra.mxu0 0.0
      %3966 = vmatprep.subr.mxu0 0.0
      %3967 = vmatpush1.msra.mxu0 0.0
      %3968 = vmatprep.subr.mxu0 0.0
      %3969 = vmatpush1.msra.mxu0 0.0
      %3970 = vmatprep.subr.mxu0 0.0
      %3971 = vmatpush1.msra.mxu0 0.0
      %3972 = vmatprep.subr.mxu0 0.0
      %3973 = vmatpush1.msra.mxu0 0.0
      %3974 = vmatprep.mubr.f32.mxu0 0.0
      %3975 = vmatmul.mubr.f32.gmra.mrb[0].mxu0 %v3908
      %v3976 = vpop.f32.mrb[0].mxu0
      %v3977 = vadd.f32 0.0, %v3976
      %v3978 = vpop.f32.mrb[0].mxu0
      %3979 = vdwg.mxu0
      %v3980 = vadd.f32 %v3877, %v3977
      %v3981 = vand.u32 2147483647, %v3980
      %v3982 = vsub.f32 0.0, %v3981
      %v3983 = vmul.f32 %v3982, 1.442695
      %v3984 = vpow.pop %v3983
      %v3985 = vadd.f32 %v3984, 1.0
      %v3986 = vrcp.pop %v3985
      %v3987 = vmul.f32 1.0, %v3986
      %vm3988 = vcmp.ge.f32.partialorder %v3980, 0.0
      %v3989 = vmul.f32 %v3984, %v3987
      %v3990 = vsel %vm3988, %v3987, %v3989
      %s3991 = scalar_lea.vmem [#allocation2], %s180
      %3992 = vst [vmem:[%s3991] sm:$0xff] %v3990
      %v3993 = vrot.slane %v2712, 1
      %v3994 = vrot.slane %v2714, 1
      %v3995 = vrot.slane %v2716, 1
      %v3996 = vrot.slane %v2718, 1
      %v3997 = vrot.slane %v2720, 1
      %v3998 = vrot.slane %v2722, 1
      %v3999 = vrot.slane %v2724, 1
      %v4000 = vrot.slane %v2726, 1
      %v4003 = vrot.slane %v2714, 7
      %v4004 = vsel %vm1879, %v4003, %v2712
      %v4005 = vrot.slane %v2716, 6
      %v4006 = vsel %vm3891, %v4005, %v4004
      %v4007 = vrot.slane %v2718, 5
      %v4008 = vsel %vm3894, %v4007, %v4006
      %v4009 = vrot.slane %v2720, 4
      %v4010 = vsel %vm3897, %v4009, %v4008
      %v4011 = vrot.slane %v2722, 3
      %v4012 = vsel %vm3900, %v4011, %v4010
      %v4013 = vrot.slane %v2724, 2
      %v4014 = vsel %vm3903, %v4013, %v4012
      %v4015 = vsel %vm3906, %v4000, %v4014
      %v4016 = vrot.slane %v3994, 7
      %v4017 = vsel %vm1879, %v4016, %v3993
      %v4018 = vrot.slane %v3995, 6
      %v4019 = vsel %vm3891, %v4018, %v4017
      %v4020 = vrot.slane %v3996, 5
      %v4021 = vsel %vm3894, %v4020, %v4019
      %v4022 = vrot.slane %v3997, 4
      %v4023 = vsel %vm3897, %v4022, %v4021
      %v4024 = vrot.slane %v3998, 3
      %v4025 = vsel %vm3900, %v4024, %v4023
      %v4026 = vrot.slane %v3999, 2
      %v4027 = vsel %vm3903, %v4026, %v4025
      %v4028 = vrot.slane %v4000, 1
      %v4029 = vsel %vm3906, %v4028, %v4027
    $region58: #{tpu_custom_call.1} parent=1 // loop_footer
      %s158 = sadd.s32 1, %s154
    $region59: #{tpu_custom_call.1} parent=1 // loop_footer_branch
      %153 = sbr.rel target = $region55
    $region60: #{tpu_custom_call.1} parent=1 // loop_exit
      _
    %vm4033 = vcmask 261120
    %4034 = vst.msk [vmem:[#allocation4] sm:$0xff] %vm4033, %v159
    %4035 = vst.msk [vmem:[#allocation6] sm:$0xff] %vm4033, %v160
    %vm4036 = vcmask 64512
    %4037 = vst.msk [vmem:[%s15] sm:$0xff] %vm4036, %v161
    %4038 = vst.msk [vmem:[%s15 + $0x8] sm:$0xff] %vm4036, %v162
    %4039 = vst.msk [vmem:[%s15 + $0x10] sm:$0xff] %vm4036, %v163
    %4040 = vst.msk [vmem:[%s15 + $0x18] sm:$0xff] %vm4036, %v164
    %4041 = vst.msk [vmem:[%s15 + $0x20] sm:$0xff] %vm4036, %v165
    %4042 = vst.msk [vmem:[%s15 + $0x28] sm:$0xff] %vm4036, %v166
    %4043 = vst.msk [vmem:[%s15 + $0x30] sm:$0xff] %vm4036, %v167
    %4044 = vst.msk [vmem:[%s15 + $0x38] sm:$0xff] %vm4036, %v168
    %4045 = vst.msk [vmem:[%s15 + $0x40] sm:$0xff] %vm4036, %v169
    %4046 = vst.msk [vmem:[%s15 + $0x48] sm:$0xff] %vm4036, %v170
    %4047 = vst.msk [vmem:[%s15 + $0x50] sm:$0xff] %vm4036, %v171
    %4048 = vst.msk [vmem:[%s15 + $0x58] sm:$0xff] %vm4036, %v172
    %4049 = vst.msk [vmem:[%s15 + $0x60] sm:$0xff] %vm4036, %v173
    %4050 = vst.msk [vmem:[%s15 + $0x68] sm:$0xff] %vm4036, %v174
    %4051 = vst.msk [vmem:[%s15 + $0x70] sm:$0xff] %vm4036, %v175
    %4052 = vst.msk [vmem:[%s15 + $0x78] sm:$0xff] %vm4036, %v176
    %vm4053 = vcmask 130048
    %4054 = vst.msk [vmem:[#allocation7] sm:$0xff] %vm4053, %v177
    %4055 = vst.msk [vmem:[#allocation7 + $0x8] sm:$0xff] %vm4053, %v178
    %4056 = vst.msk [vmem:[#allocation9] sm:$0xff] %vm4036, %v179
    // Predicated region
    $region61: #{tpu_custom_call.1} parent=1 // pred_check
      _
    $region62: #{tpu_custom_call.1} parent=1 // pred_check_branch
      %4058 = sbr.rel (0) target = $region64
    $region63: #{tpu_custom_call.1} parent=1 // pred_region
      %s4060 = ssub.s32 768, 768
      %4061 = vsyncadd [#allocation3], %s4060
      %s4062 = sshll.u32 [#allocation2], 4
      %s4063 = int_to_ptr.vmem [resolvable:$true] %s4062
      %4068 = dma.vmem_to_hbm [thread:$0]  %s4063, 768, %s12, [#allocation3], 128, 128, 8
    $region64: #{tpu_custom_call.1} parent=1 // pred_fallthru
      _
    // Predicated region
    $region65: #{tpu_custom_call.1} parent=1 // pred_check
      _
    $region66: #{tpu_custom_call.1} parent=1 // pred_check_branch
      %4070 = sbr.rel (0) target = $region68
    $region67: #{tpu_custom_call.1} parent=1 // pred_region
      %s4072 = ssub.s32 128, 128
      %4073 = vsyncadd [#allocation5], %s4072
      %s4075 = sshll.u32 [#allocation4], 4
      %s4076 = int_to_ptr.vmem [resolvable:$true] %s4075
      %4078 = dma.vmem_to_hbm [thread:$0]  %s4076, 128, %s13, [#allocation5]
    $region68: #{tpu_custom_call.1} parent=1 // pred_fallthru
      _
    // Predicated region
    $region69: #{tpu_custom_call.1} parent=1 // pred_check
      _
    $region70: #{tpu_custom_call.1} parent=1 // pred_check_branch
      %4080 = sbr.rel (0) target = $region72
    $region71: #{tpu_custom_call.1} parent=1 // pred_region
      %s4082 = ssub.s32 128, 128
      %4083 = vsyncadd [#allocation5], %s4082
      %s4085 = sshll.u32 [#allocation6], 4
      %s4086 = int_to_ptr.vmem [resolvable:$true] %s4085
      %4088 = dma.vmem_to_hbm [thread:$0]  %s4086, 128, %s14, [#allocation5]
    $region72: #{tpu_custom_call.1} parent=1 // pred_fallthru
      _
    // Predicated region
    $region73: #{tpu_custom_call.1} parent=1 // pred_check
      _
    $region74: #{tpu_custom_call.1} parent=1 // pred_check_branch
      %4090 = sbr.rel (0) target = $region76
    $region75: #{tpu_custom_call.1} parent=1 // pred_region
      _
    $region76: #{tpu_custom_call.1} parent=1 // pred_fallthru
      _
    // Predicated region
    $region77: #{tpu_custom_call.1} parent=1 // pred_check
      _
    $region78: #{tpu_custom_call.1} parent=1 // pred_check_branch
      %4092 = sbr.rel (0) target = $region80
    $region79: #{tpu_custom_call.1} parent=1 // pred_region
      %s4094 = ssub.s32 256, 256
      %4095 = vsyncadd [#allocation8], %s4094
      %s4096 = sshll.u32 [#allocation7], 4
      %s4097 = int_to_ptr.vmem [resolvable:$true] %s4096
      %4102 = dma.vmem_to_hbm [thread:$0]  %s4097, 256, %s16, [#allocation8], 128, 128, 8
    $region80: #{tpu_custom_call.1} parent=1 // pred_fallthru
      _
    // Predicated region
    $region81: #{tpu_custom_call.1} parent=1 // pred_check
      _
    $region82: #{tpu_custom_call.1} parent=1 // pred_check_branch
      %4104 = sbr.rel (0) target = $region84
    $region83: #{tpu_custom_call.1} parent=1 // pred_region
      %s4106 = ssub.s32 128, 128
      %4107 = vsyncadd [#allocation8], %s4106
      %s4109 = sshll.u32 [#allocation9], 4
      %s4110 = int_to_ptr.vmem [resolvable:$true] %s4109
      %4112 = dma.vmem_to_hbm [thread:$0]  %s4110, 128, %s17, [#allocation8]
    $region84: #{tpu_custom_call.1} parent=1 // pred_fallthru
      _
    // Predicated region
    $region85: #{tpu_custom_call.1} parent=1 // pred_check
      _
    $region86: #{tpu_custom_call.1} parent=1 // pred_check_branch
      %4114 = sbr.rel (0) target = $region88
    $region87: #{tpu_custom_call.1} parent=1 // pred_region
      %4115 = dma.done [#allocation3], 768
    $region88: #{tpu_custom_call.1} parent=1 // pred_fallthru
      _
    // Predicated region
    $region89: #{tpu_custom_call.1} parent=1 // pred_check
      _
    $region90: #{tpu_custom_call.1} parent=1 // pred_check_branch
      %4117 = sbr.rel (0) target = $region92
    $region91: #{tpu_custom_call.1} parent=1 // pred_region
      %4118 = dma.done [#allocation5], 128
    $region92: #{tpu_custom_call.1} parent=1 // pred_fallthru
      _
    // Predicated region
    $region93: #{tpu_custom_call.1} parent=1 // pred_check
      _
    $region94: #{tpu_custom_call.1} parent=1 // pred_check_branch
      %4120 = sbr.rel (0) target = $region96
    $region95: #{tpu_custom_call.1} parent=1 // pred_region
      %4121 = dma.done [#allocation5], 128
    $region96: #{tpu_custom_call.1} parent=1 // pred_fallthru
      _
    // Predicated region
    $region97: #{tpu_custom_call.1} parent=1 // pred_check
      _
    $region98: #{tpu_custom_call.1} parent=1 // pred_check_branch
      %4123 = sbr.rel (0) target = $region100
    $region99: #{tpu_custom_call.1} parent=1 // pred_region
      _
    $region100: #{tpu_custom_call.1} parent=1 // pred_fallthru
      _
    // Predicated region
    $region101: #{tpu_custom_call.1} parent=1 // pred_check
      _
    $region102: #{tpu_custom_call.1} parent=1 // pred_check_branch
      %4125 = sbr.rel (0) target = $region104
    $region103: #{tpu_custom_call.1} parent=1 // pred_region
      %4126 = dma.done [#allocation8], 256
    $region104: #{tpu_custom_call.1} parent=1 // pred_fallthru
      _
    // Predicated region
    $region105: #{tpu_custom_call.1} parent=1 // pred_check
      _
    $region106: #{tpu_custom_call.1} parent=1 // pred_check_branch
      %4128 = sbr.rel (0) target = $region108
    $region107: #{tpu_custom_call.1} parent=1 // pred_region
      %4129 = dma.done [#allocation8], 128
    $region108: #{tpu_custom_call.1} parent=1 // pred_fallthru
      _
    %4130 = vsyncpa [#allocation3], 1
    %4131 = vsyncpa [#allocation5], 1
    %4132 = vsyncpa [#allocation8], 1

</llo_original>
